<compile_context>
chip_gen: v6e
topology: v6e:2x2x1
jax: 0.10.0
libtpu: 0.0.40
codegen_flags: <defaults>
</compile_context>

<pallas_src>
import functools

import jax
import jax.numpy as jnp
from jax import lax
from jax.experimental import pallas as pl
from jax.experimental.pallas import tpu as pltpu


def _layernorm(z, gamma, beta, eps=1e-5):
    mu = jnp.mean(z, axis=-1, keepdims=True)
    var = jnp.mean((z - mu) ** 2, axis=-1, keepdims=True)
    return (z - mu) * lax.rsqrt(var + eps) * gamma + beta


def peformer_kernel(x_ref, pos_ref, mbias_ref,
                    wq_ref, bq_ref, wkv_ref, bkv_ref,
                    wo_ref, bo_ref,
                    ln1g_ref, ln1b_ref,
                    w1_ref, b1_ref, w2_ref, b2_ref,
                    ln2g_ref, ln2b_ref,
                    fcw_ref, fcb_ref,
                    out_ref, *, num_heads):
    Bt, S, E = x_ref.shape            # one batch tile of Bt (padded) sequences
    H = num_heads
    Dh = E // H
    N = Bt * S
    bf16 = jnp.bfloat16

    # positional encoding broadcast-added once per tile
    x3 = x_ref[...] + pos_ref[...]                      # (Bt, S, E) f32
    x2 = x3.reshape(N, E)                               # full row block (K/V only)
    cls = x3[:, 0, :]                                   # (Bt, E) CLS input rows

    # K/V projection: the only matmul that needs every sequence position
    kv = jnp.dot(x2.astype(bf16), wkv_ref[...],
                 preferred_element_type=jnp.float32) + bkv_ref[...]   # (N, 2E)

    # Q projection for the CLS rows only (1/sqrt(Dh) already folded in)
    q = jnp.dot(cls.astype(bf16), wq_ref[...],
                preferred_element_type=jnp.float32) + bq_ref[...]     # (Bt, E)

    bias = mbias_ref[...]                               # (Bt, 1, S) key-padding bias

    # attention of the CLS query against all keys; per-head context is folded
    # straight into the pre-split output projection (no head concatenate)
    attn = jnp.zeros((Bt, E), jnp.float32)
    for h in range(H):
        qh = q[:, h * Dh:(h + 1) * Dh].reshape(Bt, 1, Dh)
        kh = kv[:, h * Dh:(h + 1) * Dh].reshape(Bt, S, Dh)
        vh = kv[:, E + h * Dh:E + (h + 1) * Dh].reshape(Bt, S, Dh)
        s = jnp.einsum('bqd,bkd->bqk', qh.astype(bf16), kh.astype(bf16),
                       preferred_element_type=jnp.float32) + bias     # (Bt,1,S)
        s = s - jnp.max(s, axis=-1, keepdims=True)
        p = jnp.exp(s)
        p = p * pl.reciprocal(jnp.sum(p, axis=-1, keepdims=True), approx=True)
        ctx = jnp.einsum('bqk,bkd->bqd', p.astype(bf16), vh.astype(bf16),
                         preferred_element_type=jnp.float32).reshape(Bt, Dh)
        attn = attn + jnp.dot(ctx.astype(bf16), wo_ref[h],
                              preferred_element_type=jnp.float32)
    attn = attn + bo_ref[...]

    # residual + LN1, FFN, residual + LN2 — CLS rows only (post-norm layer)
    y = _layernorm(cls + attn, ln1g_ref[...], ln1b_ref[...])           # (Bt, E)
    h1 = jnp.maximum(
        jnp.dot(y.astype(bf16), w1_ref[...],
                preferred_element_type=jnp.float32) + b1_ref[...], 0.0)
    ff = jnp.dot(h1.astype(bf16), w2_ref[...],
                 preferred_element_type=jnp.float32) + b2_ref[...]
    y = _layernorm(y + ff, ln2g_ref[...], ln2b_ref[...])

    # classifier head: one dense, lane-dense (Bt, 128) store per tile
    out_ref[...] = jnp.dot(y.astype(bf16), fcw_ref[...],
                           preferred_element_type=jnp.float32) + fcb_ref[...]


def sinusoidal_pos_encoding(seq_len, emb_dim):
    pos = jnp.arange(seq_len, dtype=jnp.float32)[:, None]        # (S, 1)
    i2 = jnp.arange(0, emb_dim, 2, dtype=jnp.float32)            # (E/2,)
    angle = pos / jnp.power(10000.0, i2 / emb_dim)               # (S, E/2)
    pe = jnp.zeros((seq_len, emb_dim), jnp.float32)
    pe = pe.at[:, 0::2].set(jnp.sin(angle))
    pe = pe.at[:, 1::2].set(jnp.cos(angle))
    return pe


def _round_up(v, m):
    return (v + m - 1) // m * m


def peformer_forward(x, mask, params, *, num_heads, block_b=32):
    """x: (B, L, E) float32, mask: (B, L) bool (True == padding)."""
    assert block_b % 8 == 0
    B, L, E = x.shape
    S = L + 1
    F = params["lin1_w"].shape[0]
    C = params["fc_w"].shape[0]
    H = num_heads
    Dh = E // H
    scale = 1.0 / (Dh ** 0.5)
    bf16 = jnp.bfloat16

    # pad sequence to a sublane multiple; batch to the tile size (padded key
    # rows are masked, padded batch rows are discarded, padded output lanes
    # are sliced off at the end).
    S_pad = _round_up(S, 8)
    Bt = min(block_b, _round_up(B, 8))     # keep B_pad // Bt >= 2 on v7x if B allows
    B_pad = _round_up(B, Bt)
    C_pad = _round_up(C, 128)              # lane-dense classifier output

    # glue: prepend CLS token, pad, build pos enc and key-padding bias
    cl = jnp.broadcast_to(params["cl_token"][None, :, :], (B, 1, E))
    xfull = jnp.concatenate([cl, x.astype(jnp.float32)], axis=1)          # (B, S, E)
    xfull = jnp.pad(xfull, ((0, B_pad - B), (0, S_pad - S), (0, 0)))      # (B_pad,S_pad,E)

    pos = sinusoidal_pos_encoding(S, E)
    pos = jnp.pad(pos, ((0, S_pad - S), (0, 0)))[None]                    # (1, S_pad, E)

    mfull = jnp.concatenate([jnp.zeros((B, 1), dtype=bool), mask], axis=1)       # (B, S)
    mfull = jnp.pad(mfull, ((0, 0), (0, S_pad - S)), constant_values=True)       # pad keys masked
    mfull = jnp.pad(mfull, ((0, B_pad - B), (0, 0)), constant_values=False)      # dummy batches
    mbias = jnp.where(mfull, jnp.float32(-1e30), jnp.float32(0.0))[:, None, :]   # (B_pad,1,S_pad)

    # glue: split the in-projection into Q (CLS rows only, 1/sqrt(Dh) folded)
    # and KV (all rows); transpose to right-multiply [in, out] form; pre-cast
    # matmul weights to bf16 (f32 accumulation in-kernel); pre-split W_out per
    # head; pad the classifier to 128 output lanes.
    wq = (params["in_proj_w"][:E].T * scale).astype(bf16)     # (E, E)
    bq = (params["in_proj_b"][:E] * scale)[None, :]           # (1, E) f32
    wkv = params["in_proj_w"][E:].T.astype(bf16)              # (E, 2E)
    bkv = params["in_proj_b"][E:][None, :]                    # (1, 2E) f32
    wo = params["out_proj_w"].T.reshape(H, Dh, E).astype(bf16)
    bo = params["out_proj_b"][None, :]
    w1 = params["lin1_w"].T.astype(bf16)
    b1 = params["lin1_b"][None, :]
    w2 = params["lin2_w"].T.astype(bf16)
    b2 = params["lin2_b"][None, :]
    ln1g = params["ln1_g"][None, :]
    ln1b = params["ln1_b"][None, :]
    ln2g = params["ln2_g"][None, :]
    ln2b = params["ln2_b"][None, :]
    fcw = jnp.pad(params["fc_w"].T, ((0, 0), (0, C_pad - C))).astype(bf16)  # (E, C_pad)
    fcb = jnp.pad(params["fc_b"], (0, C_pad - C))[None, :]                  # (1, C_pad)

    kernel = functools.partial(peformer_kernel, num_heads=H)
    wspec = lambda shape: pl.BlockSpec(shape, lambda b: (0, 0))
    out = pl.pallas_call(
        kernel,
        out_shape=jax.ShapeDtypeStruct((B_pad, C_pad), jnp.float32),
        grid=(B_pad // Bt,),
        in_specs=[
            pl.BlockSpec((Bt, S_pad, E), lambda b: (b, 0, 0)),   # x (+CLS), batch tile
            pl.BlockSpec((1, S_pad, E), lambda b: (0, 0, 0)),    # pos enc (constant)
            pl.BlockSpec((Bt, 1, S_pad), lambda b: (b, 0, 0)),   # key-padding bias
            wspec((E, E)), wspec((1, E)),                        # Wq (scaled), bq
            wspec((E, 2 * E)), wspec((1, 2 * E)),                # Wkv, bkv
            pl.BlockSpec((H, Dh, E), lambda b: (0, 0, 0)),       # W_out, split per head
            wspec((1, E)),                                       # b_out
            wspec((1, E)), wspec((1, E)),                        # ln1 gamma / beta
            wspec((E, F)), wspec((1, F)),                        # W1, b1
            wspec((F, E)), wspec((1, E)),                        # W2, b2
            wspec((1, E)), wspec((1, E)),                        # ln2 gamma / beta
            wspec((E, C_pad)), wspec((1, C_pad)),                # fc W, b (lane-padded)
        ],
        out_specs=pl.BlockSpec((Bt, C_pad), lambda b: (b, 0)),
        compiler_params=pltpu.CompilerParams(
            dimension_semantics=("parallel",)),                  # megacore on v7x
    )(xfull, pos, mbias, wq, bq, wkv, bkv, wo, bo, ln1g, ln1b,
      w1, b1, w2, b2, ln2g, ln2b, fcw, fcb)
    return out[:B, :C]                                           # (B, C)


def reference_forward(x, mask, params, *, num_heads):
    """Pure-JAX f32 reference of the same (inference-mode) forward pass."""
    B, L, E = x.shape
    S = L + 1
    H = num_heads
    Dh = E // H
    cl = jnp.broadcast_to(params["cl_token"][None, :, :], (B, 1, E))
    xb = jnp.concatenate([cl, x], axis=1) + sinusoidal_pos_encoding(S, E)[None]
    mfull = jnp.concatenate([jnp.zeros((B, 1), dtype=bool), mask], axis=1)
    bias = jnp.where(mfull, -1e30, 0.0)[:, None, None, :]

    qkv = xb @ params["in_proj_w"].T + params["in_proj_b"]
    q, k, v = jnp.split(qkv, 3, axis=-1)
    q = q.reshape(B, S, H, Dh)
    k = k.reshape(B, S, H, Dh)
    v = v.reshape(B, S, H, Dh)
    s = jnp.einsum("bshd,bthd->bhst", q, k) / jnp.sqrt(jnp.float32(Dh)) + bias
    p = jax.nn.softmax(s, axis=-1)
    ctx = jnp.einsum("bhst,bthd->bshd", p, v).reshape(B, S, E)
    attn_out = ctx @ params["out_proj_w"].T + params["out_proj_b"]

    def ln(z, g, b):
        mu = jnp.mean(z, -1, keepdims=True)
        var = jnp.mean((z - mu) ** 2, -1, keepdims=True)
        return (z - mu) / jnp.sqrt(var + 1e-5) * g + b

    xb = ln(xb + attn_out, params["ln1_g"], params["ln1_b"])
    ff = jnp.maximum(xb @ params["lin1_w"].T + params["lin1_b"], 0.0)
    ff = ff @ params["lin2_w"].T + params["lin2_b"]
    xb = ln(xb + ff, params["ln2_g"], params["ln2_b"])
    return xb[:, 0, :] @ params["fc_w"].T + params["fc_b"]


if __name__ == "__main__":
    # small shapes consistent with the module: B=2, seq=8, emb=32, heads=2,
    # feedforward=64, classes=1
    B, L, E, H, F, C = 2, 8, 32, 2, 64, 1
    key = jax.random.PRNGKey(0)
    ks = jax.random.split(key, 16)
    s = 0.05
    params = dict(
        cl_token=jax.random.normal(ks[0], (1, E), jnp.float32),
        in_proj_w=jax.random.normal(ks[1], (3 * E, E), jnp.float32) * s,
        in_proj_b=jax.random.normal(ks[2], (3 * E,), jnp.float32) * s,
        out_proj_w=jax.random.normal(ks[3], (E, E), jnp.float32) * s,
        out_proj_b=jax.random.normal(ks[4], (E,), jnp.float32) * s,
        lin1_w=jax.random.normal(ks[5], (F, E), jnp.float32) * s,
        lin1_b=jax.random.normal(ks[6], (F,), jnp.float32) * s,
        lin2_w=jax.random.normal(ks[7], (E, F), jnp.float32) * s,
        lin2_b=jax.random.normal(ks[8], (E,), jnp.float32) * s,
        ln1_g=jnp.ones((E,), jnp.float32),
        ln1_b=jnp.zeros((E,), jnp.float32),
        ln2_g=jnp.ones((E,), jnp.float32),
        ln2_b=jnp.zeros((E,), jnp.float32),
        fc_w=jax.random.normal(ks[9], (C, E), jnp.float32) * s,
        fc_b=jax.random.normal(ks[10], (C,), jnp.float32) * s,
    )
    x = jax.random.normal(ks[11], (B, L, E), jnp.float32)
    mask = jax.random.bernoulli(ks[12], 0.3, (B, L))  # True == padding

    out = peformer_forward(x, mask, params, num_heads=H)
    out = jax.block_until_ready(out)
    ref = reference_forward(x, mask, params, num_heads=H)

    assert out.shape == (B, C), out.shape
    # tolerance widened vs the all-f32 kernel: matmul operands are bf16
    # (f32 accumulation) and the softmax uses the approx EUP reciprocal.
    assert jnp.allclose(out, ref, atol=2e-2, rtol=2e-2), (out, ref)
    print("KERNEL_OK")
</pallas_src>

<mosaic_0001>
module attributes {stable_mosaic.version = 11 : i64} {
  func.func @peformer_kernel(%arg0: i32, %arg1: memref<8x16x32xf32, #tpu.memory_space<vmem>>, %arg2: memref<1x16x32xf32, #tpu.memory_space<vmem>>, %arg3: memref<8x1x16xf32, #tpu.memory_space<vmem>>, %arg4: memref<32x32xbf16, #tpu.memory_space<vmem>>, %arg5: memref<1x32xf32, #tpu.memory_space<vmem>>, %arg6: memref<32x64xbf16, #tpu.memory_space<vmem>>, %arg7: memref<1x64xf32, #tpu.memory_space<vmem>>, %arg8: memref<2x16x32xbf16, #tpu.memory_space<vmem>>, %arg9: memref<1x32xf32, #tpu.memory_space<vmem>>, %arg10: memref<1x32xf32, #tpu.memory_space<vmem>>, %arg11: memref<1x32xf32, #tpu.memory_space<vmem>>, %arg12: memref<32x64xbf16, #tpu.memory_space<vmem>>, %arg13: memref<1x64xf32, #tpu.memory_space<vmem>>, %arg14: memref<64x32xbf16, #tpu.memory_space<vmem>>, %arg15: memref<1x32xf32, #tpu.memory_space<vmem>>, %arg16: memref<1x32xf32, #tpu.memory_space<vmem>>, %arg17: memref<1x32xf32, #tpu.memory_space<vmem>>, %arg18: memref<32x128xbf16, #tpu.memory_space<vmem>>, %arg19: memref<1x128xf32, #tpu.memory_space<vmem>>, %arg20: memref<8x128xf32, #tpu.memory_space<vmem>>) attributes {dimension_semantics = [#tpu.dimension_semantics<parallel>], iteration_bounds = array<i64: 1>, scalar_prefetch = 0 : i64, scratch_operands = 0 : i64, tpu.core_type = #tpu.core_type<tc>, window_params = [{transform_indices = @transform_0, window_bounds = array<i64: 8, 16, 32>}, {pipeline_mode = #tpu.pipeline_mode<synchronous>, transform_indices = @transform_1, window_bounds = array<i64: 1, 16, 32>}, {transform_indices = @transform_2, window_bounds = array<i64: 8, 1, 16>}, {pipeline_mode = #tpu.pipeline_mode<synchronous>, transform_indices = @transform_3, window_bounds = array<i64: 32, 32>}, {pipeline_mode = #tpu.pipeline_mode<synchronous>, transform_indices = @transform_4, window_bounds = array<i64: 1, 32>}, {pipeline_mode = #tpu.pipeline_mode<synchronous>, transform_indices = @transform_5, window_bounds = array<i64: 32, 64>}, {pipeline_mode = #tpu.pipeline_mode<synchronous>, transform_indices = @transform_6, window_bounds = array<i64: 1, 64>}, {pipeline_mode = #tpu.pipeline_mode<synchronous>, transform_indices = @transform_7, window_bounds = array<i64: 2, 16, 32>}, {pipeline_mode = #tpu.pipeline_mode<synchronous>, transform_indices = @transform_8, window_bounds = array<i64: 1, 32>}, {pipeline_mode = #tpu.pipeline_mode<synchronous>, transform_indices = @transform_9, window_bounds = array<i64: 1, 32>}, {pipeline_mode = #tpu.pipeline_mode<synchronous>, transform_indices = @transform_10, window_bounds = array<i64: 1, 32>}, {pipeline_mode = #tpu.pipeline_mode<synchronous>, transform_indices = @transform_11, window_bounds = array<i64: 32, 64>}, {pipeline_mode = #tpu.pipeline_mode<synchronous>, transform_indices = @transform_12, window_bounds = array<i64: 1, 64>}, {pipeline_mode = #tpu.pipeline_mode<synchronous>, transform_indices = @transform_13, window_bounds = array<i64: 64, 32>}, {pipeline_mode = #tpu.pipeline_mode<synchronous>, transform_indices = @transform_14, window_bounds = array<i64: 1, 32>}, {pipeline_mode = #tpu.pipeline_mode<synchronous>, transform_indices = @transform_15, window_bounds = array<i64: 1, 32>}, {pipeline_mode = #tpu.pipeline_mode<synchronous>, transform_indices = @transform_16, window_bounds = array<i64: 1, 32>}, {pipeline_mode = #tpu.pipeline_mode<synchronous>, transform_indices = @transform_17, window_bounds = array<i64: 32, 128>}, {pipeline_mode = #tpu.pipeline_mode<synchronous>, transform_indices = @transform_18, window_bounds = array<i64: 1, 128>}, {transform_indices = @transform_19, window_bounds = array<i64: 8, 128>}]} {
    %c0 = arith.constant 0 : index
    %c0_0 = arith.constant 0 : index
    %c0_1 = arith.constant 0 : index
    %0 = vector.load %arg1[%c0, %c0_0, %c0_1] : memref<8x16x32xf32, #tpu.memory_space<vmem>>, vector<8x16x32xf32>
    %c0_2 = arith.constant 0 : index
    %c0_3 = arith.constant 0 : index
    %c0_4 = arith.constant 0 : index
    %1 = vector.load %arg2[%c0_2, %c0_3, %c0_4] : memref<1x16x32xf32, #tpu.memory_space<vmem>>, vector<1x16x32xf32>
    %2 = vector.broadcast %1 : vector<1x16x32xf32> to vector<8x16x32xf32>
    %3 = arith.addf %0, %2 : vector<8x16x32xf32>
    %4 = vector.shape_cast %3 : vector<8x16x32xf32> to vector<128x32xf32>
    %5 = vector.extract_strided_slice %3 {offsets = [0, 0, 0], sizes = [8, 1, 32], strides = [1, 1, 1]} : vector<8x16x32xf32> to vector<8x1x32xf32>
    %6 = vector.shape_cast %5 : vector<8x1x32xf32> to vector<8x32xf32>
    %7 = arith.truncf %4 : vector<128x32xf32> to vector<128x32xbf16>
    %c0_5 = arith.constant 0 : index
    %c0_6 = arith.constant 0 : index
    %8 = vector.load %arg6[%c0_5, %c0_6] : memref<32x64xbf16, #tpu.memory_space<vmem>>, vector<32x64xbf16>
    %cst = arith.constant dense<0.000000e+00> : vector<128x64xf32>
    %9 = tpu.matmul %7, %8, %cst {dimension_numbers = #tpu.dot_dimension_numbers<[1], [0], [0], [1], [0, 0, 1, 1], [], []>} : vector<128x32xbf16>, vector<32x64xbf16>, vector<128x64xf32> -> vector<128x64xf32>
    %c0_7 = arith.constant 0 : index
    %c0_8 = arith.constant 0 : index
    %10 = vector.load %arg7[%c0_7, %c0_8] : memref<1x64xf32, #tpu.memory_space<vmem>>, vector<1x64xf32>
    %11 = vector.broadcast %10 : vector<1x64xf32> to vector<128x64xf32>
    %12 = arith.addf %9, %11 : vector<128x64xf32>
    %13 = arith.truncf %6 : vector<8x32xf32> to vector<8x32xbf16>
    %c0_9 = arith.constant 0 : index
    %c0_10 = arith.constant 0 : index
    %14 = vector.load %arg4[%c0_9, %c0_10] : memref<32x32xbf16, #tpu.memory_space<vmem>>, vector<32x32xbf16>
    %cst_11 = arith.constant dense<0.000000e+00> : vector<8x32xf32>
    %15 = tpu.matmul %13, %14, %cst_11 {dimension_numbers = #tpu.dot_dimension_numbers<[1], [0], [0], [1], [0, 0, 1, 1], [], []>} : vector<8x32xbf16>, vector<32x32xbf16>, vector<8x32xf32> -> vector<8x32xf32>
    %c0_12 = arith.constant 0 : index
    %c0_13 = arith.constant 0 : index
    %16 = vector.load %arg5[%c0_12, %c0_13] : memref<1x32xf32, #tpu.memory_space<vmem>>, vector<1x32xf32>
    %17 = vector.broadcast %16 : vector<1x32xf32> to vector<8x32xf32>
    %18 = arith.addf %15, %17 : vector<8x32xf32>
    %c0_14 = arith.constant 0 : index
    %c0_15 = arith.constant 0 : index
    %c0_16 = arith.constant 0 : index
    %19 = vector.load %arg3[%c0_14, %c0_15, %c0_16] : memref<8x1x16xf32, #tpu.memory_space<vmem>>, vector<8x1x16xf32>
    %cst_17 = arith.constant 0.000000e+00 : f32
    %20 = vector.broadcast %cst_17 : f32 to vector<8x32xf32>
    %21 = vector.extract_strided_slice %18 {offsets = [0, 0], sizes = [8, 16], strides = [1, 1]} : vector<8x32xf32> to vector<8x16xf32>
    %22 = vector.shape_cast %21 : vector<8x16xf32> to vector<8x1x16xf32>
    %23 = vector.extract_strided_slice %12 {offsets = [0, 0], sizes = [128, 16], strides = [1, 1]} : vector<128x64xf32> to vector<128x16xf32>
    %24 = vector.shape_cast %23 : vector<128x16xf32> to vector<8x16x16xf32>
    %25 = vector.extract_strided_slice %12 {offsets = [0, 32], sizes = [128, 16], strides = [1, 1]} : vector<128x64xf32> to vector<128x16xf32>
    %26 = vector.shape_cast %25 : vector<128x16xf32> to vector<8x16x16xf32>
    %27 = arith.truncf %22 : vector<8x1x16xf32> to vector<8x1x16xbf16>
    %28 = arith.truncf %24 : vector<8x16x16xf32> to vector<8x16x16xbf16>
    "tpu.trace_start"() <{level = 10 : i32, message = "bqd,bkd->bqk"}> : () -> ()
    %cst_18 = arith.constant dense<0.000000e+00> : vector<8x1x16xf32>
    %29 = tpu.matmul %27, %28, %cst_18 {dimension_numbers = #tpu.dot_dimension_numbers<[2], [2], [1], [1], [0, 0, 0, 1, 1, 1], [0], [0]>} : vector<8x1x16xbf16>, vector<8x16x16xbf16>, vector<8x1x16xf32> -> vector<8x1x16xf32>
    "tpu.trace_stop"() : () -> ()
    %30 = arith.addf %29, %19 : vector<8x1x16xf32>
    %cst_19 = arith.constant dense<0xFF800000> : vector<8x1xf32>
    %31 = vector.multi_reduction <maximumf>, %30, %cst_19 [2] : vector<8x1x16xf32> to vector<8x1xf32>
    %32 = vector.shape_cast %31 : vector<8x1xf32> to vector<8x1x1xf32>
    %33 = vector.broadcast %32 : vector<8x1x1xf32> to vector<8x1x16xf32>
    %34 = arith.subf %30, %33 : vector<8x1x16xf32>
    %35 = math.exp %34 : vector<8x1x16xf32>
    %cst_20 = arith.constant dense<0.000000e+00> : vector<8x1xf32>
    %36 = vector.multi_reduction <add>, %35, %cst_20 [2] : vector<8x1x16xf32> to vector<8x1xf32>
    %37 = vector.shape_cast %36 : vector<8x1xf32> to vector<8x1x1xf32>
    %38 = tpu.reciprocal %37 {approx = true} : vector<8x1x1xf32> -> vector<8x1x1xf32>
    %39 = vector.broadcast %38 : vector<8x1x1xf32> to vector<8x1x16xf32>
    %40 = arith.mulf %35, %39 : vector<8x1x16xf32>
    %41 = arith.truncf %40 : vector<8x1x16xf32> to vector<8x1x16xbf16>
    %42 = arith.truncf %26 : vector<8x16x16xf32> to vector<8x16x16xbf16>
    "tpu.trace_start"() <{level = 10 : i32, message = "bqk,bkd->bqd"}> : () -> ()
    %cst_21 = arith.constant dense<0.000000e+00> : vector<8x1x16xf32>
    %43 = tpu.matmul %41, %42, %cst_21 {dimension_numbers = #tpu.dot_dimension_numbers<[2], [1], [1], [2], [0, 0, 0, 1, 1, 2], [0], [0]>} : vector<8x1x16xbf16>, vector<8x16x16xbf16>, vector<8x1x16xf32> -> vector<8x1x16xf32>
    "tpu.trace_stop"() : () -> ()
    %44 = vector.shape_cast %43 : vector<8x1x16xf32> to vector<8x16xf32>
    %45 = arith.truncf %44 : vector<8x16xf32> to vector<8x16xbf16>
    %c0_22 = arith.constant 0 : index
    %c0_23 = arith.constant 0 : index
    %c0_24 = arith.constant 0 : index
    %46 = vector.load %arg8[%c0_22, %c0_23, %c0_24] : memref<2x16x32xbf16, #tpu.memory_space<vmem>>, vector<1x16x32xbf16>
    %47 = vector.shape_cast %46 : vector<1x16x32xbf16> to vector<16x32xbf16>
    %cst_25 = arith.constant dense<0.000000e+00> : vector<8x32xf32>
    %48 = tpu.matmul %45, %47, %cst_25 {dimension_numbers = #tpu.dot_dimension_numbers<[1], [0], [0], [1], [0, 0, 1, 1], [], []>} : vector<8x16xbf16>, vector<16x32xbf16>, vector<8x32xf32> -> vector<8x32xf32>
    %49 = arith.addf %20, %48 : vector<8x32xf32>
    %50 = vector.extract_strided_slice %18 {offsets = [0, 16], sizes = [8, 16], strides = [1, 1]} : vector<8x32xf32> to vector<8x16xf32>
    %51 = vector.shape_cast %50 : vector<8x16xf32> to vector<8x1x16xf32>
    %52 = vector.extract_strided_slice %12 {offsets = [0, 16], sizes = [128, 16], strides = [1, 1]} : vector<128x64xf32> to vector<128x16xf32>
    %53 = vector.shape_cast %52 : vector<128x16xf32> to vector<8x16x16xf32>
    %54 = vector.extract_strided_slice %12 {offsets = [0, 48], sizes = [128, 16], strides = [1, 1]} : vector<128x64xf32> to vector<128x16xf32>
    %55 = vector.shape_cast %54 : vector<128x16xf32> to vector<8x16x16xf32>
    %56 = arith.truncf %51 : vector<8x1x16xf32> to vector<8x1x16xbf16>
    %57 = arith.truncf %53 : vector<8x16x16xf32> to vector<8x16x16xbf16>
    "tpu.trace_start"() <{level = 10 : i32, message = "bqd,bkd->bqk"}> : () -> ()
    %cst_26 = arith.constant dense<0.000000e+00> : vector<8x1x16xf32>
    %58 = tpu.matmul %56, %57, %cst_26 {dimension_numbers = #tpu.dot_dimension_numbers<[2], [2], [1], [1], [0, 0, 0, 1, 1, 1], [0], [0]>} : vector<8x1x16xbf16>, vector<8x16x16xbf16>, vector<8x1x16xf32> -> vector<8x1x16xf32>
    "tpu.trace_stop"() : () -> ()
    %59 = arith.addf %58, %19 : vector<8x1x16xf32>
    %cst_27 = arith.constant dense<0xFF800000> : vector<8x1xf32>
    %60 = vector.multi_reduction <maximumf>, %59, %cst_27 [2] : vector<8x1x16xf32> to vector<8x1xf32>
    %61 = vector.shape_cast %60 : vector<8x1xf32> to vector<8x1x1xf32>
    %62 = vector.broadcast %61 : vector<8x1x1xf32> to vector<8x1x16xf32>
    %63 = arith.subf %59, %62 : vector<8x1x16xf32>
    %64 = math.exp %63 : vector<8x1x16xf32>
    %cst_28 = arith.constant dense<0.000000e+00> : vector<8x1xf32>
    %65 = vector.multi_reduction <add>, %64, %cst_28 [2] : vector<8x1x16xf32> to vector<8x1xf32>
    %66 = vector.shape_cast %65 : vector<8x1xf32> to vector<8x1x1xf32>
    %67 = tpu.reciprocal %66 {approx = true} : vector<8x1x1xf32> -> vector<8x1x1xf32>
    %68 = vector.broadcast %67 : vector<8x1x1xf32> to vector<8x1x16xf32>
    %69 = arith.mulf %64, %68 : vector<8x1x16xf32>
    %70 = arith.truncf %69 : vector<8x1x16xf32> to vector<8x1x16xbf16>
    %71 = arith.truncf %55 : vector<8x16x16xf32> to vector<8x16x16xbf16>
    "tpu.trace_start"() <{level = 10 : i32, message = "bqk,bkd->bqd"}> : () -> ()
    %cst_29 = arith.constant dense<0.000000e+00> : vector<8x1x16xf32>
    %72 = tpu.matmul %70, %71, %cst_29 {dimension_numbers = #tpu.dot_dimension_numbers<[2], [1], [1], [2], [0, 0, 0, 1, 1, 2], [0], [0]>} : vector<8x1x16xbf16>, vector<8x16x16xbf16>, vector<8x1x16xf32> -> vector<8x1x16xf32>
    "tpu.trace_stop"() : () -> ()
    %73 = vector.shape_cast %72 : vector<8x1x16xf32> to vector<8x16xf32>
    %74 = arith.truncf %73 : vector<8x16xf32> to vector<8x16xbf16>
    %c1 = arith.constant 1 : index
    %c0_30 = arith.constant 0 : index
    %c0_31 = arith.constant 0 : index
    %75 = vector.load %arg8[%c1, %c0_30, %c0_31] : memref<2x16x32xbf16, #tpu.memory_space<vmem>>, vector<1x16x32xbf16>
    %76 = vector.shape_cast %75 : vector<1x16x32xbf16> to vector<16x32xbf16>
    %cst_32 = arith.constant dense<0.000000e+00> : vector<8x32xf32>
    %77 = tpu.matmul %74, %76, %cst_32 {dimension_numbers = #tpu.dot_dimension_numbers<[1], [0], [0], [1], [0, 0, 1, 1], [], []>} : vector<8x16xbf16>, vector<16x32xbf16>, vector<8x32xf32> -> vector<8x32xf32>
    %78 = arith.addf %49, %77 : vector<8x32xf32>
    %c0_33 = arith.constant 0 : index
    %c0_34 = arith.constant 0 : index
    %79 = vector.load %arg9[%c0_33, %c0_34] : memref<1x32xf32, #tpu.memory_space<vmem>>, vector<1x32xf32>
    %80 = vector.broadcast %79 : vector<1x32xf32> to vector<8x32xf32>
    %81 = arith.addf %78, %80 : vector<8x32xf32>
    %82 = arith.addf %6, %81 : vector<8x32xf32>
    %c0_35 = arith.constant 0 : index
    %c0_36 = arith.constant 0 : index
    %83 = vector.load %arg10[%c0_35, %c0_36] : memref<1x32xf32, #tpu.memory_space<vmem>>, vector<1x32xf32>
    %c0_37 = arith.constant 0 : index
    %c0_38 = arith.constant 0 : index
    %84 = vector.load %arg11[%c0_37, %c0_38] : memref<1x32xf32, #tpu.memory_space<vmem>>, vector<1x32xf32>
    %cst_39 = arith.constant dense<0.000000e+00> : vector<8xf32>
    %85 = vector.multi_reduction <add>, %82, %cst_39 [1] : vector<8x32xf32> to vector<8xf32>
    %86 = vector.shape_cast %85 : vector<8xf32> to vector<8x1xf32>
    %cst_40 = arith.constant 3.200000e+01 : f32
    %87 = vector.broadcast %cst_40 : f32 to vector<8x1xf32>
    %88 = arith.divf %86, %87 : vector<8x1xf32>
    %89 = vector.broadcast %88 : vector<8x1xf32> to vector<8x32xf32>
    %90 = arith.subf %82, %89 : vector<8x32xf32>
    %91 = arith.mulf %90, %90 : vector<8x32xf32>
    %cst_41 = arith.constant dense<0.000000e+00> : vector<8xf32>
    %92 = vector.multi_reduction <add>, %91, %cst_41 [1] : vector<8x32xf32> to vector<8xf32>
    %93 = vector.shape_cast %92 : vector<8xf32> to vector<8x1xf32>
    %cst_42 = arith.constant 3.200000e+01 : f32
    %94 = vector.broadcast %cst_42 : f32 to vector<8x1xf32>
    %95 = arith.divf %93, %94 : vector<8x1xf32>
    %96 = vector.broadcast %88 : vector<8x1xf32> to vector<8x32xf32>
    %97 = arith.subf %82, %96 : vector<8x32xf32>
    %cst_43 = arith.constant 9.99999974E-6 : f32
    %98 = vector.broadcast %cst_43 : f32 to vector<8x1xf32>
    %99 = arith.addf %95, %98 : vector<8x1xf32>
    %100 = math.rsqrt %99 : vector<8x1xf32>
    %101 = vector.broadcast %100 : vector<8x1xf32> to vector<8x32xf32>
    %102 = arith.mulf %97, %101 : vector<8x32xf32>
    %103 = vector.broadcast %83 : vector<1x32xf32> to vector<8x32xf32>
    %104 = arith.mulf %102, %103 : vector<8x32xf32>
    %105 = vector.broadcast %84 : vector<1x32xf32> to vector<8x32xf32>
    %106 = arith.addf %104, %105 : vector<8x32xf32>
    %107 = arith.truncf %106 : vector<8x32xf32> to vector<8x32xbf16>
    %c0_44 = arith.constant 0 : index
    %c0_45 = arith.constant 0 : index
    %108 = vector.load %arg12[%c0_44, %c0_45] : memref<32x64xbf16, #tpu.memory_space<vmem>>, vector<32x64xbf16>
    %cst_46 = arith.constant dense<0.000000e+00> : vector<8x64xf32>
    %109 = tpu.matmul %107, %108, %cst_46 {dimension_numbers = #tpu.dot_dimension_numbers<[1], [0], [0], [1], [0, 0, 1, 1], [], []>} : vector<8x32xbf16>, vector<32x64xbf16>, vector<8x64xf32> -> vector<8x64xf32>
    %c0_47 = arith.constant 0 : index
    %c0_48 = arith.constant 0 : index
    %110 = vector.load %arg13[%c0_47, %c0_48] : memref<1x64xf32, #tpu.memory_space<vmem>>, vector<1x64xf32>
    %111 = vector.broadcast %110 : vector<1x64xf32> to vector<8x64xf32>
    %112 = arith.addf %109, %111 : vector<8x64xf32>
    %cst_49 = arith.constant 0.000000e+00 : f32
    %113 = vector.broadcast %cst_49 : f32 to vector<8x64xf32>
    %114 = arith.maximumf %112, %113 : vector<8x64xf32>
    %115 = arith.truncf %114 : vector<8x64xf32> to vector<8x64xbf16>
    %c0_50 = arith.constant 0 : index
    %c0_51 = arith.constant 0 : index
    %116 = vector.load %arg14[%c0_50, %c0_51] : memref<64x32xbf16, #tpu.memory_space<vmem>>, vector<64x32xbf16>
    %cst_52 = arith.constant dense<0.000000e+00> : vector<8x32xf32>
    %117 = tpu.matmul %115, %116, %cst_52 {dimension_numbers = #tpu.dot_dimension_numbers<[1], [0], [0], [1], [0, 0, 1, 1], [], []>} : vector<8x64xbf16>, vector<64x32xbf16>, vector<8x32xf32> -> vector<8x32xf32>
    %c0_53 = arith.constant 0 : index
    %c0_54 = arith.constant 0 : index
    %118 = vector.load %arg15[%c0_53, %c0_54] : memref<1x32xf32, #tpu.memory_space<vmem>>, vector<1x32xf32>
    %119 = vector.broadcast %118 : vector<1x32xf32> to vector<8x32xf32>
    %120 = arith.addf %117, %119 : vector<8x32xf32>
    %121 = arith.addf %106, %120 : vector<8x32xf32>
    %c0_55 = arith.constant 0 : index
    %c0_56 = arith.constant 0 : index
    %122 = vector.load %arg16[%c0_55, %c0_56] : memref<1x32xf32, #tpu.memory_space<vmem>>, vector<1x32xf32>
    %c0_57 = arith.constant 0 : index
    %c0_58 = arith.constant 0 : index
    %123 = vector.load %arg17[%c0_57, %c0_58] : memref<1x32xf32, #tpu.memory_space<vmem>>, vector<1x32xf32>
    %cst_59 = arith.constant dense<0.000000e+00> : vector<8xf32>
    %124 = vector.multi_reduction <add>, %121, %cst_59 [1] : vector<8x32xf32> to vector<8xf32>
    %125 = vector.shape_cast %124 : vector<8xf32> to vector<8x1xf32>
    %cst_60 = arith.constant 3.200000e+01 : f32
    %126 = vector.broadcast %cst_60 : f32 to vector<8x1xf32>
    %127 = arith.divf %125, %126 : vector<8x1xf32>
    %128 = vector.broadcast %127 : vector<8x1xf32> to vector<8x32xf32>
    %129 = arith.subf %121, %128 : vector<8x32xf32>
    %130 = arith.mulf %129, %129 : vector<8x32xf32>
    %cst_61 = arith.constant dense<0.000000e+00> : vector<8xf32>
    %131 = vector.multi_reduction <add>, %130, %cst_61 [1] : vector<8x32xf32> to vector<8xf32>
    %132 = vector.shape_cast %131 : vector<8xf32> to vector<8x1xf32>
    %cst_62 = arith.constant 3.200000e+01 : f32
    %133 = vector.broadcast %cst_62 : f32 to vector<8x1xf32>
    %134 = arith.divf %132, %133 : vector<8x1xf32>
    %135 = vector.broadcast %127 : vector<8x1xf32> to vector<8x32xf32>
    %136 = arith.subf %121, %135 : vector<8x32xf32>
    %cst_63 = arith.constant 9.99999974E-6 : f32
    %137 = vector.broadcast %cst_63 : f32 to vector<8x1xf32>
    %138 = arith.addf %134, %137 : vector<8x1xf32>
    %139 = math.rsqrt %138 : vector<8x1xf32>
    %140 = vector.broadcast %139 : vector<8x1xf32> to vector<8x32xf32>
    %141 = arith.mulf %136, %140 : vector<8x32xf32>
    %142 = vector.broadcast %122 : vector<1x32xf32> to vector<8x32xf32>
    %143 = arith.mulf %141, %142 : vector<8x32xf32>
    %144 = vector.broadcast %123 : vector<1x32xf32> to vector<8x32xf32>
    %145 = arith.addf %143, %144 : vector<8x32xf32>
    %146 = arith.truncf %145 : vector<8x32xf32> to vector<8x32xbf16>
    %c0_64 = arith.constant 0 : index
    %c0_65 = arith.constant 0 : index
    %147 = vector.load %arg18[%c0_64, %c0_65] : memref<32x128xbf16, #tpu.memory_space<vmem>>, vector<32x128xbf16>
    %cst_66 = arith.constant dense<0.000000e+00> : vector<8x128xf32>
    %148 = tpu.matmul %146, %147, %cst_66 {dimension_numbers = #tpu.dot_dimension_numbers<[1], [0], [0], [1], [0, 0, 1, 1], [], []>} : vector<8x32xbf16>, vector<32x128xbf16>, vector<8x128xf32> -> vector<8x128xf32>
    %c0_67 = arith.constant 0 : index
    %c0_68 = arith.constant 0 : index
    %149 = vector.load %arg19[%c0_67, %c0_68] : memref<1x128xf32, #tpu.memory_space<vmem>>, vector<1x128xf32>
    %150 = vector.broadcast %149 : vector<1x128xf32> to vector<8x128xf32>
    %151 = arith.addf %148, %150 : vector<8x128xf32>
    %c0_69 = arith.constant 0 : index
    %c0_70 = arith.constant 0 : index
    %152 = vector.load %arg20[%c0_69, %c0_70] : memref<8x128xf32, #tpu.memory_space<vmem>>, vector<8x128xf32>
    tpu.vector_store %arg20[%c0_69, %c0_70], %151 {strides = array<i32>} : memref<8x128xf32, #tpu.memory_space<vmem>>, vector<8x128xf32>,
    return
  }
  func.func @transform_0(%arg0: i32) -> (i32, i32, i32) {
    %c0_i32 = arith.constant 0 : i32
    %c0_i32_0 = arith.constant 0 : i32
    %c0_i32_1 = arith.constant 0 : i32
    return %arg0, %c0_i32, %c0_i32_0 : i32, i32, i32
  }
  func.func @transform_1(%arg0: i32) -> (i32, i32, i32) {
    %c0_i32 = arith.constant 0 : i32
    %c0_i32_0 = arith.constant 0 : i32
    %c0_i32_1 = arith.constant 0 : i32
    %c0_i32_2 = arith.constant 0 : i32
    return %c0_i32, %c0_i32_0, %c0_i32_1 : i32, i32, i32
  }
  func.func @transform_2(%arg0: i32) -> (i32, i32, i32) {
    %c0_i32 = arith.constant 0 : i32
    %c0_i32_0 = arith.constant 0 : i32
    %c0_i32_1 = arith.constant 0 : i32
    return %arg0, %c0_i32, %c0_i32_0 : i32, i32, i32
  }
  func.func @transform_3(%arg0: i32) -> (i32, i32) {
    %c0_i32 = arith.constant 0 : i32
    %c0_i32_0 = arith.constant 0 : i32
    %c0_i32_1 = arith.constant 0 : i32
    return %c0_i32, %c0_i32_0 : i32, i32
  }
  func.func @transform_4(%arg0: i32) -> (i32, i32) {
    %c0_i32 = arith.constant 0 : i32
    %c0_i32_0 = arith.constant 0 : i32
    %c0_i32_1 = arith.constant 0 : i32
    return %c0_i32, %c0_i32_0 : i32, i32
  }
  func.func @transform_5(%arg0: i32) -> (i32, i32) {
    %c0_i32 = arith.constant 0 : i32
    %c0_i32_0 = arith.constant 0 : i32
    %c0_i32_1 = arith.constant 0 : i32
    return %c0_i32, %c0_i32_0 : i32, i32
  }
  func.func @transform_6(%arg0: i32) -> (i32, i32) {
    %c0_i32 = arith.constant 0 : i32
    %c0_i32_0 = arith.constant 0 : i32
    %c0_i32_1 = arith.constant 0 : i32
    return %c0_i32, %c0_i32_0 : i32, i32
  }
  func.func @transform_7(%arg0: i32) -> (i32, i32, i32) {
    %c0_i32 = arith.constant 0 : i32
    %c0_i32_0 = arith.constant 0 : i32
    %c0_i32_1 = arith.constant 0 : i32
    %c0_i32_2 = arith.constant 0 : i32
    return %c0_i32, %c0_i32_0, %c0_i32_1 : i32, i32, i32
  }
  func.func @transform_8(%arg0: i32) -> (i32, i32) {
    %c0_i32 = arith.constant 0 : i32
    %c0_i32_0 = arith.constant 0 : i32
    %c0_i32_1 = arith.constant 0 : i32
    return %c0_i32, %c0_i32_0 : i32, i32
  }
  func.func @transform_9(%arg0: i32) -> (i32, i32) {
    %c0_i32 = arith.constant 0 : i32
    %c0_i32_0 = arith.constant 0 : i32
    %c0_i32_1 = arith.constant 0 : i32
    return %c0_i32, %c0_i32_0 : i32, i32
  }
  func.func @transform_10(%arg0: i32) -> (i32, i32) {
    %c0_i32 = arith.constant 0 : i32
    %c0_i32_0 = arith.constant 0 : i32
    %c0_i32_1 = arith.constant 0 : i32
    return %c0_i32, %c0_i32_0 : i32, i32
  }
  func.func @transform_11(%arg0: i32) -> (i32, i32) {
    %c0_i32 = arith.constant 0 : i32
    %c0_i32_0 = arith.constant 0 : i32
    %c0_i32_1 = arith.constant 0 : i32
    return %c0_i32, %c0_i32_0 : i32, i32
  }
  func.func @transform_12(%arg0: i32) -> (i32, i32) {
    %c0_i32 = arith.constant 0 : i32
    %c0_i32_0 = arith.constant 0 : i32
    %c0_i32_1 = arith.constant 0 : i32
    return %c0_i32, %c0_i32_0 : i32, i32
  }
  func.func @transform_13(%arg0: i32) -> (i32, i32) {
    %c0_i32 = arith.constant 0 : i32
    %c0_i32_0 = arith.constant 0 : i32
    %c0_i32_1 = arith.constant 0 : i32
    return %c0_i32, %c0_i32_0 : i32, i32
  }
  func.func @transform_14(%arg0: i32) -> (i32, i32) {
    %c0_i32 = arith.constant 0 : i32
    %c0_i32_0 = arith.constant 0 : i32
    %c0_i32_1 = arith.constant 0 : i32
    return %c0_i32, %c0_i32_0 : i32, i32
  }
  func.func @transform_15(%arg0: i32) -> (i32, i32) {
    %c0_i32 = arith.constant 0 : i32
    %c0_i32_0 = arith.constant 0 : i32
    %c0_i32_1 = arith.constant 0 : i32
    return %c0_i32, %c0_i32_0 : i32, i32
  }
  func.func @transform_16(%arg0: i32) -> (i32, i32) {
    %c0_i32 = arith.constant 0 : i32
    %c0_i32_0 = arith.constant 0 : i32
    %c0_i32_1 = arith.constant 0 : i32
    return %c0_i32, %c0_i32_0 : i32, i32
  }
  func.func @transform_17(%arg0: i32) -> (i32, i32) {
    %c0_i32 = arith.constant 0 : i32
    %c0_i32_0 = arith.constant 0 : i32
    %c0_i32_1 = arith.constant 0 : i32
    return %c0_i32, %c0_i32_0 : i32, i32
  }
  func.func @transform_18(%arg0: i32) -> (i32, i32) {
    %c0_i32 = arith.constant 0 : i32
    %c0_i32_0 = arith.constant 0 : i32
    %c0_i32_1 = arith.constant 0 : i32
    return %c0_i32, %c0_i32_0 : i32, i32
  }
  func.func @transform_19(%arg0: i32) -> (i32, i32) {
    %c0_i32 = arith.constant 0 : i32
    %c0_i32_0 = arith.constant 0 : i32
    return %arg0, %c0_i32 : i32, i32
  }
}

</mosaic_0001>

<llo_original>
// kernel: tpu_custom_call.1
$region0: #{tpu_custom_call.1}
  #allocation0 [shape = 'u32[]', space=smem, size = 0x4, offset = 0x4, fixed_abs, tag = 'smem constant byte address 0x4 - core index']
  #allocation1 [shape = 'u32[144,128]{1,0:T(1,128)}', space=vmem, size = 0x12000, scoped, tag = 'internal scratch']
  %s0 = inlined_call_operand.hbm [shape: f32[8,16,32], index: 0, kind: input, shape index: {}]
  %s1 = inlined_call_operand.vmem [shape: f32[1,16,32], index: 1, kind: input, shape index: {}]
  %s2 = inlined_call_operand.hbm [shape: f32[8,1,16], index: 2, kind: input, shape index: {}]
  %s3 = inlined_call_operand.vmem [shape: bf16[32,32], index: 3, kind: input, shape index: {}]
  %s4 = inlined_call_operand.vmem [shape: f32[1,32], index: 4, kind: input, shape index: {}]
  %s5 = inlined_call_operand.vmem [shape: bf16[32,64], index: 5, kind: input, shape index: {}]
  %s6 = inlined_call_operand.vmem [shape: f32[1,64], index: 6, kind: input, shape index: {}]
  %s7 = inlined_call_operand.hbm [shape: bf16[2,16,32], index: 7, kind: input, shape index: {}]
  %s8 = inlined_call_operand.vmem [shape: f32[1,32], index: 8, kind: input, shape index: {}]
  %s9 = inlined_call_operand.vmem [shape: f32[1,32], index: 9, kind: input, shape index: {}]
  %s10 = inlined_call_operand.vmem [shape: f32[1,32], index: 10, kind: input, shape index: {}]
  %s11 = inlined_call_operand.hbm [shape: bf16[32,64], index: 11, kind: input, shape index: {}]
  %s12 = inlined_call_operand.vmem [shape: f32[1,64], index: 12, kind: input, shape index: {}]
  %s13 = inlined_call_operand.vmem [shape: bf16[64,32], index: 13, kind: input, shape index: {}]
  %s14 = inlined_call_operand.vmem [shape: f32[1,32], index: 14, kind: input, shape index: {}]
  %s15 = inlined_call_operand.vmem [shape: f32[1,32], index: 15, kind: input, shape index: {}]
  %s16 = inlined_call_operand.vmem [shape: f32[1,32], index: 16, kind: input, shape index: {}]
  %s17 = inlined_call_operand.hbm [shape: bf16[32,128], index: 17, kind: input, shape index: {}]
  %s18 = inlined_call_operand.vmem [shape: f32[1,128], index: 18, kind: input, shape index: {}]
  %s19 = inlined_call_operand.hbm [shape: f32[8,128], index: 19, kind: output, shape index: {}]
  %s20 = sld [smem:[#allocation0]]
  $region106: #{tpu_custom_call.1} parent=0
    _
  %s22 = ssub.s32 1, %s20
  %s23 = scalar_select 0, %s22, %s20
  $region1: #{tpu_custom_call.1} parent=0
    #allocation2 [shape = 'u8[65536]{0}', space=vmem, size = 0x10000, scoped, tag = 'input window, operand 0, single buffered']
    #allocation3 [shape = 's32[1]{0}', space=sflag, size = 0x4, scoped, tag = 'scoped memory for tpu_custom_call.1']
    #allocation4 [shape = 's32[1]{0}', space=sflag, size = 0x4, scoped, tag = 'scoped memory for tpu_custom_call.1']
    #allocation5 [shape = 'u8[4096]{0}', space=vmem, size = 0x1000, scoped, tag = 'input window, operand 2, single buffered']
    #allocation6 [shape = 's32[1]{0}', space=sflag, size = 0x4, scoped, tag = 'scoped memory for tpu_custom_call.1']
    #allocation7 [shape = 'u8[8192]{0}', space=vmem, size = 0x2000, scoped, tag = 'input window, operand 7, single buffered']
    #allocation8 [shape = 'u8[8192]{0}', space=vmem, size = 0x2000, scoped, tag = 'input window, operand 11, single buffered']
    #allocation9 [shape = 's32[1]{0}', space=sflag, size = 0x4, scoped, tag = 'scoped memory for tpu_custom_call.1']
    #allocation10 [shape = 'u8[8192]{0}', space=vmem, size = 0x2000, scoped, tag = 'input window, operand 17, single buffered']
    #allocation11 [shape = 'u8[4096]{0}', space=vmem, size = 0x1000, scoped, tag = 'output window, operand 0, single buffered']
    %24 = vsyncpa [#allocation3], 0
    %25 = vsyncpa [#allocation6], 0
    %26 = vsyncpa [#allocation9], 0
    %27 = vsyncpa [#allocation4], 0
    // Predicated region
    $region2: #{tpu_custom_call.1} parent=1 // pred_check
      _
    $region3: #{tpu_custom_call.1} parent=1 // pred_check_branch
      %29 = sbr.rel (0) target = $region5
    $region4: #{tpu_custom_call.1} parent=1 // pred_region
      %s31 = ssub.s32 2048, 2048
      %32 = vsyncadd [#allocation3], %s31
      %s33 = sshll.u32 [#allocation2], 4
      %s34 = int_to_ptr.vmem [resolvable:$true] %s33
      %39 = dma.hbm_to_vmem [thread:$0]  %s0, 2048, %s34, [#allocation3], 128, 128, 8
    $region5: #{tpu_custom_call.1} parent=1 // pred_fallthru
      _
    // Predicated region
    $region6: #{tpu_custom_call.1} parent=1 // pred_check
      _
    $region7: #{tpu_custom_call.1} parent=1 // pred_check_branch
      %41 = sbr.rel (0) target = $region9
    $region8: #{tpu_custom_call.1} parent=1 // pred_region
      _
    $region9: #{tpu_custom_call.1} parent=1 // pred_fallthru
      _
    // Predicated region
    $region10: #{tpu_custom_call.1} parent=1 // pred_check
      _
    $region11: #{tpu_custom_call.1} parent=1 // pred_check_branch
      %43 = sbr.rel (0) target = $region13
    $region12: #{tpu_custom_call.1} parent=1 // pred_region
      %s45 = ssub.s32 128, 128
      %46 = vsyncadd [#allocation6], %s45
      %s47 = sshll.u32 [#allocation5], 4
      %s48 = int_to_ptr.vmem [resolvable:$true] %s47
      %53 = dma.hbm_to_vmem [thread:$0]  %s2, 128, %s48, [#allocation6], 16, 16, 1
    $region13: #{tpu_custom_call.1} parent=1 // pred_fallthru
      _
    // Predicated region
    $region14: #{tpu_custom_call.1} parent=1 // pred_check
      _
    $region15: #{tpu_custom_call.1} parent=1 // pred_check_branch
      %55 = sbr.rel (0) target = $region17
    $region16: #{tpu_custom_call.1} parent=1 // pred_region
      _
    $region17: #{tpu_custom_call.1} parent=1 // pred_fallthru
      _
    // Predicated region
    $region18: #{tpu_custom_call.1} parent=1 // pred_check
      _
    $region19: #{tpu_custom_call.1} parent=1 // pred_check_branch
      %57 = sbr.rel (0) target = $region21
    $region20: #{tpu_custom_call.1} parent=1 // pred_region
      _
    $region21: #{tpu_custom_call.1} parent=1 // pred_fallthru
      _
    // Predicated region
    $region22: #{tpu_custom_call.1} parent=1 // pred_check
      _
    $region23: #{tpu_custom_call.1} parent=1 // pred_check_branch
      %59 = sbr.rel (0) target = $region25
    $region24: #{tpu_custom_call.1} parent=1 // pred_region
      _
    $region25: #{tpu_custom_call.1} parent=1 // pred_fallthru
      _
    // Predicated region
    $region26: #{tpu_custom_call.1} parent=1 // pred_check
      _
    $region27: #{tpu_custom_call.1} parent=1 // pred_check_branch
      %61 = sbr.rel (0) target = $region29
    $region28: #{tpu_custom_call.1} parent=1 // pred_region
      _
    $region29: #{tpu_custom_call.1} parent=1 // pred_fallthru
      _
    // Predicated region
    $region30: #{tpu_custom_call.1} parent=1 // pred_check
      _
    $region31: #{tpu_custom_call.1} parent=1 // pred_check_branch
      %63 = sbr.rel (0) target = $region33
    $region32: #{tpu_custom_call.1} parent=1 // pred_region
      %s65 = ssub.s32 256, 256
      %66 = vsyncadd [#allocation6], %s65
      %s67 = sshll.u32 [#allocation7], 4
      %s68 = int_to_ptr.vmem [resolvable:$true] %s67
      %73 = dma.hbm_to_vmem [thread:$0]  %s7, 256, %s68, [#allocation6], 64, 64, 4
    $region33: #{tpu_custom_call.1} parent=1 // pred_fallthru
      _
    // Predicated region
    $region34: #{tpu_custom_call.1} parent=1 // pred_check
      _
    $region35: #{tpu_custom_call.1} parent=1 // pred_check_branch
      %75 = sbr.rel (0) target = $region37
    $region36: #{tpu_custom_call.1} parent=1 // pred_region
      _
    $region37: #{tpu_custom_call.1} parent=1 // pred_fallthru
      _
    // Predicated region
    $region38: #{tpu_custom_call.1} parent=1 // pred_check
      _
    $region39: #{tpu_custom_call.1} parent=1 // pred_check_branch
      %77 = sbr.rel (0) target = $region41
    $region40: #{tpu_custom_call.1} parent=1 // pred_region
      _
    $region41: #{tpu_custom_call.1} parent=1 // pred_fallthru
      _
    // Predicated region
    $region42: #{tpu_custom_call.1} parent=1 // pred_check
      _
    $region43: #{tpu_custom_call.1} parent=1 // pred_check_branch
      %79 = sbr.rel (0) target = $region45
    $region44: #{tpu_custom_call.1} parent=1 // pred_region
      _
    $region45: #{tpu_custom_call.1} parent=1 // pred_fallthru
      _
    // Predicated region
    $region46: #{tpu_custom_call.1} parent=1 // pred_check
      _
    $region47: #{tpu_custom_call.1} parent=1 // pred_check_branch
      %81 = sbr.rel (0) target = $region49
    $region48: #{tpu_custom_call.1} parent=1 // pred_region
      %s83 = ssub.s32 256, 256
      %84 = vsyncadd [#allocation9], %s83
      %s85 = sshll.u32 [#allocation8], 4
      %s86 = int_to_ptr.vmem [resolvable:$true] %s85
      %91 = dma.hbm_to_vmem [thread:$0]  %s11, 256, %s86, [#allocation9], 64, 64, 4
    $region49: #{tpu_custom_call.1} parent=1 // pred_fallthru
      _
    // Predicated region
    $region50: #{tpu_custom_call.1} parent=1 // pred_check
      _
    $region51: #{tpu_custom_call.1} parent=1 // pred_check_branch
      %93 = sbr.rel (0) target = $region53
    $region52: #{tpu_custom_call.1} parent=1 // pred_region
      _
    $region53: #{tpu_custom_call.1} parent=1 // pred_fallthru
      _
    // Predicated region
    $region54: #{tpu_custom_call.1} parent=1 // pred_check
      _
    $region55: #{tpu_custom_call.1} parent=1 // pred_check_branch
      %95 = sbr.rel (0) target = $region57
    $region56: #{tpu_custom_call.1} parent=1 // pred_region
      _
    $region57: #{tpu_custom_call.1} parent=1 // pred_fallthru
      _
    // Predicated region
    $region58: #{tpu_custom_call.1} parent=1 // pred_check
      _
    $region59: #{tpu_custom_call.1} parent=1 // pred_check_branch
      %97 = sbr.rel (0) target = $region61
    $region60: #{tpu_custom_call.1} parent=1 // pred_region
      _
    $region61: #{tpu_custom_call.1} parent=1 // pred_fallthru
      _
    // Predicated region
    $region62: #{tpu_custom_call.1} parent=1 // pred_check
      _
    $region63: #{tpu_custom_call.1} parent=1 // pred_check_branch
      %99 = sbr.rel (0) target = $region65
    $region64: #{tpu_custom_call.1} parent=1 // pred_region
      _
    $region65: #{tpu_custom_call.1} parent=1 // pred_fallthru
      _
    // Predicated region
    $region66: #{tpu_custom_call.1} parent=1 // pred_check
      _
    $region67: #{tpu_custom_call.1} parent=1 // pred_check_branch
      %101 = sbr.rel (0) target = $region69
    $region68: #{tpu_custom_call.1} parent=1 // pred_region
      _
    $region69: #{tpu_custom_call.1} parent=1 // pred_fallthru
      _
    // Predicated region
    $region70: #{tpu_custom_call.1} parent=1 // pred_check
      _
    $region71: #{tpu_custom_call.1} parent=1 // pred_check_branch
      %103 = sbr.rel (0) target = $region73
    $region72: #{tpu_custom_call.1} parent=1 // pred_region
      %s105 = ssub.s32 256, 256
      %106 = vsyncadd [#allocation9], %s105
      %s107 = sshll.u32 [#allocation10], 4
      %s108 = int_to_ptr.vmem [resolvable:$true] %s107
      %113 = dma.hbm_to_vmem [thread:$0]  %s17, 256, %s108, [#allocation9], 64, 64, 4
    $region73: #{tpu_custom_call.1} parent=1 // pred_fallthru
      _
    // Predicated region
    $region74: #{tpu_custom_call.1} parent=1 // pred_check
      _
    $region75: #{tpu_custom_call.1} parent=1 // pred_check_branch
      %115 = sbr.rel (0) target = $region77
    $region76: #{tpu_custom_call.1} parent=1 // pred_region
      _
    $region77: #{tpu_custom_call.1} parent=1 // pred_fallthru
      _
    // Predicated region
    $region78: #{tpu_custom_call.1} parent=1 // pred_check
      _
    $region79: #{tpu_custom_call.1} parent=1 // pred_check_branch
      %117 = sbr.rel (0) target = $region81
    $region80: #{tpu_custom_call.1} parent=1 // pred_region
      %118 = dma.done [#allocation3], 2048
    $region81: #{tpu_custom_call.1} parent=1 // pred_fallthru
      _
    // Predicated region
    $region82: #{tpu_custom_call.1} parent=1 // pred_check
      _
    $region83: #{tpu_custom_call.1} parent=1 // pred_check_branch
      %120 = sbr.rel (0) target = $region85
    $region84: #{tpu_custom_call.1} parent=1 // pred_region
      %121 = dma.done [#allocation6], 128
    $region85: #{tpu_custom_call.1} parent=1 // pred_fallthru
      _
    // Predicated region
    $region86: #{tpu_custom_call.1} parent=1 // pred_check
      _
    $region87: #{tpu_custom_call.1} parent=1 // pred_check_branch
      %123 = sbr.rel (0) target = $region89
    $region88: #{tpu_custom_call.1} parent=1 // pred_region
      %124 = dma.done [#allocation6], 256
    $region89: #{tpu_custom_call.1} parent=1 // pred_fallthru
      _
    // Predicated region
    $region90: #{tpu_custom_call.1} parent=1 // pred_check
      _
    $region91: #{tpu_custom_call.1} parent=1 // pred_check_branch
      %126 = sbr.rel (0) target = $region93
    $region92: #{tpu_custom_call.1} parent=1 // pred_region
      %127 = dma.done [#allocation9], 256
    $region93: #{tpu_custom_call.1} parent=1 // pred_fallthru
      _
    // Predicated region
    $region94: #{tpu_custom_call.1} parent=1 // pred_check
      _
    $region95: #{tpu_custom_call.1} parent=1 // pred_check_branch
      %129 = sbr.rel (0) target = $region97
    $region96: #{tpu_custom_call.1} parent=1 // pred_region
      %130 = dma.done [#allocation9], 256
    $region97: #{tpu_custom_call.1} parent=1 // pred_fallthru
      _
    %v132 = vld [vmem:[#allocation2] sm:$0xff]
    %v133 = vld [vmem:[#allocation2 + $0x8] sm:$0xff]
    %v134 = vld [vmem:[#allocation2 + $0x10] sm:$0xff]
    %v135 = vld [vmem:[#allocation2 + $0x18] sm:$0xff]
    %v136 = vld [vmem:[#allocation2 + $0x20] sm:$0xff]
    %v137 = vld [vmem:[#allocation2 + $0x28] sm:$0xff]
    %v138 = vld [vmem:[#allocation2 + $0x30] sm:$0xff]
    %v139 = vld [vmem:[#allocation2 + $0x38] sm:$0xff]
    %v140 = vld [vmem:[#allocation2 + $0x40] sm:$0xff]
    %v141 = vld [vmem:[#allocation2 + $0x48] sm:$0xff]
    %v142 = vld [vmem:[#allocation2 + $0x50] sm:$0xff]
    %v143 = vld [vmem:[#allocation2 + $0x58] sm:$0xff]
    %v144 = vld [vmem:[#allocation2 + $0x60] sm:$0xff]
    %v145 = vld [vmem:[#allocation2 + $0x68] sm:$0xff]
    %v146 = vld [vmem:[#allocation2 + $0x70] sm:$0xff]
    %v147 = vld [vmem:[#allocation2 + $0x78] sm:$0xff]
    %v148 = vld [vmem:[%s1] sm:$0xff]
    %v149 = vld [vmem:[%s1 + $0x8] sm:$0xff]
    %v150 = vadd.f32 %v132, %v148
    %v151 = vadd.f32 %v133, %v149
    %v152 = vadd.f32 %v134, %v148
    %v153 = vadd.f32 %v135, %v149
    %v154 = vadd.f32 %v136, %v148
    %v155 = vadd.f32 %v137, %v149
    %v156 = vadd.f32 %v138, %v148
    %v157 = vadd.f32 %v139, %v149
    %v158 = vadd.f32 %v140, %v148
    %v159 = vadd.f32 %v141, %v149
    %v160 = vadd.f32 %v142, %v148
    %v161 = vadd.f32 %v143, %v149
    %v162 = vadd.f32 %v144, %v148
    %v163 = vadd.f32 %v145, %v149
    %v164 = vadd.f32 %v146, %v148
    %v165 = vadd.f32 %v147, %v149
    %v166 = vpack.c.bf16 %v151, %v150
    %v167 = vpack.c.bf16 %v153, %v152
    %v168 = vpack.c.bf16 %v155, %v154
    %v169 = vpack.c.bf16 %v157, %v156
    %v170 = vpack.c.bf16 %v159, %v158
    %v171 = vpack.c.bf16 %v161, %v160
    %v172 = vpack.c.bf16 %v163, %v162
    %v173 = vpack.c.bf16 %v165, %v164
    %v174 = vld [vmem:[%s5] sm:$0xf]
    %v175 = vld [vmem:[%s5 + $0x4] sm:$0xf]
    %v176 = vld [vmem:[%s5 + $0x8] sm:$0xf]
    %v177 = vld [vmem:[%s5 + $0xc] sm:$0xf]
    %v178 = vld [vmem:[%s6] sm:$0x1]
    %v180 = vlaneseq
    %v181 = vshrl.u32 %v180, 7
    %v182 = vsub.s32 0, %v181
    %v183 = vrot.slane %v178, %v182
    %v189 = vunpack.c.l.b16 %v174
    %v190 = vunpack.c.l.b16 %v175
    %v191 = vunpack.c.l.b16 %v176
    %v192 = vunpack.c.l.b16 %v177
    %v193 = vpack.c.b16 %v190, %v189
    %v194 = vpack.c.b16 %v192, %v191
    %vm197 = vcmask 261120
    %v199 = vsel %vm197, %v166, 0
    %v202 = vsel %vm197, %v167, 0
    %v205 = vsel %vm197, %v168, 0
    %v208 = vsel %vm197, %v169, 0
    %v211 = vsel %vm197, %v170, 0
    %v214 = vsel %vm197, %v171, 0
    %v217 = vsel %vm197, %v172, 0
    %v220 = vsel %vm197, %v173, 0
    %222 = vmatprep.subr.bf16.mxu0 0
    %223 = vmatpush1.bf16.msra.mxu0 0
    %224 = vmatprep.subr.bf16.mxu0 0
    %225 = vmatpush1.bf16.msra.mxu0 0
    %226 = vmatprep.subr.bf16.mxu0 0
    %227 = vmatpush1.bf16.msra.mxu0 0
    %228 = vmatprep.subr.bf16.mxu0 0
    %229 = vmatpush1.bf16.msra.mxu0 0
    %230 = vmatprep.subr.bf16.mxu0 0
    %231 = vmatpush1.bf16.msra.mxu0 0
    %232 = vmatprep.subr.bf16.mxu0 0
    %233 = vmatpush1.bf16.msra.mxu0 0
    %234 = vmatprep.subr.bf16.mxu0 0
    %235 = vmatpush1.bf16.msra.mxu0 %v194
    %236 = vmatprep.subr.bf16.mxu0 0
    %237 = vmatpush1.bf16.msra.mxu0 %v193
    %238 = vmatprep.subr.bf16.mxu0 0
    %239 = vmatpush2.bf16.msra.mxu0 0
    %240 = vmatprep.subr.bf16.mxu0 0
    %241 = vmatpush2.bf16.msra.mxu0 0
    %242 = vmatprep.subr.bf16.mxu0 0
    %243 = vmatpush2.bf16.msra.mxu0 0
    %244 = vmatprep.subr.bf16.mxu0 0
    %245 = vmatpush2.bf16.msra.mxu0 0
    %246 = vmatprep.subr.bf16.mxu0 0
    %247 = vmatpush2.bf16.msra.mxu0 0
    %248 = vmatprep.subr.bf16.mxu0 0
    %249 = vmatpush2.bf16.msra.mxu0 0
    %250 = vmatprep.subr.bf16.mxu0 0
    %251 = vmatpush2.bf16.msra.mxu0 0
    %252 = vmatprep.subr.bf16.mxu0 0
    %253 = vmatpush2.bf16.msra.mxu0 0
    %254 = vmatprep.mubr.bf16.mxu0 0
    %255 = vmatmul.mubr.bf16.gmra.mxu0 %v199
    %v256 = vpop.f32.mrf.mxu0
    %v257 = vadd.f32 %v183, %v256
    %v258 = vpop.f32.mrf.mxu0
    %v259 = vpop.f32.mrf.mxu0
    %v260 = vadd.f32 %v183, %v259
    %v261 = vpop.f32.mrf.mxu0
    %262 = vmatprep.mubr.bf16.mxu0 0
    %263 = vmatmul.mubr.bf16.gmra.mxu0 %v202
    %v264 = vpop.f32.mrf.mxu0
    %v265 = vadd.f32 %v183, %v264
    %v266 = vpop.f32.mrf.mxu0
    %v267 = vpop.f32.mrf.mxu0
    %v268 = vadd.f32 %v183, %v267
    %v269 = vpop.f32.mrf.mxu0
    %270 = vmatprep.mubr.bf16.mxu0 0
    %271 = vmatmul.mubr.bf16.gmra.mxu0 %v205
    %v272 = vpop.f32.mrf.mxu0
    %v273 = vadd.f32 %v183, %v272
    %v274 = vpop.f32.mrf.mxu0
    %v275 = vpop.f32.mrf.mxu0
    %v276 = vadd.f32 %v183, %v275
    %v277 = vpop.f32.mrf.mxu0
    %278 = vmatprep.mubr.bf16.mxu0 0
    %279 = vmatmul.mubr.bf16.gmra.mxu0 %v208
    %v280 = vpop.f32.mrf.mxu0
    %v281 = vadd.f32 %v183, %v280
    %v282 = vpop.f32.mrf.mxu0
    %v283 = vpop.f32.mrf.mxu0
    %v284 = vadd.f32 %v183, %v283
    %v285 = vpop.f32.mrf.mxu0
    %286 = vmatprep.mubr.bf16.mxu0 0
    %287 = vmatmul.mubr.bf16.gmra.mxu0 %v211
    %v288 = vpop.f32.mrf.mxu0
    %v289 = vadd.f32 %v183, %v288
    %v290 = vpop.f32.mrf.mxu0
    %v291 = vpop.f32.mrf.mxu0
    %v292 = vadd.f32 %v183, %v291
    %v293 = vpop.f32.mrf.mxu0
    %294 = vmatprep.mubr.bf16.mxu0 0
    %295 = vmatmul.mubr.bf16.gmra.mxu0 %v214
    %v296 = vpop.f32.mrf.mxu0
    %v297 = vadd.f32 %v183, %v296
    %v298 = vpop.f32.mrf.mxu0
    %v299 = vpop.f32.mrf.mxu0
    %v300 = vadd.f32 %v183, %v299
    %v301 = vpop.f32.mrf.mxu0
    %302 = vmatprep.mubr.bf16.mxu0 0
    %303 = vmatmul.mubr.bf16.gmra.mxu0 %v217
    %v304 = vpop.f32.mrf.mxu0
    %v305 = vadd.f32 %v183, %v304
    %v306 = vpop.f32.mrf.mxu0
    %v307 = vpop.f32.mrf.mxu0
    %v308 = vadd.f32 %v183, %v307
    %v309 = vpop.f32.mrf.mxu0
    %310 = vmatprep.mubr.bf16.mxu0 0
    %311 = vmatmul.mubr.bf16.gmra.mxu0 %v220
    %v312 = vpop.f32.mrf.mxu0
    %v313 = vadd.f32 %v183, %v312
    %v314 = vpop.f32.mrf.mxu0
    %v315 = vpop.f32.mrf.mxu0
    %v316 = vadd.f32 %v183, %v315
    %v317 = vpop.f32.mrf.mxu0
    %318 = vdwg.mxu0
    %v319 = vpack.c.bf16 %v150, %v150
    %v320 = vpack.c.bf16 %v152, %v152
    %v321 = vpack.c.bf16 %v154, %v154
    %v322 = vpack.c.bf16 %v156, %v156
    %v323 = vpack.c.bf16 %v158, %v158
    %v324 = vpack.c.bf16 %v160, %v160
    %v325 = vpack.c.bf16 %v162, %v162
    %v326 = vpack.c.bf16 %v164, %v164
    %v327 = vld [vmem:[%s3] sm:$0xf]
    %v328 = vld [vmem:[%s3 + $0x4] sm:$0xf]
    %v329 = vld [vmem:[%s3 + $0x8] sm:$0xf]
    %v330 = vld [vmem:[%s3 + $0xc] sm:$0xf]
    %v331 = vld [vmem:[%s4] sm:$0x1]
    %v333 = vlaneseq
    %v334 = vshrl.u32 %v333, 7
    %v335 = vsub.s32 0, %v334
    %v336 = vrot.slane %v331, %v335
    %v346 = vunpack.c.l.b16 %v319
    %v347 = vunpack.c.l.b16 %v320
    %v348 = vunpack.c.l.b16 %v321
    %v349 = vunpack.c.l.b16 %v322
    %v350 = vunpack.c.l.b16 %v323
    %v351 = vunpack.c.l.b16 %v324
    %v352 = vunpack.c.l.b16 %v325
    %v353 = vunpack.c.l.b16 %v326
    %v354 = vrot.slane %v347, 7
    %vm355 = vcmask 1041409
    %v356 = vsel %vm355, %v354, %v346
    %v357 = vrot.slane %v348, 6
    %vm358 = vcmask 1042434
    %v359 = vsel %vm358, %v357, %v356
    %v360 = vrot.slane %v349, 5
    %vm361 = vcmask 1043459
    %v362 = vsel %vm361, %v360, %v359
    %v363 = vrot.slane %v350, 4
    %vm364 = vcmask 1044484
    %v365 = vsel %vm364, %v363, %v362
    %v366 = vrot.slane %v351, 3
    %vm367 = vcmask 1045509
    %v368 = vsel %vm367, %v366, %v365
    %v369 = vrot.slane %v352, 2
    %vm370 = vcmask 1046534
    %v371 = vsel %vm370, %v369, %v368
    %v372 = vrot.slane %v353, 1
    %vm373 = vcmask 1047559
    %v374 = vsel %vm373, %v372, %v371
    %v375 = vpack.c.b16 %v374, %v374
    %v380 = vunpack.c.l.b16 %v327
    %v381 = vunpack.c.l.b16 %v328
    %v382 = vunpack.c.l.b16 %v329
    %v383 = vunpack.c.l.b16 %v330
    %v384 = vpack.c.b16 %v381, %v380
    %v385 = vpack.c.b16 %v383, %v382
    %v389 = vsel %vm197, %v375, 0
    %391 = vmatprep.subr.bf16.mxu0 0
    %392 = vmatpush1.bf16.msra.mxu0 0
    %393 = vmatprep.subr.bf16.mxu0 0
    %394 = vmatpush1.bf16.msra.mxu0 0
    %395 = vmatprep.subr.bf16.mxu0 0
    %396 = vmatpush1.bf16.msra.mxu0 0
    %397 = vmatprep.subr.bf16.mxu0 0
    %398 = vmatpush1.bf16.msra.mxu0 0
    %399 = vmatprep.subr.bf16.mxu0 0
    %400 = vmatpush1.bf16.msra.mxu0 0
    %401 = vmatprep.subr.bf16.mxu0 0
    %402 = vmatpush1.bf16.msra.mxu0 0
    %403 = vmatprep.subr.bf16.mxu0 0
    %404 = vmatpush1.bf16.msra.mxu0 %v385
    %405 = vmatprep.subr.bf16.mxu0 0
    %406 = vmatpush1.bf16.msra.mxu0 %v384
    %407 = vmatprep.subr.bf16.mxu0 0
    %408 = vmatpush2.bf16.msra.mxu0 0
    %409 = vmatprep.subr.bf16.mxu0 0
    %410 = vmatpush2.bf16.msra.mxu0 0
    %411 = vmatprep.subr.bf16.mxu0 0
    %412 = vmatpush2.bf16.msra.mxu0 0
    %413 = vmatprep.subr.bf16.mxu0 0
    %414 = vmatpush2.bf16.msra.mxu0 0
    %415 = vmatprep.subr.bf16.mxu0 0
    %416 = vmatpush2.bf16.msra.mxu0 0
    %417 = vmatprep.subr.bf16.mxu0 0
    %418 = vmatpush2.bf16.msra.mxu0 0
    %419 = vmatprep.subr.bf16.mxu0 0
    %420 = vmatpush2.bf16.msra.mxu0 0
    %421 = vmatprep.subr.bf16.mxu0 0
    %422 = vmatpush2.bf16.msra.mxu0 0
    %423 = vmatprep.mubr.bf16.mxu0 0
    %424 = vmatmul.mubr.bf16.gmra.mxu0 %v389
    %v425 = vpop.f32.mrf.mxu0
    %v426 = vadd.f32 %v336, %v425
    %v427 = vpop.f32.mrf.mxu0
    %v428 = vpop.f32.mrf.mxu0
    %v429 = vpop.f32.mrf.mxu0
    %430 = vdwg.mxu0
    %v431 = vld [vmem:[#allocation5] sm:$0x1]
    %v432 = vld [vmem:[#allocation5 + $0x1] sm:$0x1]
    %v433 = vld [vmem:[#allocation5 + $0x2] sm:$0x1]
    %v434 = vld [vmem:[#allocation5 + $0x3] sm:$0x1]
    %v435 = vld [vmem:[#allocation5 + $0x4] sm:$0x1]
    %v436 = vld [vmem:[#allocation5 + $0x5] sm:$0x1]
    %v437 = vld [vmem:[#allocation5 + $0x6] sm:$0x1]
    %v438 = vld [vmem:[#allocation5 + $0x7] sm:$0x1]
    %v440 = vcombine.high %v426, %v426
    %v442 = vunpack.c.l.s4 1966171168
    %v443 = vunpack.c.0.s8 %v442
    %v444 = vlaneseq
    %v445 = vshrl.u32 %v444, 7
    %v446 = vsub.s32 %v443, %v445
    %v447 = vrot.slane %v426, %v446
    %v449 = vunpack.c.l.s4 1966171168
    %v450 = vunpack.c.0.s8 %v449
    %v451 = vlaneseq
    %v452 = vshrl.u32 %v451, 7
    %v453 = vsub.s32 %v450, %v452
    %v454 = vrot.slane %v440, %v453
    %v455 = vcombine.high %v447, %v447
    %v456 = vcombine.high %v454, %v454
    %v458 = vunpack.c.l.s4 1966171168
    %v459 = vunpack.c.0.s8 %v458
    %v460 = vlaneseq
    %v461 = vshrl.u32 %v460, 7
    %v462 = vsub.s32 %v459, %v461
    %v463 = vrot.slane %v447, %v462
    %v465 = vunpack.c.l.s4 1966171168
    %v466 = vunpack.c.0.s8 %v465
    %v467 = vlaneseq
    %v468 = vshrl.u32 %v467, 7
    %v469 = vsub.s32 %v466, %v468
    %v470 = vrot.slane %v454, %v469
    %v472 = vunpack.c.l.s4 1966171168
    %v473 = vunpack.c.0.s8 %v472
    %v474 = vlaneseq
    %v475 = vshrl.u32 %v474, 7
    %v476 = vsub.s32 %v473, %v475
    %v477 = vrot.slane %v455, %v476
    %v479 = vunpack.c.l.s4 1966171168
    %v480 = vunpack.c.0.s8 %v479
    %v481 = vlaneseq
    %v482 = vshrl.u32 %v481, 7
    %v483 = vsub.s32 %v480, %v482
    %v484 = vrot.slane %v456, %v483
    %v485 = vcombine.high %v463, %v463
    %v486 = vcombine.high %v470, %v470
    %v487 = vcombine.high %v477, %v477
    %v488 = vcombine.high %v484, %v484
    %v497 = vpack.c.bf16 %v463, %v463
    %v498 = vpack.c.bf16 %v477, %v477
    %v499 = vpack.c.bf16 %v485, %v485
    %v500 = vpack.c.bf16 %v487, %v487
    %v501 = vpack.c.bf16 %v470, %v470
    %v502 = vpack.c.bf16 %v484, %v484
    %v503 = vpack.c.bf16 %v486, %v486
    %v504 = vpack.c.bf16 %v488, %v488
    %v505 = vpack.c.bf16 %v260, %v257
    %v506 = vpack.c.bf16 %v268, %v265
    %v507 = vpack.c.bf16 %v276, %v273
    %v508 = vpack.c.bf16 %v284, %v281
    %v509 = vpack.c.bf16 %v292, %v289
    %v510 = vpack.c.bf16 %v300, %v297
    %v511 = vpack.c.bf16 %v308, %v305
    %v512 = vpack.c.bf16 %v316, %v313
    %vm513 = vcmask 130048
    %v515 = vsel %vm513, %v497, 0
    %v518 = vsel %vm513, %v505, 0
    %520 = vmatprep.subr.bf16.mxu0 0
    %521 = vmatpush1.bf16.xpose.msra.mxu0 0
    %522 = vmatprep.subr.bf16.mxu0 0
    %523 = vmatpush1.bf16.xpose.msra.mxu0 0
    %524 = vmatprep.subr.bf16.mxu0 0
    %525 = vmatpush1.bf16.xpose.msra.mxu0 0
    %526 = vmatprep.subr.bf16.mxu0 0
    %527 = vmatpush1.bf16.xpose.msra.mxu0 0
    %528 = vmatprep.subr.bf16.mxu0 0
    %529 = vmatpush1.bf16.xpose.msra.mxu0 0
    %530 = vmatprep.subr.bf16.mxu0 0
    %531 = vmatpush1.bf16.xpose.msra.mxu0 0
    %532 = vmatprep.subr.bf16.mxu0 0
    %533 = vmatpush1.bf16.xpose.msra.mxu0 0
    %534 = vmatprep.subr.bf16.mxu0 0
    %535 = vmatpush1.bf16.xpose.msra.mxu0 %v518
    %536 = vmatprep.subr.bf16.mxu0 0
    %537 = vmatpush2.bf16.xpose.msra.mxu0 0
    %538 = vmatprep.subr.bf16.mxu0 0
    %539 = vmatpush2.bf16.xpose.msra.mxu0 0
    %540 = vmatprep.subr.bf16.mxu0 0
    %541 = vmatpush2.bf16.xpose.msra.mxu0 0
    %542 = vmatprep.subr.bf16.mxu0 0
    %543 = vmatpush2.bf16.xpose.msra.mxu0 0
    %544 = vmatprep.subr.bf16.mxu0 0
    %545 = vmatpush2.bf16.xpose.msra.mxu0 0
    %546 = vmatprep.subr.bf16.mxu0 0
    %547 = vmatpush2.bf16.xpose.msra.mxu0 0
    %548 = vmatprep.subr.bf16.mxu0 0
    %549 = vmatpush2.bf16.xpose.msra.mxu0 0
    %550 = vmatprep.subr.bf16.mxu0 0
    %551 = vmatpush2.bf16.xpose.msra.mxu0 0
    %552 = vmatprep.mubr.bf16.mxu0 0
    %553 = vmatmul.mubr.bf16.gmra.mxu0 %v515
    %v554 = vpop.f32.mrf.mxu0
    %v555 = vadd.f32 %v431, %v554
    %v556 = vpop.f32.mrf.mxu0
    %v557 = vpop.f32.mrf.mxu0
    %v558 = vpop.f32.mrf.mxu0
    %559 = vdwg.mxu0
    %v561 = vsel %vm513, %v498, 0
    %v564 = vsel %vm513, %v506, 0
    %566 = vmatprep.subr.bf16.mxu0 0
    %567 = vmatpush1.bf16.xpose.msra.mxu0 0
    %568 = vmatprep.subr.bf16.mxu0 0
    %569 = vmatpush1.bf16.xpose.msra.mxu0 0
    %570 = vmatprep.subr.bf16.mxu0 0
    %571 = vmatpush1.bf16.xpose.msra.mxu0 0
    %572 = vmatprep.subr.bf16.mxu0 0
    %573 = vmatpush1.bf16.xpose.msra.mxu0 0
    %574 = vmatprep.subr.bf16.mxu0 0
    %575 = vmatpush1.bf16.xpose.msra.mxu0 0
    %576 = vmatprep.subr.bf16.mxu0 0
    %577 = vmatpush1.bf16.xpose.msra.mxu0 0
    %578 = vmatprep.subr.bf16.mxu0 0
    %579 = vmatpush1.bf16.xpose.msra.mxu0 0
    %580 = vmatprep.subr.bf16.mxu0 0
    %581 = vmatpush1.bf16.xpose.msra.mxu0 %v564
    %582 = vmatprep.subr.bf16.mxu0 0
    %583 = vmatpush2.bf16.xpose.msra.mxu0 0
    %584 = vmatprep.subr.bf16.mxu0 0
    %585 = vmatpush2.bf16.xpose.msra.mxu0 0
    %586 = vmatprep.subr.bf16.mxu0 0
    %587 = vmatpush2.bf16.xpose.msra.mxu0 0
    %588 = vmatprep.subr.bf16.mxu0 0
    %589 = vmatpush2.bf16.xpose.msra.mxu0 0
    %590 = vmatprep.subr.bf16.mxu0 0
    %591 = vmatpush2.bf16.xpose.msra.mxu0 0
    %592 = vmatprep.subr.bf16.mxu0 0
    %593 = vmatpush2.bf16.xpose.msra.mxu0 0
    %594 = vmatprep.subr.bf16.mxu0 0
    %595 = vmatpush2.bf16.xpose.msra.mxu0 0
    %596 = vmatprep.subr.bf16.mxu0 0
    %597 = vmatpush2.bf16.xpose.msra.mxu0 0
    %598 = vmatprep.mubr.bf16.mxu0 0
    %599 = vmatmul.mubr.bf16.gmra.mxu0 %v561
    %v600 = vpop.f32.mrf.mxu0
    %v601 = vadd.f32 %v432, %v600
    %v602 = vpop.f32.mrf.mxu0
    %v603 = vpop.f32.mrf.mxu0
    %v604 = vpop.f32.mrf.mxu0
    %605 = vdwg.mxu0
    %v607 = vsel %vm513, %v499, 0
    %v610 = vsel %vm513, %v507, 0
    %612 = vmatprep.subr.bf16.mxu0 0
    %613 = vmatpush1.bf16.xpose.msra.mxu0 0
    %614 = vmatprep.subr.bf16.mxu0 0
    %615 = vmatpush1.bf16.xpose.msra.mxu0 0
    %616 = vmatprep.subr.bf16.mxu0 0
    %617 = vmatpush1.bf16.xpose.msra.mxu0 0
    %618 = vmatprep.subr.bf16.mxu0 0
    %619 = vmatpush1.bf16.xpose.msra.mxu0 0
    %620 = vmatprep.subr.bf16.mxu0 0
    %621 = vmatpush1.bf16.xpose.msra.mxu0 0
    %622 = vmatprep.subr.bf16.mxu0 0
    %623 = vmatpush1.bf16.xpose.msra.mxu0 0
    %624 = vmatprep.subr.bf16.mxu0 0
    %625 = vmatpush1.bf16.xpose.msra.mxu0 0
    %626 = vmatprep.subr.bf16.mxu0 0
    %627 = vmatpush1.bf16.xpose.msra.mxu0 %v610
    %628 = vmatprep.subr.bf16.mxu0 0
    %629 = vmatpush2.bf16.xpose.msra.mxu0 0
    %630 = vmatprep.subr.bf16.mxu0 0
    %631 = vmatpush2.bf16.xpose.msra.mxu0 0
    %632 = vmatprep.subr.bf16.mxu0 0
    %633 = vmatpush2.bf16.xpose.msra.mxu0 0
    %634 = vmatprep.subr.bf16.mxu0 0
    %635 = vmatpush2.bf16.xpose.msra.mxu0 0
    %636 = vmatprep.subr.bf16.mxu0 0
    %637 = vmatpush2.bf16.xpose.msra.mxu0 0
    %638 = vmatprep.subr.bf16.mxu0 0
    %639 = vmatpush2.bf16.xpose.msra.mxu0 0
    %640 = vmatprep.subr.bf16.mxu0 0
    %641 = vmatpush2.bf16.xpose.msra.mxu0 0
    %642 = vmatprep.subr.bf16.mxu0 0
    %643 = vmatpush2.bf16.xpose.msra.mxu0 0
    %644 = vmatprep.mubr.bf16.mxu0 0
    %645 = vmatmul.mubr.bf16.gmra.mxu0 %v607
    %v646 = vpop.f32.mrf.mxu0
    %v647 = vadd.f32 %v433, %v646
    %v648 = vpop.f32.mrf.mxu0
    %v649 = vpop.f32.mrf.mxu0
    %v650 = vpop.f32.mrf.mxu0
    %651 = vdwg.mxu0
    %v653 = vsel %vm513, %v500, 0
    %v656 = vsel %vm513, %v508, 0
    %658 = vmatprep.subr.bf16.mxu0 0
    %659 = vmatpush1.bf16.xpose.msra.mxu0 0
    %660 = vmatprep.subr.bf16.mxu0 0
    %661 = vmatpush1.bf16.xpose.msra.mxu0 0
    %662 = vmatprep.subr.bf16.mxu0 0
    %663 = vmatpush1.bf16.xpose.msra.mxu0 0
    %664 = vmatprep.subr.bf16.mxu0 0
    %665 = vmatpush1.bf16.xpose.msra.mxu0 0
    %666 = vmatprep.subr.bf16.mxu0 0
    %667 = vmatpush1.bf16.xpose.msra.mxu0 0
    %668 = vmatprep.subr.bf16.mxu0 0
    %669 = vmatpush1.bf16.xpose.msra.mxu0 0
    %670 = vmatprep.subr.bf16.mxu0 0
    %671 = vmatpush1.bf16.xpose.msra.mxu0 0
    %672 = vmatprep.subr.bf16.mxu0 0
    %673 = vmatpush1.bf16.xpose.msra.mxu0 %v656
    %674 = vmatprep.subr.bf16.mxu0 0
    %675 = vmatpush2.bf16.xpose.msra.mxu0 0
    %676 = vmatprep.subr.bf16.mxu0 0
    %677 = vmatpush2.bf16.xpose.msra.mxu0 0
    %678 = vmatprep.subr.bf16.mxu0 0
    %679 = vmatpush2.bf16.xpose.msra.mxu0 0
    %680 = vmatprep.subr.bf16.mxu0 0
    %681 = vmatpush2.bf16.xpose.msra.mxu0 0
    %682 = vmatprep.subr.bf16.mxu0 0
    %683 = vmatpush2.bf16.xpose.msra.mxu0 0
    %684 = vmatprep.subr.bf16.mxu0 0
    %685 = vmatpush2.bf16.xpose.msra.mxu0 0
    %686 = vmatprep.subr.bf16.mxu0 0
    %687 = vmatpush2.bf16.xpose.msra.mxu0 0
    %688 = vmatprep.subr.bf16.mxu0 0
    %689 = vmatpush2.bf16.xpose.msra.mxu0 0
    %690 = vmatprep.mubr.bf16.mxu0 0
    %691 = vmatmul.mubr.bf16.gmra.mxu0 %v653
    %v692 = vpop.f32.mrf.mxu0
    %v693 = vadd.f32 %v434, %v692
    %v694 = vpop.f32.mrf.mxu0
    %v695 = vpop.f32.mrf.mxu0
    %v696 = vpop.f32.mrf.mxu0
    %697 = vdwg.mxu0
    %v699 = vsel %vm513, %v501, 0
    %v702 = vsel %vm513, %v509, 0
    %704 = vmatprep.subr.bf16.mxu0 0
    %705 = vmatpush1.bf16.xpose.msra.mxu0 0
    %706 = vmatprep.subr.bf16.mxu0 0
    %707 = vmatpush1.bf16.xpose.msra.mxu0 0
    %708 = vmatprep.subr.bf16.mxu0 0
    %709 = vmatpush1.bf16.xpose.msra.mxu0 0
    %710 = vmatprep.subr.bf16.mxu0 0
    %711 = vmatpush1.bf16.xpose.msra.mxu0 0
    %712 = vmatprep.subr.bf16.mxu0 0
    %713 = vmatpush1.bf16.xpose.msra.mxu0 0
    %714 = vmatprep.subr.bf16.mxu0 0
    %715 = vmatpush1.bf16.xpose.msra.mxu0 0
    %716 = vmatprep.subr.bf16.mxu0 0
    %717 = vmatpush1.bf16.xpose.msra.mxu0 0
    %718 = vmatprep.subr.bf16.mxu0 0
    %719 = vmatpush1.bf16.xpose.msra.mxu0 %v702
    %720 = vmatprep.subr.bf16.mxu0 0
    %721 = vmatpush2.bf16.xpose.msra.mxu0 0
    %722 = vmatprep.subr.bf16.mxu0 0
    %723 = vmatpush2.bf16.xpose.msra.mxu0 0
    %724 = vmatprep.subr.bf16.mxu0 0
    %725 = vmatpush2.bf16.xpose.msra.mxu0 0
    %726 = vmatprep.subr.bf16.mxu0 0
    %727 = vmatpush2.bf16.xpose.msra.mxu0 0
    %728 = vmatprep.subr.bf16.mxu0 0
    %729 = vmatpush2.bf16.xpose.msra.mxu0 0
    %730 = vmatprep.subr.bf16.mxu0 0
    %731 = vmatpush2.bf16.xpose.msra.mxu0 0
    %732 = vmatprep.subr.bf16.mxu0 0
    %733 = vmatpush2.bf16.xpose.msra.mxu0 0
    %734 = vmatprep.subr.bf16.mxu0 0
    %735 = vmatpush2.bf16.xpose.msra.mxu0 0
    %736 = vmatprep.mubr.bf16.mxu0 0
    %737 = vmatmul.mubr.bf16.gmra.mxu0 %v699
    %v738 = vpop.f32.mrf.mxu0
    %v739 = vadd.f32 %v435, %v738
    %v740 = vpop.f32.mrf.mxu0
    %v741 = vpop.f32.mrf.mxu0
    %v742 = vpop.f32.mrf.mxu0
    %743 = vdwg.mxu0
    %v745 = vsel %vm513, %v502, 0
    %v748 = vsel %vm513, %v510, 0
    %750 = vmatprep.subr.bf16.mxu0 0
    %751 = vmatpush1.bf16.xpose.msra.mxu0 0
    %752 = vmatprep.subr.bf16.mxu0 0
    %753 = vmatpush1.bf16.xpose.msra.mxu0 0
    %754 = vmatprep.subr.bf16.mxu0 0
    %755 = vmatpush1.bf16.xpose.msra.mxu0 0
    %756 = vmatprep.subr.bf16.mxu0 0
    %757 = vmatpush1.bf16.xpose.msra.mxu0 0
    %758 = vmatprep.subr.bf16.mxu0 0
    %759 = vmatpush1.bf16.xpose.msra.mxu0 0
    %760 = vmatprep.subr.bf16.mxu0 0
    %761 = vmatpush1.bf16.xpose.msra.mxu0 0
    %762 = vmatprep.subr.bf16.mxu0 0
    %763 = vmatpush1.bf16.xpose.msra.mxu0 0
    %764 = vmatprep.subr.bf16.mxu0 0
    %765 = vmatpush1.bf16.xpose.msra.mxu0 %v748
    %766 = vmatprep.subr.bf16.mxu0 0
    %767 = vmatpush2.bf16.xpose.msra.mxu0 0
    %768 = vmatprep.subr.bf16.mxu0 0
    %769 = vmatpush2.bf16.xpose.msra.mxu0 0
    %770 = vmatprep.subr.bf16.mxu0 0
    %771 = vmatpush2.bf16.xpose.msra.mxu0 0
    %772 = vmatprep.subr.bf16.mxu0 0
    %773 = vmatpush2.bf16.xpose.msra.mxu0 0
    %774 = vmatprep.subr.bf16.mxu0 0
    %775 = vmatpush2.bf16.xpose.msra.mxu0 0
    %776 = vmatprep.subr.bf16.mxu0 0
    %777 = vmatpush2.bf16.xpose.msra.mxu0 0
    %778 = vmatprep.subr.bf16.mxu0 0
    %779 = vmatpush2.bf16.xpose.msra.mxu0 0
    %780 = vmatprep.subr.bf16.mxu0 0
    %781 = vmatpush2.bf16.xpose.msra.mxu0 0
    %782 = vmatprep.mubr.bf16.mxu0 0
    %783 = vmatmul.mubr.bf16.gmra.mxu0 %v745
    %v784 = vpop.f32.mrf.mxu0
    %v785 = vadd.f32 %v436, %v784
    %v786 = vpop.f32.mrf.mxu0
    %v787 = vpop.f32.mrf.mxu0
    %v788 = vpop.f32.mrf.mxu0
    %789 = vdwg.mxu0
    %v791 = vsel %vm513, %v503, 0
    %v794 = vsel %vm513, %v511, 0
    %796 = vmatprep.subr.bf16.mxu0 0
    %797 = vmatpush1.bf16.xpose.msra.mxu0 0
    %798 = vmatprep.subr.bf16.mxu0 0
    %799 = vmatpush1.bf16.xpose.msra.mxu0 0
    %800 = vmatprep.subr.bf16.mxu0 0
    %801 = vmatpush1.bf16.xpose.msra.mxu0 0
    %802 = vmatprep.subr.bf16.mxu0 0
    %803 = vmatpush1.bf16.xpose.msra.mxu0 0
    %804 = vmatprep.subr.bf16.mxu0 0
    %805 = vmatpush1.bf16.xpose.msra.mxu0 0
    %806 = vmatprep.subr.bf16.mxu0 0
    %807 = vmatpush1.bf16.xpose.msra.mxu0 0
    %808 = vmatprep.subr.bf16.mxu0 0
    %809 = vmatpush1.bf16.xpose.msra.mxu0 0
    %810 = vmatprep.subr.bf16.mxu0 0
    %811 = vmatpush1.bf16.xpose.msra.mxu0 %v794
    %812 = vmatprep.subr.bf16.mxu0 0
    %813 = vmatpush2.bf16.xpose.msra.mxu0 0
    %814 = vmatprep.subr.bf16.mxu0 0
    %815 = vmatpush2.bf16.xpose.msra.mxu0 0
    %816 = vmatprep.subr.bf16.mxu0 0
    %817 = vmatpush2.bf16.xpose.msra.mxu0 0
    %818 = vmatprep.subr.bf16.mxu0 0
    %819 = vmatpush2.bf16.xpose.msra.mxu0 0
    %820 = vmatprep.subr.bf16.mxu0 0
    %821 = vmatpush2.bf16.xpose.msra.mxu0 0
    %822 = vmatprep.subr.bf16.mxu0 0
    %823 = vmatpush2.bf16.xpose.msra.mxu0 0
    %824 = vmatprep.subr.bf16.mxu0 0
    %825 = vmatpush2.bf16.xpose.msra.mxu0 0
    %826 = vmatprep.subr.bf16.mxu0 0
    %827 = vmatpush2.bf16.xpose.msra.mxu0 0
    %828 = vmatprep.mubr.bf16.mxu0 0
    %829 = vmatmul.mubr.bf16.gmra.mxu0 %v791
    %v830 = vpop.f32.mrf.mxu0
    %v831 = vadd.f32 %v437, %v830
    %v832 = vpop.f32.mrf.mxu0
    %v833 = vpop.f32.mrf.mxu0
    %v834 = vpop.f32.mrf.mxu0
    %835 = vdwg.mxu0
    %v837 = vsel %vm513, %v504, 0
    %v840 = vsel %vm513, %v512, 0
    %842 = vmatprep.subr.bf16.mxu0 0
    %843 = vmatpush1.bf16.xpose.msra.mxu0 0
    %844 = vmatprep.subr.bf16.mxu0 0
    %845 = vmatpush1.bf16.xpose.msra.mxu0 0
    %846 = vmatprep.subr.bf16.mxu0 0
    %847 = vmatpush1.bf16.xpose.msra.mxu0 0
    %848 = vmatprep.subr.bf16.mxu0 0
    %849 = vmatpush1.bf16.xpose.msra.mxu0 0
    %850 = vmatprep.subr.bf16.mxu0 0
    %851 = vmatpush1.bf16.xpose.msra.mxu0 0
    %852 = vmatprep.subr.bf16.mxu0 0
    %853 = vmatpush1.bf16.xpose.msra.mxu0 0
    %854 = vmatprep.subr.bf16.mxu0 0
    %855 = vmatpush1.bf16.xpose.msra.mxu0 0
    %856 = vmatprep.subr.bf16.mxu0 0
    %857 = vmatpush1.bf16.xpose.msra.mxu0 %v840
    %858 = vmatprep.subr.bf16.mxu0 0
    %859 = vmatpush2.bf16.xpose.msra.mxu0 0
    %860 = vmatprep.subr.bf16.mxu0 0
    %861 = vmatpush2.bf16.xpose.msra.mxu0 0
    %862 = vmatprep.subr.bf16.mxu0 0
    %863 = vmatpush2.bf16.xpose.msra.mxu0 0
    %864 = vmatprep.subr.bf16.mxu0 0
    %865 = vmatpush2.bf16.xpose.msra.mxu0 0
    %866 = vmatprep.subr.bf16.mxu0 0
    %867 = vmatpush2.bf16.xpose.msra.mxu0 0
    %868 = vmatprep.subr.bf16.mxu0 0
    %869 = vmatpush2.bf16.xpose.msra.mxu0 0
    %870 = vmatprep.subr.bf16.mxu0 0
    %871 = vmatpush2.bf16.xpose.msra.mxu0 0
    %872 = vmatprep.subr.bf16.mxu0 0
    %873 = vmatpush2.bf16.xpose.msra.mxu0 0
    %874 = vmatprep.mubr.bf16.mxu0 0
    %875 = vmatmul.mubr.bf16.gmra.mxu0 %v837
    %v876 = vpop.f32.mrf.mxu0
    %v877 = vadd.f32 %v438, %v876
    %v878 = vpop.f32.mrf.mxu0
    %v879 = vpop.f32.mrf.mxu0
    %v880 = vpop.f32.mrf.mxu0
    %881 = vdwg.mxu0
    %vm882 = vcmask 122880
    %v883 = vsel %vm882, %v555, -inf
    %884 = vmax.xlane.f32.xlu0 %v883
    %v885 = vpop.xlane.xlu0 %884
    %v886 = vsel %vm882, %v601, -inf
    %887 = vmax.xlane.f32.xlu0 %v886
    %v888 = vpop.xlane.xlu0 %887
    %v889 = vsel %vm882, %v647, -inf
    %890 = vmax.xlane.f32.xlu0 %v889
    %v891 = vpop.xlane.xlu0 %890
    %v892 = vsel %vm882, %v693, -inf
    %893 = vmax.xlane.f32.xlu0 %v892
    %v894 = vpop.xlane.xlu0 %893
    %v895 = vsel %vm882, %v739, -inf
    %896 = vmax.xlane.f32.xlu0 %v895
    %v897 = vpop.xlane.xlu0 %896
    %v898 = vsel %vm882, %v785, -inf
    %899 = vmax.xlane.f32.xlu0 %v898
    %v900 = vpop.xlane.xlu0 %899
    %v901 = vsel %vm882, %v831, -inf
    %902 = vmax.xlane.f32.xlu0 %v901
    %v903 = vpop.xlane.xlu0 %902
    %v904 = vsel %vm882, %v877, -inf
    %905 = vmax.xlane.f32.xlu0 %v904
    %v906 = vpop.xlane.xlu0 %905
    %v907 = vsub.f32 %v555, %v885
    %v908 = vsub.f32 %v601, %v888
    %v909 = vsub.f32 %v647, %v891
    %v910 = vsub.f32 %v693, %v894
    %v911 = vsub.f32 %v739, %v897
    %v912 = vsub.f32 %v785, %v900
    %v913 = vsub.f32 %v831, %v903
    %v914 = vsub.f32 %v877, %v906
    %v915 = vmul.f32 %v907, 1.442695
    %v916 = vpow.pop %v915
    %v917 = vmul.f32 %v908, 1.442695
    %v918 = vpow.pop %v917
    %v919 = vmul.f32 %v909, 1.442695
    %v920 = vpow.pop %v919
    %v921 = vmul.f32 %v910, 1.442695
    %v922 = vpow.pop %v921
    %v923 = vmul.f32 %v911, 1.442695
    %v924 = vpow.pop %v923
    %v925 = vmul.f32 %v912, 1.442695
    %v926 = vpow.pop %v925
    %v927 = vmul.f32 %v913, 1.442695
    %v928 = vpow.pop %v927
    %v929 = vmul.f32 %v914, 1.442695
    %v930 = vpow.pop %v929
    %v931 = vsel %vm882, %v916, 0.0
    %932 = vadd.xlane.f32.xlu0 %v931
    %v933 = vpop.xlane.xlu0 %932
    %v934 = vsel %vm882, %v918, 0.0
    %935 = vadd.xlane.f32.xlu0 %v934
    %v936 = vpop.xlane.xlu0 %935
    %v937 = vsel %vm882, %v920, 0.0
    %938 = vadd.xlane.f32.xlu0 %v937
    %v939 = vpop.xlane.xlu0 %938
    %v940 = vsel %vm882, %v922, 0.0
    %941 = vadd.xlane.f32.xlu0 %v940
    %v942 = vpop.xlane.xlu0 %941
    %v943 = vsel %vm882, %v924, 0.0
    %944 = vadd.xlane.f32.xlu0 %v943
    %v945 = vpop.xlane.xlu0 %944
    %v946 = vsel %vm882, %v926, 0.0
    %947 = vadd.xlane.f32.xlu0 %v946
    %v948 = vpop.xlane.xlu0 %947
    %v949 = vsel %vm882, %v928, 0.0
    %950 = vadd.xlane.f32.xlu0 %v949
    %v951 = vpop.xlane.xlu0 %950
    %v952 = vsel %vm882, %v930, 0.0
    %953 = vadd.xlane.f32.xlu0 %v952
    %v954 = vpop.xlane.xlu0 %953
    %v955 = vrcp.pop %v933
    %v956 = vrcp.pop %v936
    %v957 = vrcp.pop %v939
    %v958 = vrcp.pop %v942
    %v959 = vrcp.pop %v945
    %v960 = vrcp.pop %v948
    %v961 = vrcp.pop %v951
    %v962 = vrcp.pop %v954
    %v963 = vmul.f32 %v916, %v955
    %v964 = vmul.f32 %v918, %v956
    %v965 = vmul.f32 %v920, %v957
    %v966 = vmul.f32 %v922, %v958
    %v967 = vmul.f32 %v924, %v959
    %v968 = vmul.f32 %v926, %v960
    %v969 = vmul.f32 %v928, %v961
    %v970 = vmul.f32 %v930, %v962
    %v971 = vpack.c.bf16 %v963, %v963
    %v972 = vpack.c.bf16 %v964, %v964
    %v973 = vpack.c.bf16 %v965, %v965
    %v974 = vpack.c.bf16 %v966, %v966
    %v975 = vpack.c.bf16 %v967, %v967
    %v976 = vpack.c.bf16 %v968, %v968
    %v977 = vpack.c.bf16 %v969, %v969
    %v978 = vpack.c.bf16 %v970, %v970
    %980 = vrot.lane.b32.xlu0 %v505, 96
    %v981 = vpop.permute.xlu0 %980
    %v984 = vsel %vm513, %v971, 0
    %986 = vmatprep.subr.bf16.mxu0 0
    %987 = vmatpush1.bf16.msra.mxu0 0
    %988 = vmatprep.subr.bf16.mxu0 0
    %989 = vmatpush1.bf16.msra.mxu0 0
    %990 = vmatprep.subr.bf16.mxu0 0
    %991 = vmatpush1.bf16.msra.mxu0 0
    %992 = vmatprep.subr.bf16.mxu0 0
    %993 = vmatpush1.bf16.msra.mxu0 0
    %994 = vmatprep.subr.bf16.mxu0 0
    %995 = vmatpush1.bf16.msra.mxu0 0
    %996 = vmatprep.subr.bf16.mxu0 0
    %997 = vmatpush1.bf16.msra.mxu0 0
    %998 = vmatprep.subr.bf16.mxu0 0
    %999 = vmatpush1.bf16.msra.mxu0 0
    %1000 = vmatprep.subr.bf16.mxu0 0
    %1001 = vmatpush1.bf16.msra.mxu0 %v981
    %1002 = vmatprep.subr.bf16.mxu0 0
    %1003 = vmatpush2.bf16.msra.mxu0 0
    %1004 = vmatprep.subr.bf16.mxu0 0
    %1005 = vmatpush2.bf16.msra.mxu0 0
    %1006 = vmatprep.subr.bf16.mxu0 0
    %1007 = vmatpush2.bf16.msra.mxu0 0
    %1008 = vmatprep.subr.bf16.mxu0 0
    %1009 = vmatpush2.bf16.msra.mxu0 0
    %1010 = vmatprep.subr.bf16.mxu0 0
    %1011 = vmatpush2.bf16.msra.mxu0 0
    %1012 = vmatprep.subr.bf16.mxu0 0
    %1013 = vmatpush2.bf16.msra.mxu0 0
    %1014 = vmatprep.subr.bf16.mxu0 0
    %1015 = vmatpush2.bf16.msra.mxu0 0
    %1016 = vmatprep.subr.bf16.mxu0 0
    %1017 = vmatpush2.bf16.msra.mxu0 0
    %1018 = vmatprep.mubr.bf16.mxu0 0
    %1019 = vmatmul.mubr.bf16.gmra.mxu0 %v984
    %v1020 = vpop.f32.mrf.mxu0
    %v1021 = vadd.f32 0.0, %v1020
    %v1022 = vpop.f32.mrf.mxu0
    %v1023 = vpop.f32.mrf.mxu0
    %v1024 = vpop.f32.mrf.mxu0
    %1025 = vdwg.mxu0
    %1027 = vrot.lane.b32.xlu0 %v506, 96
    %v1028 = vpop.permute.xlu0 %1027
    %v1031 = vsel %vm513, %v972, 0
    %1033 = vmatprep.subr.bf16.mxu0 0
    %1034 = vmatpush1.bf16.msra.mxu0 0
    %1035 = vmatprep.subr.bf16.mxu0 0
    %1036 = vmatpush1.bf16.msra.mxu0 0
    %1037 = vmatprep.subr.bf16.mxu0 0
    %1038 = vmatpush1.bf16.msra.mxu0 0
    %1039 = vmatprep.subr.bf16.mxu0 0
    %1040 = vmatpush1.bf16.msra.mxu0 0
    %1041 = vmatprep.subr.bf16.mxu0 0
    %1042 = vmatpush1.bf16.msra.mxu0 0
    %1043 = vmatprep.subr.bf16.mxu0 0
    %1044 = vmatpush1.bf16.msra.mxu0 0
    %1045 = vmatprep.subr.bf16.mxu0 0
    %1046 = vmatpush1.bf16.msra.mxu0 0
    %1047 = vmatprep.subr.bf16.mxu0 0
    %1048 = vmatpush1.bf16.msra.mxu0 %v1028
    %1049 = vmatprep.subr.bf16.mxu0 0
    %1050 = vmatpush2.bf16.msra.mxu0 0
    %1051 = vmatprep.subr.bf16.mxu0 0
    %1052 = vmatpush2.bf16.msra.mxu0 0
    %1053 = vmatprep.subr.bf16.mxu0 0
    %1054 = vmatpush2.bf16.msra.mxu0 0
    %1055 = vmatprep.subr.bf16.mxu0 0
    %1056 = vmatpush2.bf16.msra.mxu0 0
    %1057 = vmatprep.subr.bf16.mxu0 0
    %1058 = vmatpush2.bf16.msra.mxu0 0
    %1059 = vmatprep.subr.bf16.mxu0 0
    %1060 = vmatpush2.bf16.msra.mxu0 0
    %1061 = vmatprep.subr.bf16.mxu0 0
    %1062 = vmatpush2.bf16.msra.mxu0 0
    %1063 = vmatprep.subr.bf16.mxu0 0
    %1064 = vmatpush2.bf16.msra.mxu0 0
    %1065 = vmatprep.mubr.bf16.mxu0 0
    %1066 = vmatmul.mubr.bf16.gmra.mxu0 %v1031
    %v1067 = vpop.f32.mrf.mxu0
    %v1068 = vadd.f32 0.0, %v1067
    %v1069 = vpop.f32.mrf.mxu0
    %v1070 = vpop.f32.mrf.mxu0
    %v1071 = vpop.f32.mrf.mxu0
    %1072 = vdwg.mxu0
    %1074 = vrot.lane.b32.xlu0 %v507, 96
    %v1075 = vpop.permute.xlu0 %1074
    %v1078 = vsel %vm513, %v973, 0
    %1080 = vmatprep.subr.bf16.mxu0 0
    %1081 = vmatpush1.bf16.msra.mxu0 0
    %1082 = vmatprep.subr.bf16.mxu0 0
    %1083 = vmatpush1.bf16.msra.mxu0 0
    %1084 = vmatprep.subr.bf16.mxu0 0
    %1085 = vmatpush1.bf16.msra.mxu0 0
    %1086 = vmatprep.subr.bf16.mxu0 0
    %1087 = vmatpush1.bf16.msra.mxu0 0
    %1088 = vmatprep.subr.bf16.mxu0 0
    %1089 = vmatpush1.bf16.msra.mxu0 0
    %1090 = vmatprep.subr.bf16.mxu0 0
    %1091 = vmatpush1.bf16.msra.mxu0 0
    %1092 = vmatprep.subr.bf16.mxu0 0
    %1093 = vmatpush1.bf16.msra.mxu0 0
    %1094 = vmatprep.subr.bf16.mxu0 0
    %1095 = vmatpush1.bf16.msra.mxu0 %v1075
    %1096 = vmatprep.subr.bf16.mxu0 0
    %1097 = vmatpush2.bf16.msra.mxu0 0
    %1098 = vmatprep.subr.bf16.mxu0 0
    %1099 = vmatpush2.bf16.msra.mxu0 0
    %1100 = vmatprep.subr.bf16.mxu0 0
    %1101 = vmatpush2.bf16.msra.mxu0 0
    %1102 = vmatprep.subr.bf16.mxu0 0
    %1103 = vmatpush2.bf16.msra.mxu0 0
    %1104 = vmatprep.subr.bf16.mxu0 0
    %1105 = vmatpush2.bf16.msra.mxu0 0
    %1106 = vmatprep.subr.bf16.mxu0 0
    %1107 = vmatpush2.bf16.msra.mxu0 0
    %1108 = vmatprep.subr.bf16.mxu0 0
    %1109 = vmatpush2.bf16.msra.mxu0 0
    %1110 = vmatprep.subr.bf16.mxu0 0
    %1111 = vmatpush2.bf16.msra.mxu0 0
    %1112 = vmatprep.mubr.bf16.mxu0 0
    %1113 = vmatmul.mubr.bf16.gmra.mxu0 %v1078
    %v1114 = vpop.f32.mrf.mxu0
    %v1115 = vadd.f32 0.0, %v1114
    %v1116 = vpop.f32.mrf.mxu0
    %v1117 = vpop.f32.mrf.mxu0
    %v1118 = vpop.f32.mrf.mxu0
    %1119 = vdwg.mxu0
    %1121 = vrot.lane.b32.xlu0 %v508, 96
    %v1122 = vpop.permute.xlu0 %1121
    %v1125 = vsel %vm513, %v974, 0
    %1127 = vmatprep.subr.bf16.mxu0 0
    %1128 = vmatpush1.bf16.msra.mxu0 0
    %1129 = vmatprep.subr.bf16.mxu0 0
    %1130 = vmatpush1.bf16.msra.mxu0 0
    %1131 = vmatprep.subr.bf16.mxu0 0
    %1132 = vmatpush1.bf16.msra.mxu0 0
    %1133 = vmatprep.subr.bf16.mxu0 0
    %1134 = vmatpush1.bf16.msra.mxu0 0
    %1135 = vmatprep.subr.bf16.mxu0 0
    %1136 = vmatpush1.bf16.msra.mxu0 0
    %1137 = vmatprep.subr.bf16.mxu0 0
    %1138 = vmatpush1.bf16.msra.mxu0 0
    %1139 = vmatprep.subr.bf16.mxu0 0
    %1140 = vmatpush1.bf16.msra.mxu0 0
    %1141 = vmatprep.subr.bf16.mxu0 0
    %1142 = vmatpush1.bf16.msra.mxu0 %v1122
    %1143 = vmatprep.subr.bf16.mxu0 0
    %1144 = vmatpush2.bf16.msra.mxu0 0
    %1145 = vmatprep.subr.bf16.mxu0 0
    %1146 = vmatpush2.bf16.msra.mxu0 0
    %1147 = vmatprep.subr.bf16.mxu0 0
    %1148 = vmatpush2.bf16.msra.mxu0 0
    %1149 = vmatprep.subr.bf16.mxu0 0
    %1150 = vmatpush2.bf16.msra.mxu0 0
    %1151 = vmatprep.subr.bf16.mxu0 0
    %1152 = vmatpush2.bf16.msra.mxu0 0
    %1153 = vmatprep.subr.bf16.mxu0 0
    %1154 = vmatpush2.bf16.msra.mxu0 0
    %1155 = vmatprep.subr.bf16.mxu0 0
    %1156 = vmatpush2.bf16.msra.mxu0 0
    %1157 = vmatprep.subr.bf16.mxu0 0
    %1158 = vmatpush2.bf16.msra.mxu0 0
    %1159 = vmatprep.mubr.bf16.mxu0 0
    %1160 = vmatmul.mubr.bf16.gmra.mxu0 %v1125
    %v1161 = vpop.f32.mrf.mxu0
    %v1162 = vadd.f32 0.0, %v1161
    %v1163 = vpop.f32.mrf.mxu0
    %v1164 = vpop.f32.mrf.mxu0
    %v1165 = vpop.f32.mrf.mxu0
    %1166 = vdwg.mxu0
    %1168 = vrot.lane.b32.xlu0 %v509, 96
    %v1169 = vpop.permute.xlu0 %1168
    %v1172 = vsel %vm513, %v975, 0
    %1174 = vmatprep.subr.bf16.mxu0 0
    %1175 = vmatpush1.bf16.msra.mxu0 0
    %1176 = vmatprep.subr.bf16.mxu0 0
    %1177 = vmatpush1.bf16.msra.mxu0 0
    %1178 = vmatprep.subr.bf16.mxu0 0
    %1179 = vmatpush1.bf16.msra.mxu0 0
    %1180 = vmatprep.subr.bf16.mxu0 0
    %1181 = vmatpush1.bf16.msra.mxu0 0
    %1182 = vmatprep.subr.bf16.mxu0 0
    %1183 = vmatpush1.bf16.msra.mxu0 0
    %1184 = vmatprep.subr.bf16.mxu0 0
    %1185 = vmatpush1.bf16.msra.mxu0 0
    %1186 = vmatprep.subr.bf16.mxu0 0
    %1187 = vmatpush1.bf16.msra.mxu0 0
    %1188 = vmatprep.subr.bf16.mxu0 0
    %1189 = vmatpush1.bf16.msra.mxu0 %v1169
    %1190 = vmatprep.subr.bf16.mxu0 0
    %1191 = vmatpush2.bf16.msra.mxu0 0
    %1192 = vmatprep.subr.bf16.mxu0 0
    %1193 = vmatpush2.bf16.msra.mxu0 0
    %1194 = vmatprep.subr.bf16.mxu0 0
    %1195 = vmatpush2.bf16.msra.mxu0 0
    %1196 = vmatprep.subr.bf16.mxu0 0
    %1197 = vmatpush2.bf16.msra.mxu0 0
    %1198 = vmatprep.subr.bf16.mxu0 0
    %1199 = vmatpush2.bf16.msra.mxu0 0
    %1200 = vmatprep.subr.bf16.mxu0 0
    %1201 = vmatpush2.bf16.msra.mxu0 0
    %1202 = vmatprep.subr.bf16.mxu0 0
    %1203 = vmatpush2.bf16.msra.mxu0 0
    %1204 = vmatprep.subr.bf16.mxu0 0
    %1205 = vmatpush2.bf16.msra.mxu0 0
    %1206 = vmatprep.mubr.bf16.mxu0 0
    %1207 = vmatmul.mubr.bf16.gmra.mxu0 %v1172
    %v1208 = vpop.f32.mrf.mxu0
    %v1209 = vadd.f32 0.0, %v1208
    %v1210 = vpop.f32.mrf.mxu0
    %v1211 = vpop.f32.mrf.mxu0
    %v1212 = vpop.f32.mrf.mxu0
    %1213 = vdwg.mxu0
    %1215 = vrot.lane.b32.xlu0 %v510, 96
    %v1216 = vpop.permute.xlu0 %1215
    %v1219 = vsel %vm513, %v976, 0
    %1221 = vmatprep.subr.bf16.mxu0 0
    %1222 = vmatpush1.bf16.msra.mxu0 0
    %1223 = vmatprep.subr.bf16.mxu0 0
    %1224 = vmatpush1.bf16.msra.mxu0 0
    %1225 = vmatprep.subr.bf16.mxu0 0
    %1226 = vmatpush1.bf16.msra.mxu0 0
    %1227 = vmatprep.subr.bf16.mxu0 0
    %1228 = vmatpush1.bf16.msra.mxu0 0
    %1229 = vmatprep.subr.bf16.mxu0 0
    %1230 = vmatpush1.bf16.msra.mxu0 0
    %1231 = vmatprep.subr.bf16.mxu0 0
    %1232 = vmatpush1.bf16.msra.mxu0 0
    %1233 = vmatprep.subr.bf16.mxu0 0
    %1234 = vmatpush1.bf16.msra.mxu0 0
    %1235 = vmatprep.subr.bf16.mxu0 0
    %1236 = vmatpush1.bf16.msra.mxu0 %v1216
    %1237 = vmatprep.subr.bf16.mxu0 0
    %1238 = vmatpush2.bf16.msra.mxu0 0
    %1239 = vmatprep.subr.bf16.mxu0 0
    %1240 = vmatpush2.bf16.msra.mxu0 0
    %1241 = vmatprep.subr.bf16.mxu0 0
    %1242 = vmatpush2.bf16.msra.mxu0 0
    %1243 = vmatprep.subr.bf16.mxu0 0
    %1244 = vmatpush2.bf16.msra.mxu0 0
    %1245 = vmatprep.subr.bf16.mxu0 0
    %1246 = vmatpush2.bf16.msra.mxu0 0
    %1247 = vmatprep.subr.bf16.mxu0 0
    %1248 = vmatpush2.bf16.msra.mxu0 0
    %1249 = vmatprep.subr.bf16.mxu0 0
    %1250 = vmatpush2.bf16.msra.mxu0 0
    %1251 = vmatprep.subr.bf16.mxu0 0
    %1252 = vmatpush2.bf16.msra.mxu0 0
    %1253 = vmatprep.mubr.bf16.mxu0 0
    %1254 = vmatmul.mubr.bf16.gmra.mxu0 %v1219
    %v1255 = vpop.f32.mrf.mxu0
    %v1256 = vadd.f32 0.0, %v1255
    %v1257 = vpop.f32.mrf.mxu0
    %v1258 = vpop.f32.mrf.mxu0
    %v1259 = vpop.f32.mrf.mxu0
    %1260 = vdwg.mxu0
    %1262 = vrot.lane.b32.xlu0 %v511, 96
    %v1263 = vpop.permute.xlu0 %1262
    %v1266 = vsel %vm513, %v977, 0
    %1268 = vmatprep.subr.bf16.mxu0 0
    %1269 = vmatpush1.bf16.msra.mxu0 0
    %1270 = vmatprep.subr.bf16.mxu0 0
    %1271 = vmatpush1.bf16.msra.mxu0 0
    %1272 = vmatprep.subr.bf16.mxu0 0
    %1273 = vmatpush1.bf16.msra.mxu0 0
    %1274 = vmatprep.subr.bf16.mxu0 0
    %1275 = vmatpush1.bf16.msra.mxu0 0
    %1276 = vmatprep.subr.bf16.mxu0 0
    %1277 = vmatpush1.bf16.msra.mxu0 0
    %1278 = vmatprep.subr.bf16.mxu0 0
    %1279 = vmatpush1.bf16.msra.mxu0 0
    %1280 = vmatprep.subr.bf16.mxu0 0
    %1281 = vmatpush1.bf16.msra.mxu0 0
    %1282 = vmatprep.subr.bf16.mxu0 0
    %1283 = vmatpush1.bf16.msra.mxu0 %v1263
    %1284 = vmatprep.subr.bf16.mxu0 0
    %1285 = vmatpush2.bf16.msra.mxu0 0
    %1286 = vmatprep.subr.bf16.mxu0 0
    %1287 = vmatpush2.bf16.msra.mxu0 0
    %1288 = vmatprep.subr.bf16.mxu0 0
    %1289 = vmatpush2.bf16.msra.mxu0 0
    %1290 = vmatprep.subr.bf16.mxu0 0
    %1291 = vmatpush2.bf16.msra.mxu0 0
    %1292 = vmatprep.subr.bf16.mxu0 0
    %1293 = vmatpush2.bf16.msra.mxu0 0
    %1294 = vmatprep.subr.bf16.mxu0 0
    %1295 = vmatpush2.bf16.msra.mxu0 0
    %1296 = vmatprep.subr.bf16.mxu0 0
    %1297 = vmatpush2.bf16.msra.mxu0 0
    %1298 = vmatprep.subr.bf16.mxu0 0
    %1299 = vmatpush2.bf16.msra.mxu0 0
    %1300 = vmatprep.mubr.bf16.mxu0 0
    %1301 = vmatmul.mubr.bf16.gmra.mxu0 %v1266
    %v1302 = vpop.f32.mrf.mxu0
    %v1303 = vadd.f32 0.0, %v1302
    %v1304 = vpop.f32.mrf.mxu0
    %v1305 = vpop.f32.mrf.mxu0
    %v1306 = vpop.f32.mrf.mxu0
    %1307 = vdwg.mxu0
    %1309 = vrot.lane.b32.xlu0 %v512, 96
    %v1310 = vpop.permute.xlu0 %1309
    %v1313 = vsel %vm513, %v978, 0
    %1315 = vmatprep.subr.bf16.mxu0 0
    %1316 = vmatpush1.bf16.msra.mxu0 0
    %1317 = vmatprep.subr.bf16.mxu0 0
    %1318 = vmatpush1.bf16.msra.mxu0 0
    %1319 = vmatprep.subr.bf16.mxu0 0
    %1320 = vmatpush1.bf16.msra.mxu0 0
    %1321 = vmatprep.subr.bf16.mxu0 0
    %1322 = vmatpush1.bf16.msra.mxu0 0
    %1323 = vmatprep.subr.bf16.mxu0 0
    %1324 = vmatpush1.bf16.msra.mxu0 0
    %1325 = vmatprep.subr.bf16.mxu0 0
    %1326 = vmatpush1.bf16.msra.mxu0 0
    %1327 = vmatprep.subr.bf16.mxu0 0
    %1328 = vmatpush1.bf16.msra.mxu0 0
    %1329 = vmatprep.subr.bf16.mxu0 0
    %1330 = vmatpush1.bf16.msra.mxu0 %v1310
    %1331 = vmatprep.subr.bf16.mxu0 0
    %1332 = vmatpush2.bf16.msra.mxu0 0
    %1333 = vmatprep.subr.bf16.mxu0 0
    %1334 = vmatpush2.bf16.msra.mxu0 0
    %1335 = vmatprep.subr.bf16.mxu0 0
    %1336 = vmatpush2.bf16.msra.mxu0 0
    %1337 = vmatprep.subr.bf16.mxu0 0
    %1338 = vmatpush2.bf16.msra.mxu0 0
    %1339 = vmatprep.subr.bf16.mxu0 0
    %1340 = vmatpush2.bf16.msra.mxu0 0
    %1341 = vmatprep.subr.bf16.mxu0 0
    %1342 = vmatpush2.bf16.msra.mxu0 0
    %1343 = vmatprep.subr.bf16.mxu0 0
    %1344 = vmatpush2.bf16.msra.mxu0 0
    %1345 = vmatprep.subr.bf16.mxu0 0
    %1346 = vmatpush2.bf16.msra.mxu0 0
    %1347 = vmatprep.mubr.bf16.mxu0 0
    %1348 = vmatmul.mubr.bf16.gmra.mxu0 %v1313
    %v1349 = vpop.f32.mrf.mxu0
    %v1350 = vadd.f32 0.0, %v1349
    %v1351 = vpop.f32.mrf.mxu0
    %v1352 = vpop.f32.mrf.mxu0
    %v1353 = vpop.f32.mrf.mxu0
    %1354 = vdwg.mxu0
    %v1355 = vpack.c.bf16 %v1021, %v1021
    %v1356 = vpack.c.bf16 %v1068, %v1068
    %v1357 = vpack.c.bf16 %v1115, %v1115
    %v1358 = vpack.c.bf16 %v1162, %v1162
    %v1359 = vpack.c.bf16 %v1209, %v1209
    %v1360 = vpack.c.bf16 %v1256, %v1256
    %v1361 = vpack.c.bf16 %v1303, %v1303
    %v1362 = vpack.c.bf16 %v1350, %v1350
    %v1363 = vld [vmem:[#allocation7] sm:$0xf]
    %v1364 = vld [vmem:[#allocation7 + $0x4] sm:$0xf]
    %1366 = vrot.lane.b32.xlu0 %v497, 112
    %v1367 = vpop.permute.xlu0 %1366
    %1368 = vrot.lane.b32.xlu0 %v505, 112
    %v1369 = vpop.permute.xlu0 %1368
    %v1371 = vsel %vm513, %v1367, 0
    %v1374 = vsel %vm513, %v1369, 0
    %1376 = vmatprep.subr.bf16.mxu0 0
    %1377 = vmatpush1.bf16.xpose.msra.mxu0 0
    %1378 = vmatprep.subr.bf16.mxu0 0
    %1379 = vmatpush1.bf16.xpose.msra.mxu0 0
    %1380 = vmatprep.subr.bf16.mxu0 0
    %1381 = vmatpush1.bf16.xpose.msra.mxu0 0
    %1382 = vmatprep.subr.bf16.mxu0 0
    %1383 = vmatpush1.bf16.xpose.msra.mxu0 0
    %1384 = vmatprep.subr.bf16.mxu0 0
    %1385 = vmatpush1.bf16.xpose.msra.mxu0 0
    %1386 = vmatprep.subr.bf16.mxu0 0
    %1387 = vmatpush1.bf16.xpose.msra.mxu0 0
    %1388 = vmatprep.subr.bf16.mxu0 0
    %1389 = vmatpush1.bf16.xpose.msra.mxu0 0
    %1390 = vmatprep.subr.bf16.mxu0 0
    %1391 = vmatpush1.bf16.xpose.msra.mxu0 %v1374
    %1392 = vmatprep.subr.bf16.mxu0 0
    %1393 = vmatpush2.bf16.xpose.msra.mxu0 0
    %1394 = vmatprep.subr.bf16.mxu0 0
    %1395 = vmatpush2.bf16.xpose.msra.mxu0 0
    %1396 = vmatprep.subr.bf16.mxu0 0
    %1397 = vmatpush2.bf16.xpose.msra.mxu0 0
    %1398 = vmatprep.subr.bf16.mxu0 0
    %1399 = vmatpush2.bf16.xpose.msra.mxu0 0
    %1400 = vmatprep.subr.bf16.mxu0 0
    %1401 = vmatpush2.bf16.xpose.msra.mxu0 0
    %1402 = vmatprep.subr.bf16.mxu0 0
    %1403 = vmatpush2.bf16.xpose.msra.mxu0 0
    %1404 = vmatprep.subr.bf16.mxu0 0
    %1405 = vmatpush2.bf16.xpose.msra.mxu0 0
    %1406 = vmatprep.subr.bf16.mxu0 0
    %1407 = vmatpush2.bf16.xpose.msra.mxu0 0
    %1408 = vmatprep.mubr.bf16.mxu0 0
    %1409 = vmatmul.mubr.bf16.gmra.mxu0 %v1371
    %v1410 = vpop.f32.mrf.mxu0
    %v1411 = vadd.f32 %v431, %v1410
    %v1412 = vpop.f32.mrf.mxu0
    %v1413 = vpop.f32.mrf.mxu0
    %v1414 = vpop.f32.mrf.mxu0
    %1415 = vdwg.mxu0
    %1417 = vrot.lane.b32.xlu0 %v498, 112
    %v1418 = vpop.permute.xlu0 %1417
    %1419 = vrot.lane.b32.xlu0 %v506, 112
    %v1420 = vpop.permute.xlu0 %1419
    %v1422 = vsel %vm513, %v1418, 0
    %v1425 = vsel %vm513, %v1420, 0
    %1427 = vmatprep.subr.bf16.mxu0 0
    %1428 = vmatpush1.bf16.xpose.msra.mxu0 0
    %1429 = vmatprep.subr.bf16.mxu0 0
    %1430 = vmatpush1.bf16.xpose.msra.mxu0 0
    %1431 = vmatprep.subr.bf16.mxu0 0
    %1432 = vmatpush1.bf16.xpose.msra.mxu0 0
    %1433 = vmatprep.subr.bf16.mxu0 0
    %1434 = vmatpush1.bf16.xpose.msra.mxu0 0
    %1435 = vmatprep.subr.bf16.mxu0 0
    %1436 = vmatpush1.bf16.xpose.msra.mxu0 0
    %1437 = vmatprep.subr.bf16.mxu0 0
    %1438 = vmatpush1.bf16.xpose.msra.mxu0 0
    %1439 = vmatprep.subr.bf16.mxu0 0
    %1440 = vmatpush1.bf16.xpose.msra.mxu0 0
    %1441 = vmatprep.subr.bf16.mxu0 0
    %1442 = vmatpush1.bf16.xpose.msra.mxu0 %v1425
    %1443 = vmatprep.subr.bf16.mxu0 0
    %1444 = vmatpush2.bf16.xpose.msra.mxu0 0
    %1445 = vmatprep.subr.bf16.mxu0 0
    %1446 = vmatpush2.bf16.xpose.msra.mxu0 0
    %1447 = vmatprep.subr.bf16.mxu0 0
    %1448 = vmatpush2.bf16.xpose.msra.mxu0 0
    %1449 = vmatprep.subr.bf16.mxu0 0
    %1450 = vmatpush2.bf16.xpose.msra.mxu0 0
    %1451 = vmatprep.subr.bf16.mxu0 0
    %1452 = vmatpush2.bf16.xpose.msra.mxu0 0
    %1453 = vmatprep.subr.bf16.mxu0 0
    %1454 = vmatpush2.bf16.xpose.msra.mxu0 0
    %1455 = vmatprep.subr.bf16.mxu0 0
    %1456 = vmatpush2.bf16.xpose.msra.mxu0 0
    %1457 = vmatprep.subr.bf16.mxu0 0
    %1458 = vmatpush2.bf16.xpose.msra.mxu0 0
    %1459 = vmatprep.mubr.bf16.mxu0 0
    %1460 = vmatmul.mubr.bf16.gmra.mxu0 %v1422
    %v1461 = vpop.f32.mrf.mxu0
    %v1462 = vadd.f32 %v432, %v1461
    %v1463 = vpop.f32.mrf.mxu0
    %v1464 = vpop.f32.mrf.mxu0
    %v1465 = vpop.f32.mrf.mxu0
    %1466 = vdwg.mxu0
    %1468 = vrot.lane.b32.xlu0 %v499, 112
    %v1469 = vpop.permute.xlu0 %1468
    %1470 = vrot.lane.b32.xlu0 %v507, 112
    %v1471 = vpop.permute.xlu0 %1470
    %v1473 = vsel %vm513, %v1469, 0
    %v1476 = vsel %vm513, %v1471, 0
    %1478 = vmatprep.subr.bf16.mxu0 0
    %1479 = vmatpush1.bf16.xpose.msra.mxu0 0
    %1480 = vmatprep.subr.bf16.mxu0 0
    %1481 = vmatpush1.bf16.xpose.msra.mxu0 0
    %1482 = vmatprep.subr.bf16.mxu0 0
    %1483 = vmatpush1.bf16.xpose.msra.mxu0 0
    %1484 = vmatprep.subr.bf16.mxu0 0
    %1485 = vmatpush1.bf16.xpose.msra.mxu0 0
    %1486 = vmatprep.subr.bf16.mxu0 0
    %1487 = vmatpush1.bf16.xpose.msra.mxu0 0
    %1488 = vmatprep.subr.bf16.mxu0 0
    %1489 = vmatpush1.bf16.xpose.msra.mxu0 0
    %1490 = vmatprep.subr.bf16.mxu0 0
    %1491 = vmatpush1.bf16.xpose.msra.mxu0 0
    %1492 = vmatprep.subr.bf16.mxu0 0
    %1493 = vmatpush1.bf16.xpose.msra.mxu0 %v1476
    %1494 = vmatprep.subr.bf16.mxu0 0
    %1495 = vmatpush2.bf16.xpose.msra.mxu0 0
    %1496 = vmatprep.subr.bf16.mxu0 0
    %1497 = vmatpush2.bf16.xpose.msra.mxu0 0
    %1498 = vmatprep.subr.bf16.mxu0 0
    %1499 = vmatpush2.bf16.xpose.msra.mxu0 0
    %1500 = vmatprep.subr.bf16.mxu0 0
    %1501 = vmatpush2.bf16.xpose.msra.mxu0 0
    %1502 = vmatprep.subr.bf16.mxu0 0
    %1503 = vmatpush2.bf16.xpose.msra.mxu0 0
    %1504 = vmatprep.subr.bf16.mxu0 0
    %1505 = vmatpush2.bf16.xpose.msra.mxu0 0
    %1506 = vmatprep.subr.bf16.mxu0 0
    %1507 = vmatpush2.bf16.xpose.msra.mxu0 0
    %1508 = vmatprep.subr.bf16.mxu0 0
    %1509 = vmatpush2.bf16.xpose.msra.mxu0 0
    %1510 = vmatprep.mubr.bf16.mxu0 0
    %1511 = vmatmul.mubr.bf16.gmra.mxu0 %v1473
    %v1512 = vpop.f32.mrf.mxu0
    %v1513 = vadd.f32 %v433, %v1512
    %v1514 = vpop.f32.mrf.mxu0
    %v1515 = vpop.f32.mrf.mxu0
    %v1516 = vpop.f32.mrf.mxu0
    %1517 = vdwg.mxu0
    %1519 = vrot.lane.b32.xlu0 %v500, 112
    %v1520 = vpop.permute.xlu0 %1519
    %1521 = vrot.lane.b32.xlu0 %v508, 112
    %v1522 = vpop.permute.xlu0 %1521
    %v1524 = vsel %vm513, %v1520, 0
    %v1527 = vsel %vm513, %v1522, 0
    %1529 = vmatprep.subr.bf16.mxu0 0
    %1530 = vmatpush1.bf16.xpose.msra.mxu0 0
    %1531 = vmatprep.subr.bf16.mxu0 0
    %1532 = vmatpush1.bf16.xpose.msra.mxu0 0
    %1533 = vmatprep.subr.bf16.mxu0 0
    %1534 = vmatpush1.bf16.xpose.msra.mxu0 0
    %1535 = vmatprep.subr.bf16.mxu0 0
    %1536 = vmatpush1.bf16.xpose.msra.mxu0 0
    %1537 = vmatprep.subr.bf16.mxu0 0
    %1538 = vmatpush1.bf16.xpose.msra.mxu0 0
    %1539 = vmatprep.subr.bf16.mxu0 0
    %1540 = vmatpush1.bf16.xpose.msra.mxu0 0
    %1541 = vmatprep.subr.bf16.mxu0 0
    %1542 = vmatpush1.bf16.xpose.msra.mxu0 0
    %1543 = vmatprep.subr.bf16.mxu0 0
    %1544 = vmatpush1.bf16.xpose.msra.mxu0 %v1527
    %1545 = vmatprep.subr.bf16.mxu0 0
    %1546 = vmatpush2.bf16.xpose.msra.mxu0 0
    %1547 = vmatprep.subr.bf16.mxu0 0
    %1548 = vmatpush2.bf16.xpose.msra.mxu0 0
    %1549 = vmatprep.subr.bf16.mxu0 0
    %1550 = vmatpush2.bf16.xpose.msra.mxu0 0
    %1551 = vmatprep.subr.bf16.mxu0 0
    %1552 = vmatpush2.bf16.xpose.msra.mxu0 0
    %1553 = vmatprep.subr.bf16.mxu0 0
    %1554 = vmatpush2.bf16.xpose.msra.mxu0 0
    %1555 = vmatprep.subr.bf16.mxu0 0
    %1556 = vmatpush2.bf16.xpose.msra.mxu0 0
    %1557 = vmatprep.subr.bf16.mxu0 0
    %1558 = vmatpush2.bf16.xpose.msra.mxu0 0
    %1559 = vmatprep.subr.bf16.mxu0 0
    %1560 = vmatpush2.bf16.xpose.msra.mxu0 0
    %1561 = vmatprep.mubr.bf16.mxu0 0
    %1562 = vmatmul.mubr.bf16.gmra.mxu0 %v1524
    %v1563 = vpop.f32.mrf.mxu0
    %v1564 = vadd.f32 %v434, %v1563
    %v1565 = vpop.f32.mrf.mxu0
    %v1566 = vpop.f32.mrf.mxu0
    %v1567 = vpop.f32.mrf.mxu0
    %1568 = vdwg.mxu0
    %1570 = vrot.lane.b32.xlu0 %v501, 112
    %v1571 = vpop.permute.xlu0 %1570
    %1572 = vrot.lane.b32.xlu0 %v509, 112
    %v1573 = vpop.permute.xlu0 %1572
    %v1575 = vsel %vm513, %v1571, 0
    %v1578 = vsel %vm513, %v1573, 0
    %1580 = vmatprep.subr.bf16.mxu0 0
    %1581 = vmatpush1.bf16.xpose.msra.mxu0 0
    %1582 = vmatprep.subr.bf16.mxu0 0
    %1583 = vmatpush1.bf16.xpose.msra.mxu0 0
    %1584 = vmatprep.subr.bf16.mxu0 0
    %1585 = vmatpush1.bf16.xpose.msra.mxu0 0
    %1586 = vmatprep.subr.bf16.mxu0 0
    %1587 = vmatpush1.bf16.xpose.msra.mxu0 0
    %1588 = vmatprep.subr.bf16.mxu0 0
    %1589 = vmatpush1.bf16.xpose.msra.mxu0 0
    %1590 = vmatprep.subr.bf16.mxu0 0
    %1591 = vmatpush1.bf16.xpose.msra.mxu0 0
    %1592 = vmatprep.subr.bf16.mxu0 0
    %1593 = vmatpush1.bf16.xpose.msra.mxu0 0
    %1594 = vmatprep.subr.bf16.mxu0 0
    %1595 = vmatpush1.bf16.xpose.msra.mxu0 %v1578
    %1596 = vmatprep.subr.bf16.mxu0 0
    %1597 = vmatpush2.bf16.xpose.msra.mxu0 0
    %1598 = vmatprep.subr.bf16.mxu0 0
    %1599 = vmatpush2.bf16.xpose.msra.mxu0 0
    %1600 = vmatprep.subr.bf16.mxu0 0
    %1601 = vmatpush2.bf16.xpose.msra.mxu0 0
    %1602 = vmatprep.subr.bf16.mxu0 0
    %1603 = vmatpush2.bf16.xpose.msra.mxu0 0
    %1604 = vmatprep.subr.bf16.mxu0 0
    %1605 = vmatpush2.bf16.xpose.msra.mxu0 0
    %1606 = vmatprep.subr.bf16.mxu0 0
    %1607 = vmatpush2.bf16.xpose.msra.mxu0 0
    %1608 = vmatprep.subr.bf16.mxu0 0
    %1609 = vmatpush2.bf16.xpose.msra.mxu0 0
    %1610 = vmatprep.subr.bf16.mxu0 0
    %1611 = vmatpush2.bf16.xpose.msra.mxu0 0
    %1612 = vmatprep.mubr.bf16.mxu0 0
    %1613 = vmatmul.mubr.bf16.gmra.mxu0 %v1575
    %v1614 = vpop.f32.mrf.mxu0
    %v1615 = vadd.f32 %v435, %v1614
    %v1616 = vpop.f32.mrf.mxu0
    %v1617 = vpop.f32.mrf.mxu0
    %v1618 = vpop.f32.mrf.mxu0
    %1619 = vdwg.mxu0
    %1621 = vrot.lane.b32.xlu0 %v502, 112
    %v1622 = vpop.permute.xlu0 %1621
    %1623 = vrot.lane.b32.xlu0 %v510, 112
    %v1624 = vpop.permute.xlu0 %1623
    %v1626 = vsel %vm513, %v1622, 0
    %v1629 = vsel %vm513, %v1624, 0
    %1631 = vmatprep.subr.bf16.mxu0 0
    %1632 = vmatpush1.bf16.xpose.msra.mxu0 0
    %1633 = vmatprep.subr.bf16.mxu0 0
    %1634 = vmatpush1.bf16.xpose.msra.mxu0 0
    %1635 = vmatprep.subr.bf16.mxu0 0
    %1636 = vmatpush1.bf16.xpose.msra.mxu0 0
    %1637 = vmatprep.subr.bf16.mxu0 0
    %1638 = vmatpush1.bf16.xpose.msra.mxu0 0
    %1639 = vmatprep.subr.bf16.mxu0 0
    %1640 = vmatpush1.bf16.xpose.msra.mxu0 0
    %1641 = vmatprep.subr.bf16.mxu0 0
    %1642 = vmatpush1.bf16.xpose.msra.mxu0 0
    %1643 = vmatprep.subr.bf16.mxu0 0
    %1644 = vmatpush1.bf16.xpose.msra.mxu0 0
    %1645 = vmatprep.subr.bf16.mxu0 0
    %1646 = vmatpush1.bf16.xpose.msra.mxu0 %v1629
    %1647 = vmatprep.subr.bf16.mxu0 0
    %1648 = vmatpush2.bf16.xpose.msra.mxu0 0
    %1649 = vmatprep.subr.bf16.mxu0 0
    %1650 = vmatpush2.bf16.xpose.msra.mxu0 0
    %1651 = vmatprep.subr.bf16.mxu0 0
    %1652 = vmatpush2.bf16.xpose.msra.mxu0 0
    %1653 = vmatprep.subr.bf16.mxu0 0
    %1654 = vmatpush2.bf16.xpose.msra.mxu0 0
    %1655 = vmatprep.subr.bf16.mxu0 0
    %1656 = vmatpush2.bf16.xpose.msra.mxu0 0
    %1657 = vmatprep.subr.bf16.mxu0 0
    %1658 = vmatpush2.bf16.xpose.msra.mxu0 0
    %1659 = vmatprep.subr.bf16.mxu0 0
    %1660 = vmatpush2.bf16.xpose.msra.mxu0 0
    %1661 = vmatprep.subr.bf16.mxu0 0
    %1662 = vmatpush2.bf16.xpose.msra.mxu0 0
    %1663 = vmatprep.mubr.bf16.mxu0 0
    %1664 = vmatmul.mubr.bf16.gmra.mxu0 %v1626
    %v1665 = vpop.f32.mrf.mxu0
    %v1666 = vadd.f32 %v436, %v1665
    %v1667 = vpop.f32.mrf.mxu0
    %v1668 = vpop.f32.mrf.mxu0
    %v1669 = vpop.f32.mrf.mxu0
    %1670 = vdwg.mxu0
    %1672 = vrot.lane.b32.xlu0 %v503, 112
    %v1673 = vpop.permute.xlu0 %1672
    %1674 = vrot.lane.b32.xlu0 %v511, 112
    %v1675 = vpop.permute.xlu0 %1674
    %v1677 = vsel %vm513, %v1673, 0
    %v1680 = vsel %vm513, %v1675, 0
    %1682 = vmatprep.subr.bf16.mxu0 0
    %1683 = vmatpush1.bf16.xpose.msra.mxu0 0
    %1684 = vmatprep.subr.bf16.mxu0 0
    %1685 = vmatpush1.bf16.xpose.msra.mxu0 0
    %1686 = vmatprep.subr.bf16.mxu0 0
    %1687 = vmatpush1.bf16.xpose.msra.mxu0 0
    %1688 = vmatprep.subr.bf16.mxu0 0
    %1689 = vmatpush1.bf16.xpose.msra.mxu0 0
    %1690 = vmatprep.subr.bf16.mxu0 0
    %1691 = vmatpush1.bf16.xpose.msra.mxu0 0
    %1692 = vmatprep.subr.bf16.mxu0 0
    %1693 = vmatpush1.bf16.xpose.msra.mxu0 0
    %1694 = vmatprep.subr.bf16.mxu0 0
    %1695 = vmatpush1.bf16.xpose.msra.mxu0 0
    %1696 = vmatprep.subr.bf16.mxu0 0
    %1697 = vmatpush1.bf16.xpose.msra.mxu0 %v1680
    %1698 = vmatprep.subr.bf16.mxu0 0
    %1699 = vmatpush2.bf16.xpose.msra.mxu0 0
    %1700 = vmatprep.subr.bf16.mxu0 0
    %1701 = vmatpush2.bf16.xpose.msra.mxu0 0
    %1702 = vmatprep.subr.bf16.mxu0 0
    %1703 = vmatpush2.bf16.xpose.msra.mxu0 0
    %1704 = vmatprep.subr.bf16.mxu0 0
    %1705 = vmatpush2.bf16.xpose.msra.mxu0 0
    %1706 = vmatprep.subr.bf16.mxu0 0
    %1707 = vmatpush2.bf16.xpose.msra.mxu0 0
    %1708 = vmatprep.subr.bf16.mxu0 0
    %1709 = vmatpush2.bf16.xpose.msra.mxu0 0
    %1710 = vmatprep.subr.bf16.mxu0 0
    %1711 = vmatpush2.bf16.xpose.msra.mxu0 0
    %1712 = vmatprep.subr.bf16.mxu0 0
    %1713 = vmatpush2.bf16.xpose.msra.mxu0 0
    %1714 = vmatprep.mubr.bf16.mxu0 0
    %1715 = vmatmul.mubr.bf16.gmra.mxu0 %v1677
    %v1716 = vpop.f32.mrf.mxu0
    %v1717 = vadd.f32 %v437, %v1716
    %v1718 = vpop.f32.mrf.mxu0
    %v1719 = vpop.f32.mrf.mxu0
    %v1720 = vpop.f32.mrf.mxu0
    %1721 = vdwg.mxu0
    %1723 = vrot.lane.b32.xlu0 %v504, 112
    %v1724 = vpop.permute.xlu0 %1723
    %1725 = vrot.lane.b32.xlu0 %v512, 112
    %v1726 = vpop.permute.xlu0 %1725
    %v1728 = vsel %vm513, %v1724, 0
    %v1731 = vsel %vm513, %v1726, 0
    %1733 = vmatprep.subr.bf16.mxu0 0
    %1734 = vmatpush1.bf16.xpose.msra.mxu0 0
    %1735 = vmatprep.subr.bf16.mxu0 0
    %1736 = vmatpush1.bf16.xpose.msra.mxu0 0
    %1737 = vmatprep.subr.bf16.mxu0 0
    %1738 = vmatpush1.bf16.xpose.msra.mxu0 0
    %1739 = vmatprep.subr.bf16.mxu0 0
    %1740 = vmatpush1.bf16.xpose.msra.mxu0 0
    %1741 = vmatprep.subr.bf16.mxu0 0
    %1742 = vmatpush1.bf16.xpose.msra.mxu0 0
    %1743 = vmatprep.subr.bf16.mxu0 0
    %1744 = vmatpush1.bf16.xpose.msra.mxu0 0
    %1745 = vmatprep.subr.bf16.mxu0 0
    %1746 = vmatpush1.bf16.xpose.msra.mxu0 0
    %1747 = vmatprep.subr.bf16.mxu0 0
    %1748 = vmatpush1.bf16.xpose.msra.mxu0 %v1731
    %1749 = vmatprep.subr.bf16.mxu0 0
    %1750 = vmatpush2.bf16.xpose.msra.mxu0 0
    %1751 = vmatprep.subr.bf16.mxu0 0
    %1752 = vmatpush2.bf16.xpose.msra.mxu0 0
    %1753 = vmatprep.subr.bf16.mxu0 0
    %1754 = vmatpush2.bf16.xpose.msra.mxu0 0
    %1755 = vmatprep.subr.bf16.mxu0 0
    %1756 = vmatpush2.bf16.xpose.msra.mxu0 0
    %1757 = vmatprep.subr.bf16.mxu0 0
    %1758 = vmatpush2.bf16.xpose.msra.mxu0 0
    %1759 = vmatprep.subr.bf16.mxu0 0
    %1760 = vmatpush2.bf16.xpose.msra.mxu0 0
    %1761 = vmatprep.subr.bf16.mxu0 0
    %1762 = vmatpush2.bf16.xpose.msra.mxu0 0
    %1763 = vmatprep.subr.bf16.mxu0 0
    %1764 = vmatpush2.bf16.xpose.msra.mxu0 0
    %1765 = vmatprep.mubr.bf16.mxu0 0
    %1766 = vmatmul.mubr.bf16.gmra.mxu0 %v1728
    %v1767 = vpop.f32.mrf.mxu0
    %v1768 = vadd.f32 %v438, %v1767
    %v1769 = vpop.f32.mrf.mxu0
    %v1770 = vpop.f32.mrf.mxu0
    %v1771 = vpop.f32.mrf.mxu0
    %1772 = vdwg.mxu0
    %v1773 = vsel %vm882, %v1411, -inf
    %1774 = vmax.xlane.f32.xlu0 %v1773
    %v1775 = vpop.xlane.xlu0 %1774
    %v1776 = vsel %vm882, %v1462, -inf
    %1777 = vmax.xlane.f32.xlu0 %v1776
    %v1778 = vpop.xlane.xlu0 %1777
    %v1779 = vsel %vm882, %v1513, -inf
    %1780 = vmax.xlane.f32.xlu0 %v1779
    %v1781 = vpop.xlane.xlu0 %1780
    %v1782 = vsel %vm882, %v1564, -inf
    %1783 = vmax.xlane.f32.xlu0 %v1782
    %v1784 = vpop.xlane.xlu0 %1783
    %v1785 = vsel %vm882, %v1615, -inf
    %1786 = vmax.xlane.f32.xlu0 %v1785
    %v1787 = vpop.xlane.xlu0 %1786
    %v1788 = vsel %vm882, %v1666, -inf
    %1789 = vmax.xlane.f32.xlu0 %v1788
    %v1790 = vpop.xlane.xlu0 %1789
    %v1791 = vsel %vm882, %v1717, -inf
    %1792 = vmax.xlane.f32.xlu0 %v1791
    %v1793 = vpop.xlane.xlu0 %1792
    %v1794 = vsel %vm882, %v1768, -inf
    %1795 = vmax.xlane.f32.xlu0 %v1794
    %v1796 = vpop.xlane.xlu0 %1795
    %v1797 = vsub.f32 %v1411, %v1775
    %v1798 = vsub.f32 %v1462, %v1778
    %v1799 = vsub.f32 %v1513, %v1781
    %v1800 = vsub.f32 %v1564, %v1784
    %v1801 = vsub.f32 %v1615, %v1787
    %v1802 = vsub.f32 %v1666, %v1790
    %v1803 = vsub.f32 %v1717, %v1793
    %v1804 = vsub.f32 %v1768, %v1796
    %v1805 = vmul.f32 %v1797, 1.442695
    %v1806 = vpow.pop %v1805
    %v1807 = vmul.f32 %v1798, 1.442695
    %v1808 = vpow.pop %v1807
    %v1809 = vmul.f32 %v1799, 1.442695
    %v1810 = vpow.pop %v1809
    %v1811 = vmul.f32 %v1800, 1.442695
    %v1812 = vpow.pop %v1811
    %v1813 = vmul.f32 %v1801, 1.442695
    %v1814 = vpow.pop %v1813
    %v1815 = vmul.f32 %v1802, 1.442695
    %v1816 = vpow.pop %v1815
    %v1817 = vmul.f32 %v1803, 1.442695
    %v1818 = vpow.pop %v1817
    %v1819 = vmul.f32 %v1804, 1.442695
    %v1820 = vpow.pop %v1819
    %v1821 = vsel %vm882, %v1806, 0.0
    %1822 = vadd.xlane.f32.xlu0 %v1821
    %v1823 = vpop.xlane.xlu0 %1822
    %v1824 = vsel %vm882, %v1808, 0.0
    %1825 = vadd.xlane.f32.xlu0 %v1824
    %v1826 = vpop.xlane.xlu0 %1825
    %v1827 = vsel %vm882, %v1810, 0.0
    %1828 = vadd.xlane.f32.xlu0 %v1827
    %v1829 = vpop.xlane.xlu0 %1828
    %v1830 = vsel %vm882, %v1812, 0.0
    %1831 = vadd.xlane.f32.xlu0 %v1830
    %v1832 = vpop.xlane.xlu0 %1831
    %v1833 = vsel %vm882, %v1814, 0.0
    %1834 = vadd.xlane.f32.xlu0 %v1833
    %v1835 = vpop.xlane.xlu0 %1834
    %v1836 = vsel %vm882, %v1816, 0.0
    %1837 = vadd.xlane.f32.xlu0 %v1836
    %v1838 = vpop.xlane.xlu0 %1837
    %v1839 = vsel %vm882, %v1818, 0.0
    %1840 = vadd.xlane.f32.xlu0 %v1839
    %v1841 = vpop.xlane.xlu0 %1840
    %v1842 = vsel %vm882, %v1820, 0.0
    %1843 = vadd.xlane.f32.xlu0 %v1842
    %v1844 = vpop.xlane.xlu0 %1843
    %v1845 = vrcp.pop %v1823
    %v1846 = vrcp.pop %v1826
    %v1847 = vrcp.pop %v1829
    %v1848 = vrcp.pop %v1832
    %v1849 = vrcp.pop %v1835
    %v1850 = vrcp.pop %v1838
    %v1851 = vrcp.pop %v1841
    %v1852 = vrcp.pop %v1844
    %v1853 = vmul.f32 %v1806, %v1845
    %v1854 = vmul.f32 %v1808, %v1846
    %v1855 = vmul.f32 %v1810, %v1847
    %v1856 = vmul.f32 %v1812, %v1848
    %v1857 = vmul.f32 %v1814, %v1849
    %v1858 = vmul.f32 %v1816, %v1850
    %v1859 = vmul.f32 %v1818, %v1851
    %v1860 = vmul.f32 %v1820, %v1852
    %v1861 = vpack.c.bf16 %v1853, %v1853
    %v1862 = vpack.c.bf16 %v1854, %v1854
    %v1863 = vpack.c.bf16 %v1855, %v1855
    %v1864 = vpack.c.bf16 %v1856, %v1856
    %v1865 = vpack.c.bf16 %v1857, %v1857
    %v1866 = vpack.c.bf16 %v1858, %v1858
    %v1867 = vpack.c.bf16 %v1859, %v1859
    %v1868 = vpack.c.bf16 %v1860, %v1860
    %1869 = vrot.lane.b32.xlu0 %v505, 80
    %v1870 = vpop.permute.xlu0 %1869
    %v1873 = vsel %vm513, %v1861, 0
    %1875 = vmatprep.subr.bf16.mxu0 0
    %1876 = vmatpush1.bf16.msra.mxu0 0
    %1877 = vmatprep.subr.bf16.mxu0 0
    %1878 = vmatpush1.bf16.msra.mxu0 0
    %1879 = vmatprep.subr.bf16.mxu0 0
    %1880 = vmatpush1.bf16.msra.mxu0 0
    %1881 = vmatprep.subr.bf16.mxu0 0
    %1882 = vmatpush1.bf16.msra.mxu0 0
    %1883 = vmatprep.subr.bf16.mxu0 0
    %1884 = vmatpush1.bf16.msra.mxu0 0
    %1885 = vmatprep.subr.bf16.mxu0 0
    %1886 = vmatpush1.bf16.msra.mxu0 0
    %1887 = vmatprep.subr.bf16.mxu0 0
    %1888 = vmatpush1.bf16.msra.mxu0 0
    %1889 = vmatprep.subr.bf16.mxu0 0
    %1890 = vmatpush1.bf16.msra.mxu0 %v1870
    %1891 = vmatprep.subr.bf16.mxu0 0
    %1892 = vmatpush2.bf16.msra.mxu0 0
    %1893 = vmatprep.subr.bf16.mxu0 0
    %1894 = vmatpush2.bf16.msra.mxu0 0
    %1895 = vmatprep.subr.bf16.mxu0 0
    %1896 = vmatpush2.bf16.msra.mxu0 0
    %1897 = vmatprep.subr.bf16.mxu0 0
    %1898 = vmatpush2.bf16.msra.mxu0 0
    %1899 = vmatprep.subr.bf16.mxu0 0
    %1900 = vmatpush2.bf16.msra.mxu0 0
    %1901 = vmatprep.subr.bf16.mxu0 0
    %1902 = vmatpush2.bf16.msra.mxu0 0
    %1903 = vmatprep.subr.bf16.mxu0 0
    %1904 = vmatpush2.bf16.msra.mxu0 0
    %1905 = vmatprep.subr.bf16.mxu0 0
    %1906 = vmatpush2.bf16.msra.mxu0 0
    %1907 = vmatprep.mubr.bf16.mxu0 0
    %1908 = vmatmul.mubr.bf16.gmra.mxu0 %v1873
    %v1909 = vpop.f32.mrf.mxu0
    %v1910 = vadd.f32 0.0, %v1909
    %v1911 = vpop.f32.mrf.mxu0
    %v1912 = vpop.f32.mrf.mxu0
    %v1913 = vpop.f32.mrf.mxu0
    %1914 = vdwg.mxu0
    %1915 = vrot.lane.b32.xlu0 %v506, 80
    %v1916 = vpop.permute.xlu0 %1915
    %v1919 = vsel %vm513, %v1862, 0
    %1921 = vmatprep.subr.bf16.mxu0 0
    %1922 = vmatpush1.bf16.msra.mxu0 0
    %1923 = vmatprep.subr.bf16.mxu0 0
    %1924 = vmatpush1.bf16.msra.mxu0 0
    %1925 = vmatprep.subr.bf16.mxu0 0
    %1926 = vmatpush1.bf16.msra.mxu0 0
    %1927 = vmatprep.subr.bf16.mxu0 0
    %1928 = vmatpush1.bf16.msra.mxu0 0
    %1929 = vmatprep.subr.bf16.mxu0 0
    %1930 = vmatpush1.bf16.msra.mxu0 0
    %1931 = vmatprep.subr.bf16.mxu0 0
    %1932 = vmatpush1.bf16.msra.mxu0 0
    %1933 = vmatprep.subr.bf16.mxu0 0
    %1934 = vmatpush1.bf16.msra.mxu0 0
    %1935 = vmatprep.subr.bf16.mxu0 0
    %1936 = vmatpush1.bf16.msra.mxu0 %v1916
    %1937 = vmatprep.subr.bf16.mxu0 0
    %1938 = vmatpush2.bf16.msra.mxu0 0
    %1939 = vmatprep.subr.bf16.mxu0 0
    %1940 = vmatpush2.bf16.msra.mxu0 0
    %1941 = vmatprep.subr.bf16.mxu0 0
    %1942 = vmatpush2.bf16.msra.mxu0 0
    %1943 = vmatprep.subr.bf16.mxu0 0
    %1944 = vmatpush2.bf16.msra.mxu0 0
    %1945 = vmatprep.subr.bf16.mxu0 0
    %1946 = vmatpush2.bf16.msra.mxu0 0
    %1947 = vmatprep.subr.bf16.mxu0 0
    %1948 = vmatpush2.bf16.msra.mxu0 0
    %1949 = vmatprep.subr.bf16.mxu0 0
    %1950 = vmatpush2.bf16.msra.mxu0 0
    %1951 = vmatprep.subr.bf16.mxu0 0
    %1952 = vmatpush2.bf16.msra.mxu0 0
    %1953 = vmatprep.mubr.bf16.mxu0 0
    %1954 = vmatmul.mubr.bf16.gmra.mxu0 %v1919
    %v1955 = vpop.f32.mrf.mxu0
    %v1956 = vadd.f32 0.0, %v1955
    %v1957 = vpop.f32.mrf.mxu0
    %v1958 = vpop.f32.mrf.mxu0
    %v1959 = vpop.f32.mrf.mxu0
    %1960 = vdwg.mxu0
    %1961 = vrot.lane.b32.xlu0 %v507, 80
    %v1962 = vpop.permute.xlu0 %1961
    %v1965 = vsel %vm513, %v1863, 0
    %1967 = vmatprep.subr.bf16.mxu0 0
    %1968 = vmatpush1.bf16.msra.mxu0 0
    %1969 = vmatprep.subr.bf16.mxu0 0
    %1970 = vmatpush1.bf16.msra.mxu0 0
    %1971 = vmatprep.subr.bf16.mxu0 0
    %1972 = vmatpush1.bf16.msra.mxu0 0
    %1973 = vmatprep.subr.bf16.mxu0 0
    %1974 = vmatpush1.bf16.msra.mxu0 0
    %1975 = vmatprep.subr.bf16.mxu0 0
    %1976 = vmatpush1.bf16.msra.mxu0 0
    %1977 = vmatprep.subr.bf16.mxu0 0
    %1978 = vmatpush1.bf16.msra.mxu0 0
    %1979 = vmatprep.subr.bf16.mxu0 0
    %1980 = vmatpush1.bf16.msra.mxu0 0
    %1981 = vmatprep.subr.bf16.mxu0 0
    %1982 = vmatpush1.bf16.msra.mxu0 %v1962
    %1983 = vmatprep.subr.bf16.mxu0 0
    %1984 = vmatpush2.bf16.msra.mxu0 0
    %1985 = vmatprep.subr.bf16.mxu0 0
    %1986 = vmatpush2.bf16.msra.mxu0 0
    %1987 = vmatprep.subr.bf16.mxu0 0
    %1988 = vmatpush2.bf16.msra.mxu0 0
    %1989 = vmatprep.subr.bf16.mxu0 0
    %1990 = vmatpush2.bf16.msra.mxu0 0
    %1991 = vmatprep.subr.bf16.mxu0 0
    %1992 = vmatpush2.bf16.msra.mxu0 0
    %1993 = vmatprep.subr.bf16.mxu0 0
    %1994 = vmatpush2.bf16.msra.mxu0 0
    %1995 = vmatprep.subr.bf16.mxu0 0
    %1996 = vmatpush2.bf16.msra.mxu0 0
    %1997 = vmatprep.subr.bf16.mxu0 0
    %1998 = vmatpush2.bf16.msra.mxu0 0
    %1999 = vmatprep.mubr.bf16.mxu0 0
    %2000 = vmatmul.mubr.bf16.gmra.mxu0 %v1965
    %v2001 = vpop.f32.mrf.mxu0
    %v2002 = vadd.f32 0.0, %v2001
    %v2003 = vpop.f32.mrf.mxu0
    %v2004 = vpop.f32.mrf.mxu0
    %v2005 = vpop.f32.mrf.mxu0
    %2006 = vdwg.mxu0
    %2007 = vrot.lane.b32.xlu0 %v508, 80
    %v2008 = vpop.permute.xlu0 %2007
    %v2011 = vsel %vm513, %v1864, 0
    %2013 = vmatprep.subr.bf16.mxu0 0
    %2014 = vmatpush1.bf16.msra.mxu0 0
    %2015 = vmatprep.subr.bf16.mxu0 0
    %2016 = vmatpush1.bf16.msra.mxu0 0
    %2017 = vmatprep.subr.bf16.mxu0 0
    %2018 = vmatpush1.bf16.msra.mxu0 0
    %2019 = vmatprep.subr.bf16.mxu0 0
    %2020 = vmatpush1.bf16.msra.mxu0 0
    %2021 = vmatprep.subr.bf16.mxu0 0
    %2022 = vmatpush1.bf16.msra.mxu0 0
    %2023 = vmatprep.subr.bf16.mxu0 0
    %2024 = vmatpush1.bf16.msra.mxu0 0
    %2025 = vmatprep.subr.bf16.mxu0 0
    %2026 = vmatpush1.bf16.msra.mxu0 0
    %2027 = vmatprep.subr.bf16.mxu0 0
    %2028 = vmatpush1.bf16.msra.mxu0 %v2008
    %2029 = vmatprep.subr.bf16.mxu0 0
    %2030 = vmatpush2.bf16.msra.mxu0 0
    %2031 = vmatprep.subr.bf16.mxu0 0
    %2032 = vmatpush2.bf16.msra.mxu0 0
    %2033 = vmatprep.subr.bf16.mxu0 0
    %2034 = vmatpush2.bf16.msra.mxu0 0
    %2035 = vmatprep.subr.bf16.mxu0 0
    %2036 = vmatpush2.bf16.msra.mxu0 0
    %2037 = vmatprep.subr.bf16.mxu0 0
    %2038 = vmatpush2.bf16.msra.mxu0 0
    %2039 = vmatprep.subr.bf16.mxu0 0
    %2040 = vmatpush2.bf16.msra.mxu0 0
    %2041 = vmatprep.subr.bf16.mxu0 0
    %2042 = vmatpush2.bf16.msra.mxu0 0
    %2043 = vmatprep.subr.bf16.mxu0 0
    %2044 = vmatpush2.bf16.msra.mxu0 0
    %2045 = vmatprep.mubr.bf16.mxu0 0
    %2046 = vmatmul.mubr.bf16.gmra.mxu0 %v2011
    %v2047 = vpop.f32.mrf.mxu0
    %v2048 = vadd.f32 0.0, %v2047
    %v2049 = vpop.f32.mrf.mxu0
    %v2050 = vpop.f32.mrf.mxu0
    %v2051 = vpop.f32.mrf.mxu0
    %2052 = vdwg.mxu0
    %2053 = vrot.lane.b32.xlu0 %v509, 80
    %v2054 = vpop.permute.xlu0 %2053
    %v2057 = vsel %vm513, %v1865, 0
    %2059 = vmatprep.subr.bf16.mxu0 0
    %2060 = vmatpush1.bf16.msra.mxu0 0
    %2061 = vmatprep.subr.bf16.mxu0 0
    %2062 = vmatpush1.bf16.msra.mxu0 0
    %2063 = vmatprep.subr.bf16.mxu0 0
    %2064 = vmatpush1.bf16.msra.mxu0 0
    %2065 = vmatprep.subr.bf16.mxu0 0
    %2066 = vmatpush1.bf16.msra.mxu0 0
    %2067 = vmatprep.subr.bf16.mxu0 0
    %2068 = vmatpush1.bf16.msra.mxu0 0
    %2069 = vmatprep.subr.bf16.mxu0 0
    %2070 = vmatpush1.bf16.msra.mxu0 0
    %2071 = vmatprep.subr.bf16.mxu0 0
    %2072 = vmatpush1.bf16.msra.mxu0 0
    %2073 = vmatprep.subr.bf16.mxu0 0
    %2074 = vmatpush1.bf16.msra.mxu0 %v2054
    %2075 = vmatprep.subr.bf16.mxu0 0
    %2076 = vmatpush2.bf16.msra.mxu0 0
    %2077 = vmatprep.subr.bf16.mxu0 0
    %2078 = vmatpush2.bf16.msra.mxu0 0
    %2079 = vmatprep.subr.bf16.mxu0 0
    %2080 = vmatpush2.bf16.msra.mxu0 0
    %2081 = vmatprep.subr.bf16.mxu0 0
    %2082 = vmatpush2.bf16.msra.mxu0 0
    %2083 = vmatprep.subr.bf16.mxu0 0
    %2084 = vmatpush2.bf16.msra.mxu0 0
    %2085 = vmatprep.subr.bf16.mxu0 0
    %2086 = vmatpush2.bf16.msra.mxu0 0
    %2087 = vmatprep.subr.bf16.mxu0 0
    %2088 = vmatpush2.bf16.msra.mxu0 0
    %2089 = vmatprep.subr.bf16.mxu0 0
    %2090 = vmatpush2.bf16.msra.mxu0 0
    %2091 = vmatprep.mubr.bf16.mxu0 0
    %2092 = vmatmul.mubr.bf16.gmra.mxu0 %v2057
    %v2093 = vpop.f32.mrf.mxu0
    %v2094 = vadd.f32 0.0, %v2093
    %v2095 = vpop.f32.mrf.mxu0
    %v2096 = vpop.f32.mrf.mxu0
    %v2097 = vpop.f32.mrf.mxu0
    %2098 = vdwg.mxu0
    %2099 = vrot.lane.b32.xlu0 %v510, 80
    %v2100 = vpop.permute.xlu0 %2099
    %v2103 = vsel %vm513, %v1866, 0
    %2105 = vmatprep.subr.bf16.mxu0 0
    %2106 = vmatpush1.bf16.msra.mxu0 0
    %2107 = vmatprep.subr.bf16.mxu0 0
    %2108 = vmatpush1.bf16.msra.mxu0 0
    %2109 = vmatprep.subr.bf16.mxu0 0
    %2110 = vmatpush1.bf16.msra.mxu0 0
    %2111 = vmatprep.subr.bf16.mxu0 0
    %2112 = vmatpush1.bf16.msra.mxu0 0
    %2113 = vmatprep.subr.bf16.mxu0 0
    %2114 = vmatpush1.bf16.msra.mxu0 0
    %2115 = vmatprep.subr.bf16.mxu0 0
    %2116 = vmatpush1.bf16.msra.mxu0 0
    %2117 = vmatprep.subr.bf16.mxu0 0
    %2118 = vmatpush1.bf16.msra.mxu0 0
    %2119 = vmatprep.subr.bf16.mxu0 0
    %2120 = vmatpush1.bf16.msra.mxu0 %v2100
    %2121 = vmatprep.subr.bf16.mxu0 0
    %2122 = vmatpush2.bf16.msra.mxu0 0
    %2123 = vmatprep.subr.bf16.mxu0 0
    %2124 = vmatpush2.bf16.msra.mxu0 0
    %2125 = vmatprep.subr.bf16.mxu0 0
    %2126 = vmatpush2.bf16.msra.mxu0 0
    %2127 = vmatprep.subr.bf16.mxu0 0
    %2128 = vmatpush2.bf16.msra.mxu0 0
    %2129 = vmatprep.subr.bf16.mxu0 0
    %2130 = vmatpush2.bf16.msra.mxu0 0
    %2131 = vmatprep.subr.bf16.mxu0 0
    %2132 = vmatpush2.bf16.msra.mxu0 0
    %2133 = vmatprep.subr.bf16.mxu0 0
    %2134 = vmatpush2.bf16.msra.mxu0 0
    %2135 = vmatprep.subr.bf16.mxu0 0
    %2136 = vmatpush2.bf16.msra.mxu0 0
    %2137 = vmatprep.mubr.bf16.mxu0 0
    %2138 = vmatmul.mubr.bf16.gmra.mxu0 %v2103
    %v2139 = vpop.f32.mrf.mxu0
    %v2140 = vadd.f32 0.0, %v2139
    %v2141 = vpop.f32.mrf.mxu0
    %v2142 = vpop.f32.mrf.mxu0
    %v2143 = vpop.f32.mrf.mxu0
    %2144 = vdwg.mxu0
    %2145 = vrot.lane.b32.xlu0 %v511, 80
    %v2146 = vpop.permute.xlu0 %2145
    %v2149 = vsel %vm513, %v1867, 0
    %2151 = vmatprep.subr.bf16.mxu0 0
    %2152 = vmatpush1.bf16.msra.mxu0 0
    %2153 = vmatprep.subr.bf16.mxu0 0
    %2154 = vmatpush1.bf16.msra.mxu0 0
    %2155 = vmatprep.subr.bf16.mxu0 0
    %2156 = vmatpush1.bf16.msra.mxu0 0
    %2157 = vmatprep.subr.bf16.mxu0 0
    %2158 = vmatpush1.bf16.msra.mxu0 0
    %2159 = vmatprep.subr.bf16.mxu0 0
    %2160 = vmatpush1.bf16.msra.mxu0 0
    %2161 = vmatprep.subr.bf16.mxu0 0
    %2162 = vmatpush1.bf16.msra.mxu0 0
    %2163 = vmatprep.subr.bf16.mxu0 0
    %2164 = vmatpush1.bf16.msra.mxu0 0
    %2165 = vmatprep.subr.bf16.mxu0 0
    %2166 = vmatpush1.bf16.msra.mxu0 %v2146
    %2167 = vmatprep.subr.bf16.mxu0 0
    %2168 = vmatpush2.bf16.msra.mxu0 0
    %2169 = vmatprep.subr.bf16.mxu0 0
    %2170 = vmatpush2.bf16.msra.mxu0 0
    %2171 = vmatprep.subr.bf16.mxu0 0
    %2172 = vmatpush2.bf16.msra.mxu0 0
    %2173 = vmatprep.subr.bf16.mxu0 0
    %2174 = vmatpush2.bf16.msra.mxu0 0
    %2175 = vmatprep.subr.bf16.mxu0 0
    %2176 = vmatpush2.bf16.msra.mxu0 0
    %2177 = vmatprep.subr.bf16.mxu0 0
    %2178 = vmatpush2.bf16.msra.mxu0 0
    %2179 = vmatprep.subr.bf16.mxu0 0
    %2180 = vmatpush2.bf16.msra.mxu0 0
    %2181 = vmatprep.subr.bf16.mxu0 0
    %2182 = vmatpush2.bf16.msra.mxu0 0
    %2183 = vmatprep.mubr.bf16.mxu0 0
    %2184 = vmatmul.mubr.bf16.gmra.mxu0 %v2149
    %v2185 = vpop.f32.mrf.mxu0
    %v2186 = vadd.f32 0.0, %v2185
    %v2187 = vpop.f32.mrf.mxu0
    %v2188 = vpop.f32.mrf.mxu0
    %v2189 = vpop.f32.mrf.mxu0
    %2190 = vdwg.mxu0
    %2191 = vrot.lane.b32.xlu0 %v512, 80
    %v2192 = vpop.permute.xlu0 %2191
    %v2195 = vsel %vm513, %v1868, 0
    %2197 = vmatprep.subr.bf16.mxu0 0
    %2198 = vmatpush1.bf16.msra.mxu0 0
    %2199 = vmatprep.subr.bf16.mxu0 0
    %2200 = vmatpush1.bf16.msra.mxu0 0
    %2201 = vmatprep.subr.bf16.mxu0 0
    %2202 = vmatpush1.bf16.msra.mxu0 0
    %2203 = vmatprep.subr.bf16.mxu0 0
    %2204 = vmatpush1.bf16.msra.mxu0 0
    %2205 = vmatprep.subr.bf16.mxu0 0
    %2206 = vmatpush1.bf16.msra.mxu0 0
    %2207 = vmatprep.subr.bf16.mxu0 0
    %2208 = vmatpush1.bf16.msra.mxu0 0
    %2209 = vmatprep.subr.bf16.mxu0 0
    %2210 = vmatpush1.bf16.msra.mxu0 0
    %2211 = vmatprep.subr.bf16.mxu0 0
    %2212 = vmatpush1.bf16.msra.mxu0 %v2192
    %2213 = vmatprep.subr.bf16.mxu0 0
    %2214 = vmatpush2.bf16.msra.mxu0 0
    %2215 = vmatprep.subr.bf16.mxu0 0
    %2216 = vmatpush2.bf16.msra.mxu0 0
    %2217 = vmatprep.subr.bf16.mxu0 0
    %2218 = vmatpush2.bf16.msra.mxu0 0
    %2219 = vmatprep.subr.bf16.mxu0 0
    %2220 = vmatpush2.bf16.msra.mxu0 0
    %2221 = vmatprep.subr.bf16.mxu0 0
    %2222 = vmatpush2.bf16.msra.mxu0 0
    %2223 = vmatprep.subr.bf16.mxu0 0
    %2224 = vmatpush2.bf16.msra.mxu0 0
    %2225 = vmatprep.subr.bf16.mxu0 0
    %2226 = vmatpush2.bf16.msra.mxu0 0
    %2227 = vmatprep.subr.bf16.mxu0 0
    %2228 = vmatpush2.bf16.msra.mxu0 0
    %2229 = vmatprep.mubr.bf16.mxu0 0
    %2230 = vmatmul.mubr.bf16.gmra.mxu0 %v2195
    %v2231 = vpop.f32.mrf.mxu0
    %v2232 = vadd.f32 0.0, %v2231
    %v2233 = vpop.f32.mrf.mxu0
    %v2234 = vpop.f32.mrf.mxu0
    %v2235 = vpop.f32.mrf.mxu0
    %2236 = vdwg.mxu0
    %v2237 = vpack.c.bf16 %v1910, %v1910
    %v2238 = vpack.c.bf16 %v1956, %v1956
    %v2239 = vpack.c.bf16 %v2002, %v2002
    %v2240 = vpack.c.bf16 %v2048, %v2048
    %v2241 = vpack.c.bf16 %v2094, %v2094
    %v2242 = vpack.c.bf16 %v2140, %v2140
    %v2243 = vpack.c.bf16 %v2186, %v2186
    %v2244 = vpack.c.bf16 %v2232, %v2232
    %s2245 = scalar_lea.vmem [#allocation7], 8
    %v2246 = vld [vmem:[%s2245] sm:$0xf]
    %v2247 = vld [vmem:[%s2245 + $0x4] sm:$0xf]
    %v2256 = vunpack.c.l.b16 %v2237
    %v2257 = vunpack.c.l.b16 %v2238
    %v2258 = vunpack.c.l.b16 %v2239
    %v2259 = vunpack.c.l.b16 %v2240
    %v2260 = vunpack.c.l.b16 %v2241
    %v2261 = vunpack.c.l.b16 %v2242
    %v2262 = vunpack.c.l.b16 %v2243
    %v2263 = vunpack.c.l.b16 %v2244
    %v2264 = vrot.slane %v2257, 7
    %v2265 = vsel %vm355, %v2264, %v2256
    %v2266 = vrot.slane %v2258, 6
    %v2267 = vsel %vm358, %v2266, %v2265
    %v2268 = vrot.slane %v2259, 5
    %v2269 = vsel %vm361, %v2268, %v2267
    %v2270 = vrot.slane %v2260, 4
    %v2271 = vsel %vm364, %v2270, %v2269
    %v2272 = vrot.slane %v2261, 3
    %v2273 = vsel %vm367, %v2272, %v2271
    %v2274 = vrot.slane %v2262, 2
    %v2275 = vsel %vm370, %v2274, %v2273
    %v2276 = vrot.slane %v2263, 1
    %v2277 = vsel %vm373, %v2276, %v2275
    %v2278 = vpack.c.b16 %v2277, %v2277
    %v2281 = vunpack.c.l.b16 %v2246
    %v2282 = vunpack.c.l.b16 %v2247
    %v2283 = vpack.c.b16 %v2282, %v2281
    %v2286 = vsel %vm513, %v2278, 0
    %2288 = vmatprep.subr.bf16.mxu0 0
    %2289 = vmatpush1.bf16.msra.mxu0 0
    %2290 = vmatprep.subr.bf16.mxu0 0
    %2291 = vmatpush1.bf16.msra.mxu0 0
    %2292 = vmatprep.subr.bf16.mxu0 0
    %2293 = vmatpush1.bf16.msra.mxu0 0
    %2294 = vmatprep.subr.bf16.mxu0 0
    %2295 = vmatpush1.bf16.msra.mxu0 0
    %2296 = vmatprep.subr.bf16.mxu0 0
    %2297 = vmatpush1.bf16.msra.mxu0 0
    %2298 = vmatprep.subr.bf16.mxu0 0
    %2299 = vmatpush1.bf16.msra.mxu0 0
    %2300 = vmatprep.subr.bf16.mxu0 0
    %2301 = vmatpush1.bf16.msra.mxu0 0
    %2302 = vmatprep.subr.bf16.mxu0 0
    %2303 = vmatpush1.bf16.msra.mxu0 %v2283
    %2304 = vmatprep.subr.bf16.mxu0 0
    %2305 = vmatpush2.bf16.msra.mxu0 0
    %2306 = vmatprep.subr.bf16.mxu0 0
    %2307 = vmatpush2.bf16.msra.mxu0 0
    %2308 = vmatprep.subr.bf16.mxu0 0
    %2309 = vmatpush2.bf16.msra.mxu0 0
    %2310 = vmatprep.subr.bf16.mxu0 0
    %2311 = vmatpush2.bf16.msra.mxu0 0
    %2312 = vmatprep.subr.bf16.mxu0 0
    %2313 = vmatpush2.bf16.msra.mxu0 0
    %2314 = vmatprep.subr.bf16.mxu0 0
    %2315 = vmatpush2.bf16.msra.mxu0 0
    %2316 = vmatprep.subr.bf16.mxu0 0
    %2317 = vmatpush2.bf16.msra.mxu0 0
    %2318 = vmatprep.subr.bf16.mxu0 0
    %2319 = vmatpush2.bf16.msra.mxu0 0
    %2320 = vmatprep.mubr.bf16.mxu0 0
    %2321 = vmatmul.mubr.bf16.gmra.mxu0 %v2286
    %v2322 = vpop.f32.mrf.mxu0
    %v2323 = vadd.f32 0.0, %v2322
    %v2324 = vpop.f32.mrf.mxu0
    %v2325 = vpop.f32.mrf.mxu0
    %v2326 = vpop.f32.mrf.mxu0
    %2327 = vdwg.mxu0
    %v2336 = vunpack.c.l.b16 %v1355
    %v2337 = vunpack.c.l.b16 %v1356
    %v2338 = vunpack.c.l.b16 %v1357
    %v2339 = vunpack.c.l.b16 %v1358
    %v2340 = vunpack.c.l.b16 %v1359
    %v2341 = vunpack.c.l.b16 %v1360
    %v2342 = vunpack.c.l.b16 %v1361
    %v2343 = vunpack.c.l.b16 %v1362
    %v2344 = vrot.slane %v2337, 7
    %v2345 = vsel %vm355, %v2344, %v2336
    %v2346 = vrot.slane %v2338, 6
    %v2347 = vsel %vm358, %v2346, %v2345
    %v2348 = vrot.slane %v2339, 5
    %v2349 = vsel %vm361, %v2348, %v2347
    %v2350 = vrot.slane %v2340, 4
    %v2351 = vsel %vm364, %v2350, %v2349
    %v2352 = vrot.slane %v2341, 3
    %v2353 = vsel %vm367, %v2352, %v2351
    %v2354 = vrot.slane %v2342, 2
    %v2355 = vsel %vm370, %v2354, %v2353
    %v2356 = vrot.slane %v2343, 1
    %v2357 = vsel %vm373, %v2356, %v2355
    %v2358 = vpack.c.b16 %v2357, %v2357
    %v2361 = vunpack.c.l.b16 %v1363
    %v2362 = vunpack.c.l.b16 %v1364
    %v2363 = vpack.c.b16 %v2362, %v2361
    %v2366 = vsel %vm513, %v2358, 0
    %2368 = vmatprep.subr.bf16.mxu0 0
    %2369 = vmatpush1.bf16.msra.mxu0 0
    %2370 = vmatprep.subr.bf16.mxu0 0
    %2371 = vmatpush1.bf16.msra.mxu0 0
    %2372 = vmatprep.subr.bf16.mxu0 0
    %2373 = vmatpush1.bf16.msra.mxu0 0
    %2374 = vmatprep.subr.bf16.mxu0 0
    %2375 = vmatpush1.bf16.msra.mxu0 0
    %2376 = vmatprep.subr.bf16.mxu0 0
    %2377 = vmatpush1.bf16.msra.mxu0 0
    %2378 = vmatprep.subr.bf16.mxu0 0
    %2379 = vmatpush1.bf16.msra.mxu0 0
    %2380 = vmatprep.subr.bf16.mxu0 0
    %2381 = vmatpush1.bf16.msra.mxu0 0
    %2382 = vmatprep.subr.bf16.mxu0 0
    %2383 = vmatpush1.bf16.msra.mxu0 %v2363
    %2384 = vmatprep.subr.bf16.mxu0 0
    %2385 = vmatpush2.bf16.msra.mxu0 0
    %2386 = vmatprep.subr.bf16.mxu0 0
    %2387 = vmatpush2.bf16.msra.mxu0 0
    %2388 = vmatprep.subr.bf16.mxu0 0
    %2389 = vmatpush2.bf16.msra.mxu0 0
    %2390 = vmatprep.subr.bf16.mxu0 0
    %2391 = vmatpush2.bf16.msra.mxu0 0
    %2392 = vmatprep.subr.bf16.mxu0 0
    %2393 = vmatpush2.bf16.msra.mxu0 0
    %2394 = vmatprep.subr.bf16.mxu0 0
    %2395 = vmatpush2.bf16.msra.mxu0 0
    %2396 = vmatprep.subr.bf16.mxu0 0
    %2397 = vmatpush2.bf16.msra.mxu0 0
    %2398 = vmatprep.subr.bf16.mxu0 0
    %2399 = vmatpush2.bf16.msra.mxu0 0
    %2400 = vmatprep.mubr.bf16.mxu0 0
    %2401 = vmatmul.mubr.bf16.gmra.mxu0 %v2366
    %v2402 = vpop.f32.mrf.mxu0
    %v2403 = vadd.f32 %v2323, %v2402
    %v2404 = vpop.f32.mrf.mxu0
    %v2405 = vpop.f32.mrf.mxu0
    %v2406 = vpop.f32.mrf.mxu0
    %2407 = vdwg.mxu0
    %v2408 = vld [vmem:[%s8] sm:$0x1]
    %v2410 = vlaneseq
    %v2411 = vshrl.u32 %v2410, 7
    %v2412 = vsub.s32 0, %v2411
    %v2413 = vrot.slane %v2408, %v2412
    %v2415 = vadd.f32 %v2403, %v2413
    %v2417 = vrot.slane %v2415, 1
    %v2418 = vrot.slane %v2415, 2
    %v2419 = vrot.slane %v2415, 3
    %v2420 = vrot.slane %v2415, 4
    %v2421 = vrot.slane %v2415, 5
    %v2422 = vrot.slane %v2415, 6
    %v2423 = vrot.slane %v2415, 7
    %v2432 = vadd.f32 %v150, %v2415
    %v2433 = vadd.f32 %v152, %v2417
    %v2434 = vadd.f32 %v154, %v2418
    %v2435 = vadd.f32 %v156, %v2419
    %v2436 = vadd.f32 %v158, %v2420
    %v2437 = vadd.f32 %v160, %v2421
    %v2438 = vadd.f32 %v162, %v2422
    %v2439 = vadd.f32 %v164, %v2423
    %v2440 = vld [vmem:[%s9] sm:$0x1]
    %v2441 = vld [vmem:[%s10] sm:$0x1]
    %v2450 = vrot.slane %v2433, 7
    %v2451 = vsel %vm355, %v2450, %v2432
    %v2452 = vrot.slane %v2434, 6
    %v2453 = vsel %vm358, %v2452, %v2451
    %v2454 = vrot.slane %v2435, 5
    %v2455 = vsel %vm361, %v2454, %v2453
    %v2456 = vrot.slane %v2436, 4
    %v2457 = vsel %vm364, %v2456, %v2455
    %v2458 = vrot.slane %v2437, 3
    %v2459 = vsel %vm367, %v2458, %v2457
    %v2460 = vrot.slane %v2438, 2
    %v2461 = vsel %vm370, %v2460, %v2459
    %v2462 = vrot.slane %v2439, 1
    %v2463 = vsel %vm373, %v2462, %v2461
    %v2465 = vsel %vm197, %v2463, 0.0
    %2466 = vadd.xlane.f32.xlu0 %v2465
    %v2467 = vpop.xlane.xlu0 %2466
    %v2468 = vrcp.pop 32.0
    %v2469 = vmul.f32 %v2467, %v2468
    %v2471 = vrot.slane %v2469, 1
    %v2472 = vrot.slane %v2469, 2
    %v2473 = vrot.slane %v2469, 3
    %v2474 = vrot.slane %v2469, 4
    %v2475 = vrot.slane %v2469, 5
    %v2476 = vrot.slane %v2469, 6
    %v2477 = vrot.slane %v2469, 7
    %v2486 = vsub.f32 %v2432, %v2469
    %v2487 = vsub.f32 %v2433, %v2471
    %v2488 = vsub.f32 %v2434, %v2472
    %v2489 = vsub.f32 %v2435, %v2473
    %v2490 = vsub.f32 %v2436, %v2474
    %v2491 = vsub.f32 %v2437, %v2475
    %v2492 = vsub.f32 %v2438, %v2476
    %v2493 = vsub.f32 %v2439, %v2477
    %v2494 = vmul.f32 %v2486, %v2486
    %v2495 = vmul.f32 %v2487, %v2487
    %v2496 = vmul.f32 %v2488, %v2488
    %v2497 = vmul.f32 %v2489, %v2489
    %v2498 = vmul.f32 %v2490, %v2490
    %v2499 = vmul.f32 %v2491, %v2491
    %v2500 = vmul.f32 %v2492, %v2492
    %v2501 = vmul.f32 %v2493, %v2493
    %v2510 = vrot.slane %v2495, 7
    %v2511 = vsel %vm355, %v2510, %v2494
    %v2512 = vrot.slane %v2496, 6
    %v2513 = vsel %vm358, %v2512, %v2511
    %v2514 = vrot.slane %v2497, 5
    %v2515 = vsel %vm361, %v2514, %v2513
    %v2516 = vrot.slane %v2498, 4
    %v2517 = vsel %vm364, %v2516, %v2515
    %v2518 = vrot.slane %v2499, 3
    %v2519 = vsel %vm367, %v2518, %v2517
    %v2520 = vrot.slane %v2500, 2
    %v2521 = vsel %vm370, %v2520, %v2519
    %v2522 = vrot.slane %v2501, 1
    %v2523 = vsel %vm373, %v2522, %v2521
    %v2525 = vsel %vm197, %v2523, 0.0
    %2526 = vadd.xlane.f32.xlu0 %v2525
    %v2527 = vpop.xlane.xlu0 %2526
    %v2528 = vmul.f32 %v2527, %v2468
    %v2529 = vadd.f32 %v2528, 1e-05
    %v2530 = vrsqrt.pop %v2529
    %v2532 = vrot.slane %v2530, 1
    %v2533 = vrot.slane %v2530, 2
    %v2534 = vrot.slane %v2530, 3
    %v2535 = vrot.slane %v2530, 4
    %v2536 = vrot.slane %v2530, 5
    %v2537 = vrot.slane %v2530, 6
    %v2538 = vrot.slane %v2530, 7
    %v2547 = vmul.f32 %v2486, %v2530
    %v2548 = vmul.f32 %v2487, %v2532
    %v2549 = vmul.f32 %v2488, %v2533
    %v2550 = vmul.f32 %v2489, %v2534
    %v2551 = vmul.f32 %v2490, %v2535
    %v2552 = vmul.f32 %v2491, %v2536
    %v2553 = vmul.f32 %v2492, %v2537
    %v2554 = vmul.f32 %v2493, %v2538
    %v2556 = vlaneseq
    %v2557 = vshrl.u32 %v2556, 7
    %v2558 = vsub.s32 0, %v2557
    %v2559 = vrot.slane %v2440, %v2558
    %v2561 = vmul.f32 %v2547, %v2559
    %v2562 = vmul.f32 %v2548, %v2559
    %v2563 = vmul.f32 %v2549, %v2559
    %v2564 = vmul.f32 %v2550, %v2559
    %v2565 = vmul.f32 %v2551, %v2559
    %v2566 = vmul.f32 %v2552, %v2559
    %v2567 = vmul.f32 %v2553, %v2559
    %v2568 = vmul.f32 %v2554, %v2559
    %v2570 = vlaneseq
    %v2571 = vshrl.u32 %v2570, 7
    %v2572 = vsub.s32 0, %v2571
    %v2573 = vrot.slane %v2441, %v2572
    %v2575 = vadd.f32 %v2561, %v2573
    %v2576 = vadd.f32 %v2562, %v2573
    %v2577 = vadd.f32 %v2563, %v2573
    %v2578 = vadd.f32 %v2564, %v2573
    %v2579 = vadd.f32 %v2565, %v2573
    %v2580 = vadd.f32 %v2566, %v2573
    %v2581 = vadd.f32 %v2567, %v2573
    %v2582 = vadd.f32 %v2568, %v2573
    %v2583 = vpack.c.bf16 %v2575, %v2575
    %v2584 = vpack.c.bf16 %v2576, %v2576
    %v2585 = vpack.c.bf16 %v2577, %v2577
    %v2586 = vpack.c.bf16 %v2578, %v2578
    %v2587 = vpack.c.bf16 %v2579, %v2579
    %v2588 = vpack.c.bf16 %v2580, %v2580
    %v2589 = vpack.c.bf16 %v2581, %v2581
    %v2590 = vpack.c.bf16 %v2582, %v2582
    %v2591 = vld [vmem:[#allocation8] sm:$0xf]
    %v2592 = vld [vmem:[#allocation8 + $0x4] sm:$0xf]
    %v2593 = vld [vmem:[#allocation8 + $0x8] sm:$0xf]
    %v2594 = vld [vmem:[#allocation8 + $0xc] sm:$0xf]
    %v2595 = vld [vmem:[%s12] sm:$0x1]
    %v2597 = vlaneseq
    %v2598 = vshrl.u32 %v2597, 7
    %v2599 = vsub.s32 0, %v2598
    %v2600 = vrot.slane %v2595, %v2599
    %v2610 = vunpack.c.l.b16 %v2583
    %v2611 = vunpack.c.l.b16 %v2584
    %v2612 = vunpack.c.l.b16 %v2585
    %v2613 = vunpack.c.l.b16 %v2586
    %v2614 = vunpack.c.l.b16 %v2587
    %v2615 = vunpack.c.l.b16 %v2588
    %v2616 = vunpack.c.l.b16 %v2589
    %v2617 = vunpack.c.l.b16 %v2590
    %v2618 = vrot.slane %v2611, 7
    %v2619 = vsel %vm355, %v2618, %v2610
    %v2620 = vrot.slane %v2612, 6
    %v2621 = vsel %vm358, %v2620, %v2619
    %v2622 = vrot.slane %v2613, 5
    %v2623 = vsel %vm361, %v2622, %v2621
    %v2624 = vrot.slane %v2614, 4
    %v2625 = vsel %vm364, %v2624, %v2623
    %v2626 = vrot.slane %v2615, 3
    %v2627 = vsel %vm367, %v2626, %v2625
    %v2628 = vrot.slane %v2616, 2
    %v2629 = vsel %vm370, %v2628, %v2627
    %v2630 = vrot.slane %v2617, 1
    %v2631 = vsel %vm373, %v2630, %v2629
    %v2632 = vpack.c.b16 %v2631, %v2631
    %v2637 = vunpack.c.l.b16 %v2591
    %v2638 = vunpack.c.l.b16 %v2592
    %v2639 = vunpack.c.l.b16 %v2593
    %v2640 = vunpack.c.l.b16 %v2594
    %v2641 = vpack.c.b16 %v2638, %v2637
    %v2642 = vpack.c.b16 %v2640, %v2639
    %v2646 = vsel %vm197, %v2632, 0
    %2648 = vmatprep.subr.bf16.mxu0 0
    %2649 = vmatpush1.bf16.msra.mxu0 0
    %2650 = vmatprep.subr.bf16.mxu0 0
    %2651 = vmatpush1.bf16.msra.mxu0 0
    %2652 = vmatprep.subr.bf16.mxu0 0
    %2653 = vmatpush1.bf16.msra.mxu0 0
    %2654 = vmatprep.subr.bf16.mxu0 0
    %2655 = vmatpush1.bf16.msra.mxu0 0
    %2656 = vmatprep.subr.bf16.mxu0 0
    %2657 = vmatpush1.bf16.msra.mxu0 0
    %2658 = vmatprep.subr.bf16.mxu0 0
    %2659 = vmatpush1.bf16.msra.mxu0 0
    %2660 = vmatprep.subr.bf16.mxu0 0
    %2661 = vmatpush1.bf16.msra.mxu0 %v2642
    %2662 = vmatprep.subr.bf16.mxu0 0
    %2663 = vmatpush1.bf16.msra.mxu0 %v2641
    %2664 = vmatprep.subr.bf16.mxu0 0
    %2665 = vmatpush2.bf16.msra.mxu0 0
    %2666 = vmatprep.subr.bf16.mxu0 0
    %2667 = vmatpush2.bf16.msra.mxu0 0
    %2668 = vmatprep.subr.bf16.mxu0 0
    %2669 = vmatpush2.bf16.msra.mxu0 0
    %2670 = vmatprep.subr.bf16.mxu0 0
    %2671 = vmatpush2.bf16.msra.mxu0 0
    %2672 = vmatprep.subr.bf16.mxu0 0
    %2673 = vmatpush2.bf16.msra.mxu0 0
    %2674 = vmatprep.subr.bf16.mxu0 0
    %2675 = vmatpush2.bf16.msra.mxu0 0
    %2676 = vmatprep.subr.bf16.mxu0 0
    %2677 = vmatpush2.bf16.msra.mxu0 0
    %2678 = vmatprep.subr.bf16.mxu0 0
    %2679 = vmatpush2.bf16.msra.mxu0 0
    %2680 = vmatprep.mubr.bf16.mxu0 0
    %2681 = vmatmul.mubr.bf16.gmra.mxu0 %v2646
    %v2682 = vpop.f32.mrf.mxu0
    %v2683 = vadd.f32 %v2600, %v2682
    %v2684 = vpop.f32.mrf.mxu0
    %v2685 = vpop.f32.mrf.mxu0
    %v2686 = vpop.f32.mrf.mxu0
    %2687 = vdwg.mxu0
    %v2688 = vmax.f32 %v2683, 0.0
    %v2689 = vpack.c.bf16 %v2688, %v2688
    %v2690 = vld [vmem:[%s13] sm:$0xf]
    %v2691 = vld [vmem:[%s13 + $0x4] sm:$0xf]
    %v2692 = vld [vmem:[%s13 + $0x8] sm:$0xf]
    %v2693 = vld [vmem:[%s13 + $0xc] sm:$0xf]
    %v2694 = vld [vmem:[%s13 + $0x10] sm:$0xf]
    %v2695 = vld [vmem:[%s13 + $0x14] sm:$0xf]
    %v2696 = vld [vmem:[%s13 + $0x18] sm:$0xf]
    %v2697 = vld [vmem:[%s13 + $0x1c] sm:$0xf]
    %v2698 = vld [vmem:[%s14] sm:$0x1]
    %v2700 = vlaneseq
    %v2701 = vshrl.u32 %v2700, 7
    %v2702 = vsub.s32 0, %v2701
    %v2703 = vrot.slane %v2698, %v2702
    %v2713 = vunpack.c.l.b16 %v2690
    %v2714 = vunpack.c.l.b16 %v2691
    %v2715 = vunpack.c.l.b16 %v2692
    %v2716 = vunpack.c.l.b16 %v2693
    %v2717 = vunpack.c.l.b16 %v2694
    %v2718 = vunpack.c.l.b16 %v2695
    %v2719 = vunpack.c.l.b16 %v2696
    %v2720 = vunpack.c.l.b16 %v2697
    %v2721 = vpack.c.b16 %v2714, %v2713
    %v2722 = vpack.c.b16 %v2716, %v2715
    %v2723 = vpack.c.b16 %v2718, %v2717
    %v2724 = vpack.c.b16 %v2720, %v2719
    %vm2729 = vcmask 523264
    %v2731 = vsel %vm2729, %v2689, 0
    %2733 = vmatprep.subr.bf16.mxu0 0
    %2734 = vmatpush1.bf16.msra.mxu0 0
    %2735 = vmatprep.subr.bf16.mxu0 0
    %2736 = vmatpush1.bf16.msra.mxu0 0
    %2737 = vmatprep.subr.bf16.mxu0 0
    %2738 = vmatpush1.bf16.msra.mxu0 0
    %2739 = vmatprep.subr.bf16.mxu0 0
    %2740 = vmatpush1.bf16.msra.mxu0 0
    %2741 = vmatprep.subr.bf16.mxu0 0
    %2742 = vmatpush1.bf16.msra.mxu0 %v2724
    %2743 = vmatprep.subr.bf16.mxu0 0
    %2744 = vmatpush1.bf16.msra.mxu0 %v2723
    %2745 = vmatprep.subr.bf16.mxu0 0
    %2746 = vmatpush1.bf16.msra.mxu0 %v2722
    %2747 = vmatprep.subr.bf16.mxu0 0
    %2748 = vmatpush1.bf16.msra.mxu0 %v2721
    %2749 = vmatprep.subr.bf16.mxu0 0
    %2750 = vmatpush2.bf16.msra.mxu0 0
    %2751 = vmatprep.subr.bf16.mxu0 0
    %2752 = vmatpush2.bf16.msra.mxu0 0
    %2753 = vmatprep.subr.bf16.mxu0 0
    %2754 = vmatpush2.bf16.msra.mxu0 0
    %2755 = vmatprep.subr.bf16.mxu0 0
    %2756 = vmatpush2.bf16.msra.mxu0 0
    %2757 = vmatprep.subr.bf16.mxu0 0
    %2758 = vmatpush2.bf16.msra.mxu0 0
    %2759 = vmatprep.subr.bf16.mxu0 0
    %2760 = vmatpush2.bf16.msra.mxu0 0
    %2761 = vmatprep.subr.bf16.mxu0 0
    %2762 = vmatpush2.bf16.msra.mxu0 0
    %2763 = vmatprep.subr.bf16.mxu0 0
    %2764 = vmatpush2.bf16.msra.mxu0 0
    %2765 = vmatprep.mubr.bf16.mxu0 0
    %2766 = vmatmul.mubr.bf16.gmra.mxu0 %v2731
    %v2767 = vpop.f32.mrf.mxu0
    %v2768 = vadd.f32 %v2703, %v2767
    %v2769 = vpop.f32.mrf.mxu0
    %v2770 = vpop.f32.mrf.mxu0
    %v2771 = vpop.f32.mrf.mxu0
    %2772 = vdwg.mxu0
    %v2774 = vrot.slane %v2768, 1
    %v2775 = vrot.slane %v2768, 2
    %v2776 = vrot.slane %v2768, 3
    %v2777 = vrot.slane %v2768, 4
    %v2778 = vrot.slane %v2768, 5
    %v2779 = vrot.slane %v2768, 6
    %v2780 = vrot.slane %v2768, 7
    %v2789 = vadd.f32 %v2575, %v2768
    %v2790 = vadd.f32 %v2576, %v2774
    %v2791 = vadd.f32 %v2577, %v2775
    %v2792 = vadd.f32 %v2578, %v2776
    %v2793 = vadd.f32 %v2579, %v2777
    %v2794 = vadd.f32 %v2580, %v2778
    %v2795 = vadd.f32 %v2581, %v2779
    %v2796 = vadd.f32 %v2582, %v2780
    %v2797 = vld [vmem:[%s15] sm:$0x1]
    %v2798 = vld [vmem:[%s16] sm:$0x1]
    %v2807 = vrot.slane %v2790, 7
    %v2808 = vsel %vm355, %v2807, %v2789
    %v2809 = vrot.slane %v2791, 6
    %v2810 = vsel %vm358, %v2809, %v2808
    %v2811 = vrot.slane %v2792, 5
    %v2812 = vsel %vm361, %v2811, %v2810
    %v2813 = vrot.slane %v2793, 4
    %v2814 = vsel %vm364, %v2813, %v2812
    %v2815 = vrot.slane %v2794, 3
    %v2816 = vsel %vm367, %v2815, %v2814
    %v2817 = vrot.slane %v2795, 2
    %v2818 = vsel %vm370, %v2817, %v2816
    %v2819 = vrot.slane %v2796, 1
    %v2820 = vsel %vm373, %v2819, %v2818
    %v2822 = vsel %vm197, %v2820, 0.0
    %2823 = vadd.xlane.f32.xlu0 %v2822
    %v2824 = vpop.xlane.xlu0 %2823
    %v2825 = vmul.f32 %v2824, %v2468
    %v2827 = vrot.slane %v2825, 1
    %v2828 = vrot.slane %v2825, 2
    %v2829 = vrot.slane %v2825, 3
    %v2830 = vrot.slane %v2825, 4
    %v2831 = vrot.slane %v2825, 5
    %v2832 = vrot.slane %v2825, 6
    %v2833 = vrot.slane %v2825, 7
    %v2842 = vsub.f32 %v2789, %v2825
    %v2843 = vsub.f32 %v2790, %v2827
    %v2844 = vsub.f32 %v2791, %v2828
    %v2845 = vsub.f32 %v2792, %v2829
    %v2846 = vsub.f32 %v2793, %v2830
    %v2847 = vsub.f32 %v2794, %v2831
    %v2848 = vsub.f32 %v2795, %v2832
    %v2849 = vsub.f32 %v2796, %v2833
    %v2850 = vmul.f32 %v2842, %v2842
    %v2851 = vmul.f32 %v2843, %v2843
    %v2852 = vmul.f32 %v2844, %v2844
    %v2853 = vmul.f32 %v2845, %v2845
    %v2854 = vmul.f32 %v2846, %v2846
    %v2855 = vmul.f32 %v2847, %v2847
    %v2856 = vmul.f32 %v2848, %v2848
    %v2857 = vmul.f32 %v2849, %v2849
    %v2866 = vrot.slane %v2851, 7
    %v2867 = vsel %vm355, %v2866, %v2850
    %v2868 = vrot.slane %v2852, 6
    %v2869 = vsel %vm358, %v2868, %v2867
    %v2870 = vrot.slane %v2853, 5
    %v2871 = vsel %vm361, %v2870, %v2869
    %v2872 = vrot.slane %v2854, 4
    %v2873 = vsel %vm364, %v2872, %v2871
    %v2874 = vrot.slane %v2855, 3
    %v2875 = vsel %vm367, %v2874, %v2873
    %v2876 = vrot.slane %v2856, 2
    %v2877 = vsel %vm370, %v2876, %v2875
    %v2878 = vrot.slane %v2857, 1
    %v2879 = vsel %vm373, %v2878, %v2877
    %v2881 = vsel %vm197, %v2879, 0.0
    %2882 = vadd.xlane.f32.xlu0 %v2881
    %v2883 = vpop.xlane.xlu0 %2882
    %v2884 = vmul.f32 %v2883, %v2468
    %v2885 = vadd.f32 %v2884, 1e-05
    %v2886 = vrsqrt.pop %v2885
    %v2888 = vrot.slane %v2886, 1
    %v2889 = vrot.slane %v2886, 2
    %v2890 = vrot.slane %v2886, 3
    %v2891 = vrot.slane %v2886, 4
    %v2892 = vrot.slane %v2886, 5
    %v2893 = vrot.slane %v2886, 6
    %v2894 = vrot.slane %v2886, 7
    %v2903 = vmul.f32 %v2842, %v2886
    %v2904 = vmul.f32 %v2843, %v2888
    %v2905 = vmul.f32 %v2844, %v2889
    %v2906 = vmul.f32 %v2845, %v2890
    %v2907 = vmul.f32 %v2846, %v2891
    %v2908 = vmul.f32 %v2847, %v2892
    %v2909 = vmul.f32 %v2848, %v2893
    %v2910 = vmul.f32 %v2849, %v2894
    %v2912 = vlaneseq
    %v2913 = vshrl.u32 %v2912, 7
    %v2914 = vsub.s32 0, %v2913
    %v2915 = vrot.slane %v2797, %v2914
    %v2917 = vmul.f32 %v2903, %v2915
    %v2918 = vmul.f32 %v2904, %v2915
    %v2919 = vmul.f32 %v2905, %v2915
    %v2920 = vmul.f32 %v2906, %v2915
    %v2921 = vmul.f32 %v2907, %v2915
    %v2922 = vmul.f32 %v2908, %v2915
    %v2923 = vmul.f32 %v2909, %v2915
    %v2924 = vmul.f32 %v2910, %v2915
    %v2926 = vlaneseq
    %v2927 = vshrl.u32 %v2926, 7
    %v2928 = vsub.s32 0, %v2927
    %v2929 = vrot.slane %v2798, %v2928
    %v2931 = vadd.f32 %v2917, %v2929
    %v2932 = vadd.f32 %v2918, %v2929
    %v2933 = vadd.f32 %v2919, %v2929
    %v2934 = vadd.f32 %v2920, %v2929
    %v2935 = vadd.f32 %v2921, %v2929
    %v2936 = vadd.f32 %v2922, %v2929
    %v2937 = vadd.f32 %v2923, %v2929
    %v2938 = vadd.f32 %v2924, %v2929
    %v2939 = vpack.c.bf16 %v2931, %v2931
    %v2940 = vpack.c.bf16 %v2932, %v2932
    %v2941 = vpack.c.bf16 %v2933, %v2933
    %v2942 = vpack.c.bf16 %v2934, %v2934
    %v2943 = vpack.c.bf16 %v2935, %v2935
    %v2944 = vpack.c.bf16 %v2936, %v2936
    %v2945 = vpack.c.bf16 %v2937, %v2937
    %v2946 = vpack.c.bf16 %v2938, %v2938
    %v2947 = vld [vmem:[#allocation10] sm:$0xf]
    %v2948 = vld [vmem:[#allocation10 + $0x4] sm:$0xf]
    %v2949 = vld [vmem:[#allocation10 + $0x8] sm:$0xf]
    %v2950 = vld [vmem:[#allocation10 + $0xc] sm:$0xf]
    %v2951 = vld [vmem:[%s18] sm:$0x1]
    %v2953 = vlaneseq
    %v2954 = vshrl.u32 %v2953, 7
    %v2955 = vsub.s32 0, %v2954
    %v2956 = vrot.slane %v2951, %v2955
    %v2966 = vunpack.c.l.b16 %v2939
    %v2967 = vunpack.c.l.b16 %v2940
    %v2968 = vunpack.c.l.b16 %v2941
    %v2969 = vunpack.c.l.b16 %v2942
    %v2970 = vunpack.c.l.b16 %v2943
    %v2971 = vunpack.c.l.b16 %v2944
    %v2972 = vunpack.c.l.b16 %v2945
    %v2973 = vunpack.c.l.b16 %v2946
    %v2974 = vrot.slane %v2967, 7
    %v2975 = vsel %vm355, %v2974, %v2966
    %v2976 = vrot.slane %v2968, 6
    %v2977 = vsel %vm358, %v2976, %v2975
    %v2978 = vrot.slane %v2969, 5
    %v2979 = vsel %vm361, %v2978, %v2977
    %v2980 = vrot.slane %v2970, 4
    %v2981 = vsel %vm364, %v2980, %v2979
    %v2982 = vrot.slane %v2971, 3
    %v2983 = vsel %vm367, %v2982, %v2981
    %v2984 = vrot.slane %v2972, 2
    %v2985 = vsel %vm370, %v2984, %v2983
    %v2986 = vrot.slane %v2973, 1
    %v2987 = vsel %vm373, %v2986, %v2985
    %v2988 = vpack.c.b16 %v2987, %v2987
    %v2993 = vunpack.c.l.b16 %v2947
    %v2994 = vunpack.c.l.b16 %v2948
    %v2995 = vunpack.c.l.b16 %v2949
    %v2996 = vunpack.c.l.b16 %v2950
    %v2997 = vpack.c.b16 %v2994, %v2993
    %v2998 = vpack.c.b16 %v2996, %v2995
    %v3002 = vsel %vm197, %v2988, 0
    %3004 = vmatprep.subr.bf16.mxu0 0
    %3005 = vmatpush1.bf16.msra.mxu0 0
    %3006 = vmatprep.subr.bf16.mxu0 0
    %3007 = vmatpush1.bf16.msra.mxu0 0
    %3008 = vmatprep.subr.bf16.mxu0 0
    %3009 = vmatpush1.bf16.msra.mxu0 0
    %3010 = vmatprep.subr.bf16.mxu0 0
    %3011 = vmatpush1.bf16.msra.mxu0 0
    %3012 = vmatprep.subr.bf16.mxu0 0
    %3013 = vmatpush1.bf16.msra.mxu0 0
    %3014 = vmatprep.subr.bf16.mxu0 0
    %3015 = vmatpush1.bf16.msra.mxu0 0
    %3016 = vmatprep.subr.bf16.mxu0 0
    %3017 = vmatpush1.bf16.msra.mxu0 %v2998
    %3018 = vmatprep.subr.bf16.mxu0 0
    %3019 = vmatpush1.bf16.msra.mxu0 %v2997
    %3020 = vmatprep.subr.bf16.mxu0 0
    %3021 = vmatpush2.bf16.msra.mxu0 0
    %3022 = vmatprep.subr.bf16.mxu0 0
    %3023 = vmatpush2.bf16.msra.mxu0 0
    %3024 = vmatprep.subr.bf16.mxu0 0
    %3025 = vmatpush2.bf16.msra.mxu0 0
    %3026 = vmatprep.subr.bf16.mxu0 0
    %3027 = vmatpush2.bf16.msra.mxu0 0
    %3028 = vmatprep.subr.bf16.mxu0 0
    %3029 = vmatpush2.bf16.msra.mxu0 0
    %3030 = vmatprep.subr.bf16.mxu0 0
    %3031 = vmatpush2.bf16.msra.mxu0 0
    %3032 = vmatprep.subr.bf16.mxu0 0
    %3033 = vmatpush2.bf16.msra.mxu0 0
    %3034 = vmatprep.subr.bf16.mxu0 0
    %3035 = vmatpush2.bf16.msra.mxu0 0
    %3036 = vmatprep.mubr.bf16.mxu0 0
    %3037 = vmatmul.mubr.bf16.gmra.mxu0 %v3002
    %v3038 = vpop.f32.mrf.mxu0
    %v3039 = vadd.f32 %v2956, %v3038
    %v3040 = vpop.f32.mrf.mxu0
    %v3041 = vpop.f32.mrf.mxu0
    %v3042 = vpop.f32.mrf.mxu0
    %3043 = vdwg.mxu0
    %3044 = vst [vmem:[#allocation11] sm:$0xff] %v3039
    // Predicated region
    $region98: #{tpu_custom_call.1} parent=1 // pred_check
      _
    $region99: #{tpu_custom_call.1} parent=1 // pred_check_branch
      %3046 = sbr.rel (0) target = $region101
    $region100: #{tpu_custom_call.1} parent=1 // pred_region
      %s3048 = ssub.s32 128, 128
      %3049 = vsyncadd [#allocation4], %s3048
      %s3051 = sshll.u32 [#allocation11], 4
      %s3052 = int_to_ptr.vmem [resolvable:$true] %s3051
      %3054 = dma.vmem_to_hbm [thread:$0]  %s3052, 128, %s19, [#allocation4]
    $region101: #{tpu_custom_call.1} parent=1 // pred_fallthru
      _
    // Predicated region
    $region102: #{tpu_custom_call.1} parent=1 // pred_check
      _
    $region103: #{tpu_custom_call.1} parent=1 // pred_check_branch
      %3056 = sbr.rel (0) target = $region105
    $region104: #{tpu_custom_call.1} parent=1 // pred_region
      %3057 = dma.done [#allocation4], 128
    $region105: #{tpu_custom_call.1} parent=1 // pred_fallthru
      _
    %3058 = vsyncpa [#allocation3], 1
    %3059 = vsyncpa [#allocation6], 1
    %3060 = vsyncpa [#allocation9], 1
    %3061 = vsyncpa [#allocation4], 1

</llo_original>
